<compile_context>
chip_gen: v5e
topology: v5e:2x2
jax: 0.10.0
libtpu: 0.0.40
codegen_flags: <defaults>
</compile_context>

<pallas_src>
import functools

import jax
import jax.numpy as jnp
from jax import lax
from jax.experimental import pallas as pl
from jax.experimental.pallas import tpu as pltpu


def _pick_tile_h(h_out, w_out, c_in, c_out, budget_bytes=6 << 20):
    """Largest divisor of h_out whose per-step working set fits the budget."""
    for th in range(h_out, 0, -1):
        if h_out % th:
            continue
        tile_bytes = ((th + 2) * (w_out + 2) * c_in * 2        # bf16 input tile
                      + th * w_out * c_out * (4 + 2 + 2))      # f32 acc + bf16 y + bf16 r
        if tile_bytes <= budget_bytes:
            return th
    return 1


# ---------------------------------------------------------------------------
# Kernel: fused 3x3 conv + GroupNorm + ReLU (+ optional fused 1x1 conv_res),
# grid = (sample, pass, row-tile).  Pass 0 accumulates GN stats, pass 1
# normalizes (and runs the fused 1x1).
# ---------------------------------------------------------------------------
def _conv3x3_gn_relu_kernel(x_ref, w_ref, gb_ref, gsum_ref, gbc_ref, *rest,
                            eps, fuse_res):
    # x_ref   : (1, th+2, W+2, Cin) bf16   halo'd NHWC row tile
    # w_ref   : (9, Cin, Cout)      bf16   per-tap weight matrices (kh*3+kw)
    # gb_ref  : (2, Cout)           f32    row 0 = gamma, row 1 = beta
    # gsum_ref: (Cout, G)           f32    group indicator / (P * cpg)
    # gbc_ref : (G, Cout)           f32    group -> channel broadcast indicator
    # rest    : [wr_ref (Cout, Cr) bf16, br_ref (1, Cr) f32,]   (if fuse_res)
    #           y_ref (1, M, Cout) [, r_ref (1, M, Cr)],
    #           sum_sc, ssq_sc, scale_sc, shift_sc : (1, Cout) f32 VMEM scratch
    if fuse_res:
        wr_ref, br_ref, y_ref, r_ref, sum_sc, ssq_sc, scale_sc, shift_sc = rest
    else:
        y_ref, sum_sc, ssq_sc, scale_sc, shift_sc = rest
        wr_ref = br_ref = r_ref = None

    p = pl.program_id(1)          # 0 = stats pass, 1 = normalize pass
    t = pl.program_id(2)          # row-tile index within the sample
    n_tiles = pl.num_programs(2)

    x = x_ref[0]                                       # (th+2, W+2, Cin)
    th = x.shape[0] - 2
    w_out = x.shape[1] - 2
    c_in = x.shape[2]
    c_out = w_ref.shape[2]
    m = th * w_out

    # 3x3 conv for this row tile: 9 accumulating MXU matmuls built from VMEM
    # slices of the halo'd tile (one width-shifted flattening per kw, then a
    # contiguous row window per kh).  No HBM patch matrix is materialized.
    acc = jnp.zeros((m, c_out), jnp.float32)
    for kw in range(3):
        xw = x[:, kw:kw + w_out, :].reshape((th + 2) * w_out, c_in)
        for kh in range(3):
            lhs = xw[kh * w_out:kh * w_out + m, :]
            acc = acc + jnp.dot(lhs, w_ref[kh * 3 + kw],
                                preferred_element_type=jnp.float32)

    # ---- pass 0: accumulate per-channel GroupNorm statistics --------------
    @pl.when((p == 0) & (t == 0))
    def _():
        sum_sc[...] = jnp.zeros_like(sum_sc)
        ssq_sc[...] = jnp.zeros_like(ssq_sc)

    @pl.when(p == 0)
    def _():
        sum_sc[...] += jnp.sum(acc, axis=0, keepdims=True)
        ssq_sc[...] += jnp.sum(acc * acc, axis=0, keepdims=True)

    @pl.when((p == 0) & (t == n_tiles - 1))
    def _():
        # Group stats from (1, C) rows via tiny precomputed indicator matmuls;
        # the big (M, C) activation never changes layout.
        mean_g = jnp.dot(sum_sc[...], gsum_ref[...],
                         preferred_element_type=jnp.float32)
        var_g = jnp.dot(ssq_sc[...], gsum_ref[...],
                        preferred_element_type=jnp.float32) - mean_g * mean_g
        inv_g = lax.rsqrt(var_g + eps)                 # EUP
        mean_c = jnp.dot(mean_g, gbc_ref[...],
                         preferred_element_type=jnp.float32)
        inv_c = jnp.dot(inv_g, gbc_ref[...],
                        preferred_element_type=jnp.float32)
        gamma = gb_ref[0:1, :]
        beta = gb_ref[1:2, :]
        scale = gamma * inv_c
        scale_sc[...] = scale
        shift_sc[...] = beta - mean_c * scale

    # ---- pass 1: fused normalize + affine + ReLU (+ fused 1x1 conv_res) ---
    @pl.when(p == 1)
    def _():
        y = jnp.maximum(acc * scale_sc[...] + shift_sc[...], 0.0)
        y_ref[...] = y.reshape(1, m, c_out).astype(y_ref.dtype)
        if fuse_res:
            r = jnp.dot(y.astype(wr_ref.dtype), wr_ref[...],
                        preferred_element_type=jnp.float32) + br_ref[...]
            r_ref[...] = r.reshape(1, m, r.shape[-1]).astype(r_ref.dtype)


# ---------------------------------------------------------------------------
# Wrapper
# ---------------------------------------------------------------------------
def conv3x3_gn_relu(x_nhwc, w_oihw, gamma, beta, *, n_groups, eps=1e-5,
                    tile_h=None, res_w=None, res_b=None,
                    mm_dtype=jnp.bfloat16, out_dtype=jnp.bfloat16):
    """3x3 stride-1 'same' conv (no bias) + GroupNorm + ReLU on NHWC input.

    If `res_w`/`res_b` are given, also returns the fused 1x1-conv-with-bias
    output of the activation (conv_res).  Outputs are NHWC `out_dtype` with
    their real channel counts (no lane padding stored to HBM).
    """
    n, h, w, c_in = x_nhwc.shape
    c_out, c_in_w, kh_, kw_ = w_oihw.shape
    assert (kh_, kw_) == (3, 3) and c_in_w == c_in and c_out % n_groups == 0
    h_out, w_out = h, w            # padding=1, stride=1
    p_total = h_out * w_out
    cpg = c_out // n_groups

    th = tile_h if tile_h is not None else _pick_tile_h(h_out, w_out, c_in, c_out)
    assert h_out % th == 0, (h_out, th)
    n_tiles = h_out // th
    m = th * w_out

    # Halo'd row tiles, flattened over (sample, tile): (N*T, th+2, W+2, Cin).
    # Only 2 halo rows per tile are duplicated (vs. a 9x im2col patch matrix).
    xp = jnp.pad(x_nhwc, ((0, 0), (1, 1), (1, 1), (0, 0)))
    x_tiles = jnp.stack([xp[:, t * th:t * th + th + 2] for t in range(n_tiles)],
                        axis=1)
    x_tiles = x_tiles.reshape(n * n_tiles, th + 2, w + 2, c_in).astype(mm_dtype)

    # Per-tap weight matrices: (9, Cin, Cout), tap index k = kh*3 + kw.
    w_taps = jnp.transpose(w_oihw, (2, 3, 1, 0)).reshape(9, c_in, c_out)
    w_taps = w_taps.astype(mm_dtype)
    gb = jnp.stack([gamma, beta]).astype(jnp.float32)            # (2, Cout)

    # Precomputed GroupNorm indicator matrices (1/count folded into gsum).
    grp = jnp.arange(c_out, dtype=jnp.int32) // cpg
    gids = jnp.arange(n_groups, dtype=jnp.int32)
    gsum = ((grp[:, None] == gids[None, :]).astype(jnp.float32)
            / float(p_total * cpg))                              # (Cout, G)
    gbc = (gids[:, None] == grp[None, :]).astype(jnp.float32)    # (G, Cout)

    fuse_res = res_w is not None
    inputs = [x_tiles, w_taps, gb, gsum, gbc]
    in_specs = [
        pl.BlockSpec((1, th + 2, w + 2, c_in),
                     lambda i, p, t: (i * n_tiles + t, 0, 0, 0)),
        pl.BlockSpec((9, c_in, c_out), lambda i, p, t: (0, 0, 0)),
        pl.BlockSpec((2, c_out), lambda i, p, t: (0, 0)),
        pl.BlockSpec((c_out, n_groups), lambda i, p, t: (0, 0)),
        pl.BlockSpec((n_groups, c_out), lambda i, p, t: (0, 0)),
    ]
    # Pass-0 steps park the output index on block (n, 0); it is only written
    # back to HBM after pass 1 has stored real data into it (t * p trick).
    y_spec = pl.BlockSpec((1, m, c_out), lambda i, p, t: (i, t * p, 0))
    y_shape = jax.ShapeDtypeStruct((n, p_total, c_out), out_dtype)

    if fuse_res:
        c_r, c_in_r, rkh, rkw = res_w.shape
        assert (rkh, rkw) == (1, 1) and c_in_r == c_out
        wr = jnp.transpose(res_w[:, :, 0, 0], (1, 0)).astype(mm_dtype)  # (Cout, Cr)
        br = res_b.astype(jnp.float32).reshape(1, c_r)
        inputs += [wr, br]
        in_specs += [pl.BlockSpec((c_out, c_r), lambda i, p, t: (0, 0)),
                     pl.BlockSpec((1, c_r), lambda i, p, t: (0, 0))]
        out_shape = (y_shape, jax.ShapeDtypeStruct((n, p_total, c_r), out_dtype))
        out_specs = (y_spec,
                     pl.BlockSpec((1, m, c_r), lambda i, p, t: (i, t * p, 0)))
    else:
        out_shape = y_shape
        out_specs = y_spec

    kernel = functools.partial(_conv3x3_gn_relu_kernel, eps=eps,
                               fuse_res=fuse_res)
    outs = pl.pallas_call(
        kernel,
        out_shape=out_shape,
        grid_spec=pltpu.PrefetchScalarGridSpec(
            num_scalar_prefetch=0,
            # (sample, pass, row-tile): pass 0 accumulates GN stats across the
            # row tiles of a sample, pass 1 recomputes the conv tile and
            # applies the fused normalize/affine/ReLU (+ 1x1 conv_res).
            grid=(n, 2, n_tiles),
            in_specs=in_specs,
            out_specs=out_specs,
            scratch_shapes=[pltpu.VMEM((1, c_out), jnp.float32)] * 4,
        ),
        compiler_params=pltpu.CompilerParams(
            dimension_semantics=("parallel", "arbitrary", "arbitrary"),
            vmem_limit_bytes=32 * 1024 * 1024),
    )(*inputs)

    if fuse_res:
        y_out, r_out = outs
        return (y_out.reshape(n, h_out, w_out, c_out),
                r_out.reshape(n, h_out, w_out, r_out.shape[-1]))
    return outs.reshape(n, h_out, w_out, c_out)


def frru_forward(y, z, params, *, scale, n_groups, eps=1e-5, tile_h=None):
    """FRRU forward pass (group_norm=True flavour).  y, z are NCHW."""
    n, c_y, h_y, w_y = y.shape
    _, c_z, h_z, w_z = z.shape
    assert h_z == h_y * scale and w_z == w_y * scale
    out_channels = params["w2"].shape[0]

    y_nhwc = jnp.transpose(y, (0, 2, 3, 1)).astype(jnp.float32)
    z_nhwc = jnp.transpose(z, (0, 2, 3, 1)).astype(jnp.float32)

    # MaxPool2d(scale, scale) on z + channel concat [y, pool(z)]  (plain JAX).
    z_pool = z_nhwc.reshape(n, h_y, scale, w_y, scale, c_z).max(axis=(2, 4))
    x = jnp.concatenate([y_nhwc, z_pool], axis=-1)         # (N, Hy, Wy, Cy+Cz)

    # conv1: fused conv3x3 + GN + ReLU (bf16 out, real channel count).
    y1 = conv3x3_gn_relu(x, params["w1"], params["g1"], params["b1"],
                         n_groups=n_groups, eps=eps, tile_h=tile_h)
    # conv2 + fused conv_res (1x1 + bias): y2 and r from one pass over tiles.
    y2, r = conv3x3_gn_relu(y1, params["w2"], params["g2"], params["b2"],
                            n_groups=n_groups, eps=eps, tile_h=tile_h,
                            res_w=params["wr"], res_b=params["br"])

    # Nearest-neighbour upsample + residual add on the z stream (plain JAX).
    r_up = jnp.repeat(jnp.repeat(r.astype(jnp.float32), scale, axis=1),
                      scale, axis=2)
    z_prime = z_nhwc + r_up

    y_prime = jnp.transpose(y2[..., :out_channels].astype(jnp.float32),
                            (0, 3, 1, 2))
    z_prime = jnp.transpose(z_prime, (0, 3, 1, 2))
    return y_prime, z_prime


# ---------------------------------------------------------------------------
# Pure-JAX reference (matches the PyTorch FRRU forward, group_norm=True).
# ---------------------------------------------------------------------------
def _reference_frru(y, z, params, *, scale, n_groups, eps=1e-5):
    def cgr(x, w, gamma, beta):
        out = lax.conv_general_dilated(
            x, w, window_strides=(1, 1), padding=[(1, 1), (1, 1)],
            dimension_numbers=("NCHW", "OIHW", "NCHW"),
            precision=lax.Precision.HIGHEST)
        n, c, h, w_ = out.shape
        og = out.reshape(n, n_groups, c // n_groups, h, w_)
        mean = og.mean(axis=(2, 3, 4), keepdims=True)
        var = ((og - mean) ** 2).mean(axis=(2, 3, 4), keepdims=True)
        on = ((og - mean) / jnp.sqrt(var + eps)).reshape(n, c, h, w_)
        on = on * gamma.reshape(1, -1, 1, 1) + beta.reshape(1, -1, 1, 1)
        return jnp.maximum(on, 0.0)

    n, c_z, h_z, w_z = z.shape
    z_pool = z.reshape(n, c_z, h_z // scale, scale, w_z // scale, scale)
    z_pool = z_pool.max(axis=(3, 5))
    x = jnp.concatenate([y, z_pool], axis=1)
    y1 = cgr(x, params["w1"], params["g1"], params["b1"])
    y2 = cgr(y1, params["w2"], params["g2"], params["b2"])
    r = lax.conv_general_dilated(
        y2, params["wr"], window_strides=(1, 1), padding=[(0, 0), (0, 0)],
        dimension_numbers=("NCHW", "OIHW", "NCHW"),
        precision=lax.Precision.HIGHEST)
    r = r + params["br"].reshape(1, -1, 1, 1)
    r_up = jnp.repeat(jnp.repeat(r, scale, axis=2), scale, axis=3)
    return y2, z + r_up


if __name__ == "__main__":
    # FRRU(prev_channels=16, out_channels=32, scale=2, group_norm=True, n_groups=16)
    N = 2
    prev_channels, out_channels = 16, 32
    scale_f, n_groups = 2, 16
    Hy, Wy = 16, 16                        # y-stream (pooled) resolution
    Hz, Wz = Hy * scale_f, Wy * scale_f    # z-stream (full) resolution, 32 ch

    key = jax.random.PRNGKey(0)
    ky, kz, k1, k2, kr, kg1, kb1, kg2, kb2, kbr = jax.random.split(key, 10)
    y = jax.random.normal(ky, (N, prev_channels, Hy, Wy), jnp.float32)
    z = jax.random.normal(kz, (N, 32, Hz, Wz), jnp.float32)

    params = {
        "w1": 0.1 * jax.random.normal(
            k1, (out_channels, prev_channels + 32, 3, 3), jnp.float32),
        "g1": 1.0 + 0.1 * jax.random.normal(kg1, (out_channels,), jnp.float32),
        "b1": 0.1 * jax.random.normal(kb1, (out_channels,), jnp.float32),
        "w2": 0.1 * jax.random.normal(
            k2, (out_channels, out_channels, 3, 3), jnp.float32),
        "g2": 1.0 + 0.1 * jax.random.normal(kg2, (out_channels,), jnp.float32),
        "b2": 0.1 * jax.random.normal(kb2, (out_channels,), jnp.float32),
        "wr": 0.1 * jax.random.normal(
            kr, (32, out_channels, 1, 1), jnp.float32),
        "br": 0.1 * jax.random.normal(kbr, (32,), jnp.float32),
    }

    # tile_h=8 -> 2 row tiles per sample, exercising the two-pass GroupNorm
    # (pass default tile_h=None to auto-size tiles from the VMEM budget).
    frru = jax.jit(functools.partial(frru_forward, scale=scale_f,
                                     n_groups=n_groups, tile_h=8))
    y_prime, z_prime = frru(y, z, params)
    y_prime, z_prime = jax.block_until_ready((y_prime, z_prime))

    ref_y, ref_z = _reference_frru(y, z, params, scale=scale_f,
                                   n_groups=n_groups)
    assert y_prime.shape == (N, out_channels, Hy, Wy)
    assert z_prime.shape == (N, 32, Hz, Wz)
    # bf16 MXU operands + bf16 intermediate storage across two chained convs
    # -> loose absolute tolerance.  (Pass mm_dtype=out_dtype=jnp.float32 to
    # the wrappers for strict validation.)
    err_y = float(jnp.max(jnp.abs(y_prime - ref_y)))
    err_z = float(jnp.max(jnp.abs(z_prime - ref_z)))
    mean_y = float(jnp.mean(jnp.abs(y_prime - ref_y)))
    mean_z = float(jnp.mean(jnp.abs(z_prime - ref_z)))
    assert err_y < 1e-1 and err_z < 1e-1, (err_y, err_z)
    assert mean_y < 2e-2 and mean_z < 2e-2, (mean_y, mean_z)
    print("KERNEL_OK")
</pallas_src>

<mosaic_0001>
module attributes {stable_mosaic.version = 11 : i64} {
  func.func @_conv3x3_gn_relu_kernel(%arg0: i32, %arg1: i32, %arg2: i32, %arg3: memref<1x10x18x48xbf16, #tpu.memory_space<vmem>>, %arg4: memref<9x48x32xbf16, #tpu.memory_space<vmem>>, %arg5: memref<2x32xf32, #tpu.memory_space<vmem>>, %arg6: memref<32x16xf32, #tpu.memory_space<vmem>>, %arg7: memref<16x32xf32, #tpu.memory_space<vmem>>, %arg8: memref<1x128x32xbf16, #tpu.memory_space<vmem>>, %arg9: memref<1x32xf32, #tpu.memory_space<vmem>>, %arg10: memref<1x32xf32, #tpu.memory_space<vmem>>, %arg11: memref<1x32xf32, #tpu.memory_space<vmem>>, %arg12: memref<1x32xf32, #tpu.memory_space<vmem>>) attributes {dimension_semantics = [#tpu.dimension_semantics<parallel>, #tpu.dimension_semantics<arbitrary>, #tpu.dimension_semantics<arbitrary>], iteration_bounds = array<i64: 2, 2, 2>, scalar_prefetch = 0 : i64, scratch_operands = 4 : i64, tpu.core_type = #tpu.core_type<tc>, window_params = [{transform_indices = @transform_0, window_bounds = array<i64: 1, 10, 18, 48>}, {pipeline_mode = #tpu.pipeline_mode<synchronous>, transform_indices = @transform_1, window_bounds = array<i64: 9, 48, 32>}, {pipeline_mode = #tpu.pipeline_mode<synchronous>, transform_indices = @transform_2, window_bounds = array<i64: 2, 32>}, {pipeline_mode = #tpu.pipeline_mode<synchronous>, transform_indices = @transform_3, window_bounds = array<i64: 32, 16>}, {pipeline_mode = #tpu.pipeline_mode<synchronous>, transform_indices = @transform_4, window_bounds = array<i64: 16, 32>}, {transform_indices = @transform_5, window_bounds = array<i64: 1, 128, 32>}]} {
    %c0 = arith.constant 0 : index
    %c0_0 = arith.constant 0 : index
    %c0_1 = arith.constant 0 : index
    %c0_2 = arith.constant 0 : index
    %0 = vector.load %arg3[%c0, %c0_0, %c0_1, %c0_2] : memref<1x10x18x48xbf16, #tpu.memory_space<vmem>>, vector<1x10x18x48xbf16>
    %1 = vector.shape_cast %0 : vector<1x10x18x48xbf16> to vector<10x18x48xbf16>
    %cst = arith.constant 0.000000e+00 : f32
    %2 = vector.broadcast %cst : f32 to vector<128x32xf32>
    %3 = vector.extract_strided_slice %1 {offsets = [0, 0, 0], sizes = [10, 16, 48], strides = [1, 1, 1]} : vector<10x18x48xbf16> to vector<10x16x48xbf16>
    %4 = vector.shape_cast %3 : vector<10x16x48xbf16> to vector<160x48xbf16>
    %5 = vector.extract_strided_slice %4 {offsets = [0, 0], sizes = [128, 48], strides = [1, 1]} : vector<160x48xbf16> to vector<128x48xbf16>
    %c0_3 = arith.constant 0 : index
    %c0_4 = arith.constant 0 : index
    %c0_5 = arith.constant 0 : index
    %6 = vector.load %arg4[%c0_3, %c0_4, %c0_5] : memref<9x48x32xbf16, #tpu.memory_space<vmem>>, vector<1x48x32xbf16>
    %7 = vector.shape_cast %6 : vector<1x48x32xbf16> to vector<48x32xbf16>
    %cst_6 = arith.constant dense<0.000000e+00> : vector<128x32xf32>
    %8 = tpu.matmul %5, %7, %cst_6 {dimension_numbers = #tpu.dot_dimension_numbers<[1], [0], [0], [1], [0, 0, 1, 1], [], []>} : vector<128x48xbf16>, vector<48x32xbf16>, vector<128x32xf32> -> vector<128x32xf32>
    %9 = arith.addf %2, %8 : vector<128x32xf32>
    %10 = vector.extract_strided_slice %4 {offsets = [16, 0], sizes = [128, 48], strides = [1, 1]} : vector<160x48xbf16> to vector<128x48xbf16>
    %c3 = arith.constant 3 : index
    %c0_7 = arith.constant 0 : index
    %c0_8 = arith.constant 0 : index
    %11 = vector.load %arg4[%c3, %c0_7, %c0_8] : memref<9x48x32xbf16, #tpu.memory_space<vmem>>, vector<1x48x32xbf16>
    %12 = vector.shape_cast %11 : vector<1x48x32xbf16> to vector<48x32xbf16>
    %cst_9 = arith.constant dense<0.000000e+00> : vector<128x32xf32>
    %13 = tpu.matmul %10, %12, %cst_9 {dimension_numbers = #tpu.dot_dimension_numbers<[1], [0], [0], [1], [0, 0, 1, 1], [], []>} : vector<128x48xbf16>, vector<48x32xbf16>, vector<128x32xf32> -> vector<128x32xf32>
    %14 = arith.addf %9, %13 : vector<128x32xf32>
    %15 = vector.extract_strided_slice %4 {offsets = [32, 0], sizes = [128, 48], strides = [1, 1]} : vector<160x48xbf16> to vector<128x48xbf16>
    %c6 = arith.constant 6 : index
    %c0_10 = arith.constant 0 : index
    %c0_11 = arith.constant 0 : index
    %16 = vector.load %arg4[%c6, %c0_10, %c0_11] : memref<9x48x32xbf16, #tpu.memory_space<vmem>>, vector<1x48x32xbf16>
    %17 = vector.shape_cast %16 : vector<1x48x32xbf16> to vector<48x32xbf16>
    %cst_12 = arith.constant dense<0.000000e+00> : vector<128x32xf32>
    %18 = tpu.matmul %15, %17, %cst_12 {dimension_numbers = #tpu.dot_dimension_numbers<[1], [0], [0], [1], [0, 0, 1, 1], [], []>} : vector<128x48xbf16>, vector<48x32xbf16>, vector<128x32xf32> -> vector<128x32xf32>
    %19 = arith.addf %14, %18 : vector<128x32xf32>
    %20 = vector.extract_strided_slice %1 {offsets = [0, 1, 0], sizes = [10, 16, 48], strides = [1, 1, 1]} : vector<10x18x48xbf16> to vector<10x16x48xbf16>
    %21 = vector.shape_cast %20 : vector<10x16x48xbf16> to vector<160x48xbf16>
    %22 = vector.extract_strided_slice %21 {offsets = [0, 0], sizes = [128, 48], strides = [1, 1]} : vector<160x48xbf16> to vector<128x48xbf16>
    %c1 = arith.constant 1 : index
    %c0_13 = arith.constant 0 : index
    %c0_14 = arith.constant 0 : index
    %23 = vector.load %arg4[%c1, %c0_13, %c0_14] : memref<9x48x32xbf16, #tpu.memory_space<vmem>>, vector<1x48x32xbf16>
    %24 = vector.shape_cast %23 : vector<1x48x32xbf16> to vector<48x32xbf16>
    %cst_15 = arith.constant dense<0.000000e+00> : vector<128x32xf32>
    %25 = tpu.matmul %22, %24, %cst_15 {dimension_numbers = #tpu.dot_dimension_numbers<[1], [0], [0], [1], [0, 0, 1, 1], [], []>} : vector<128x48xbf16>, vector<48x32xbf16>, vector<128x32xf32> -> vector<128x32xf32>
    %26 = arith.addf %19, %25 : vector<128x32xf32>
    %27 = vector.extract_strided_slice %21 {offsets = [16, 0], sizes = [128, 48], strides = [1, 1]} : vector<160x48xbf16> to vector<128x48xbf16>
    %c4 = arith.constant 4 : index
    %c0_16 = arith.constant 0 : index
    %c0_17 = arith.constant 0 : index
    %28 = vector.load %arg4[%c4, %c0_16, %c0_17] : memref<9x48x32xbf16, #tpu.memory_space<vmem>>, vector<1x48x32xbf16>
    %29 = vector.shape_cast %28 : vector<1x48x32xbf16> to vector<48x32xbf16>
    %cst_18 = arith.constant dense<0.000000e+00> : vector<128x32xf32>
    %30 = tpu.matmul %27, %29, %cst_18 {dimension_numbers = #tpu.dot_dimension_numbers<[1], [0], [0], [1], [0, 0, 1, 1], [], []>} : vector<128x48xbf16>, vector<48x32xbf16>, vector<128x32xf32> -> vector<128x32xf32>
    %31 = arith.addf %26, %30 : vector<128x32xf32>
    %32 = vector.extract_strided_slice %21 {offsets = [32, 0], sizes = [128, 48], strides = [1, 1]} : vector<160x48xbf16> to vector<128x48xbf16>
    %c7 = arith.constant 7 : index
    %c0_19 = arith.constant 0 : index
    %c0_20 = arith.constant 0 : index
    %33 = vector.load %arg4[%c7, %c0_19, %c0_20] : memref<9x48x32xbf16, #tpu.memory_space<vmem>>, vector<1x48x32xbf16>
    %34 = vector.shape_cast %33 : vector<1x48x32xbf16> to vector<48x32xbf16>
    %cst_21 = arith.constant dense<0.000000e+00> : vector<128x32xf32>
    %35 = tpu.matmul %32, %34, %cst_21 {dimension_numbers = #tpu.dot_dimension_numbers<[1], [0], [0], [1], [0, 0, 1, 1], [], []>} : vector<128x48xbf16>, vector<48x32xbf16>, vector<128x32xf32> -> vector<128x32xf32>
    %36 = arith.addf %31, %35 : vector<128x32xf32>
    %37 = vector.extract_strided_slice %1 {offsets = [0, 2, 0], sizes = [10, 16, 48], strides = [1, 1, 1]} : vector<10x18x48xbf16> to vector<10x16x48xbf16>
    %38 = vector.shape_cast %37 : vector<10x16x48xbf16> to vector<160x48xbf16>
    %39 = vector.extract_strided_slice %38 {offsets = [0, 0], sizes = [128, 48], strides = [1, 1]} : vector<160x48xbf16> to vector<128x48xbf16>
    %c2 = arith.constant 2 : index
    %c0_22 = arith.constant 0 : index
    %c0_23 = arith.constant 0 : index
    %40 = vector.load %arg4[%c2, %c0_22, %c0_23] : memref<9x48x32xbf16, #tpu.memory_space<vmem>>, vector<1x48x32xbf16>
    %41 = vector.shape_cast %40 : vector<1x48x32xbf16> to vector<48x32xbf16>
    %cst_24 = arith.constant dense<0.000000e+00> : vector<128x32xf32>
    %42 = tpu.matmul %39, %41, %cst_24 {dimension_numbers = #tpu.dot_dimension_numbers<[1], [0], [0], [1], [0, 0, 1, 1], [], []>} : vector<128x48xbf16>, vector<48x32xbf16>, vector<128x32xf32> -> vector<128x32xf32>
    %43 = arith.addf %36, %42 : vector<128x32xf32>
    %44 = vector.extract_strided_slice %38 {offsets = [16, 0], sizes = [128, 48], strides = [1, 1]} : vector<160x48xbf16> to vector<128x48xbf16>
    %c5 = arith.constant 5 : index
    %c0_25 = arith.constant 0 : index
    %c0_26 = arith.constant 0 : index
    %45 = vector.load %arg4[%c5, %c0_25, %c0_26] : memref<9x48x32xbf16, #tpu.memory_space<vmem>>, vector<1x48x32xbf16>
    %46 = vector.shape_cast %45 : vector<1x48x32xbf16> to vector<48x32xbf16>
    %cst_27 = arith.constant dense<0.000000e+00> : vector<128x32xf32>
    %47 = tpu.matmul %44, %46, %cst_27 {dimension_numbers = #tpu.dot_dimension_numbers<[1], [0], [0], [1], [0, 0, 1, 1], [], []>} : vector<128x48xbf16>, vector<48x32xbf16>, vector<128x32xf32> -> vector<128x32xf32>
    %48 = arith.addf %43, %47 : vector<128x32xf32>
    %49 = vector.extract_strided_slice %38 {offsets = [32, 0], sizes = [128, 48], strides = [1, 1]} : vector<160x48xbf16> to vector<128x48xbf16>
    %c8 = arith.constant 8 : index
    %c0_28 = arith.constant 0 : index
    %c0_29 = arith.constant 0 : index
    %50 = vector.load %arg4[%c8, %c0_28, %c0_29] : memref<9x48x32xbf16, #tpu.memory_space<vmem>>, vector<1x48x32xbf16>
    %51 = vector.shape_cast %50 : vector<1x48x32xbf16> to vector<48x32xbf16>
    %cst_30 = arith.constant dense<0.000000e+00> : vector<128x32xf32>
    %52 = tpu.matmul %49, %51, %cst_30 {dimension_numbers = #tpu.dot_dimension_numbers<[1], [0], [0], [1], [0, 0, 1, 1], [], []>} : vector<128x48xbf16>, vector<48x32xbf16>, vector<128x32xf32> -> vector<128x32xf32>
    %53 = arith.addf %48, %52 : vector<128x32xf32>
    %c0_i32 = arith.constant 0 : i32
    %54 = arith.cmpi eq, %arg1, %c0_i32 : i32
    %c0_i32_31 = arith.constant 0 : i32
    %55 = arith.cmpi eq, %arg2, %c0_i32_31 : i32
    %56 = arith.andi %54, %55 : i1
    %57 = arith.extui %56 : i1 to i32
    %c0_i32_32 = arith.constant 0 : i32
    %58 = arith.cmpi ne, %57, %c0_i32_32 : i32
    scf.if %58 {
      %cst_39 = arith.constant 0.000000e+00 : f32
      %70 = vector.broadcast %cst_39 : f32 to vector<1x32xf32>
      %c0_40 = arith.constant 0 : index
      %c0_41 = arith.constant 0 : index
      %71 = vector.load %arg9[%c0_40, %c0_41] : memref<1x32xf32, #tpu.memory_space<vmem>>, vector<1x32xf32>
      tpu.vector_store %arg9[%c0_40, %c0_41], %70 {strides = array<i32>} : memref<1x32xf32, #tpu.memory_space<vmem>>, vector<1x32xf32>,
      %cst_42 = arith.constant 0.000000e+00 : f32
      %72 = vector.broadcast %cst_42 : f32 to vector<1x32xf32>
      %c0_43 = arith.constant 0 : index
      %c0_44 = arith.constant 0 : index
      %73 = vector.load %arg10[%c0_43, %c0_44] : memref<1x32xf32, #tpu.memory_space<vmem>>, vector<1x32xf32>
      tpu.vector_store %arg10[%c0_43, %c0_44], %72 {strides = array<i32>} : memref<1x32xf32, #tpu.memory_space<vmem>>, vector<1x32xf32>,
    } else {
    }
    %c0_i32_33 = arith.constant 0 : i32
    %59 = arith.cmpi eq, %arg1, %c0_i32_33 : i32
    %60 = arith.extui %59 : i1 to i32
    %c0_i32_34 = arith.constant 0 : i32
    %61 = arith.cmpi ne, %60, %c0_i32_34 : i32
    scf.if %61 {
      %c0_39 = arith.constant 0 : index
      %c0_40 = arith.constant 0 : index
      %70 = vector.load %arg9[%c0_39, %c0_40] : memref<1x32xf32, #tpu.memory_space<vmem>>, vector<1x32xf32>
      %cst_41 = arith.constant dense<0.000000e+00> : vector<32xf32>
      %71 = vector.multi_reduction <add>, %53, %cst_41 [0] : vector<128x32xf32> to vector<32xf32>
      %72 = vector.shape_cast %71 : vector<32xf32> to vector<1x32xf32>
      %73 = arith.addf %70, %72 : vector<1x32xf32>
      %c0_42 = arith.constant 0 : index
      %c0_43 = arith.constant 0 : index
      %74 = vector.load %arg9[%c0_42, %c0_43] : memref<1x32xf32, #tpu.memory_space<vmem>>, vector<1x32xf32>
      tpu.vector_store %arg9[%c0_42, %c0_43], %73 {strides = array<i32>} : memref<1x32xf32, #tpu.memory_space<vmem>>, vector<1x32xf32>,
      %c0_44 = arith.constant 0 : index
      %c0_45 = arith.constant 0 : index
      %75 = vector.load %arg10[%c0_44, %c0_45] : memref<1x32xf32, #tpu.memory_space<vmem>>, vector<1x32xf32>
      %76 = arith.mulf %53, %53 : vector<128x32xf32>
      %cst_46 = arith.constant dense<0.000000e+00> : vector<32xf32>
      %77 = vector.multi_reduction <add>, %76, %cst_46 [0] : vector<128x32xf32> to vector<32xf32>
      %78 = vector.shape_cast %77 : vector<32xf32> to vector<1x32xf32>
      %79 = arith.addf %75, %78 : vector<1x32xf32>
      %c0_47 = arith.constant 0 : index
      %c0_48 = arith.constant 0 : index
      %80 = vector.load %arg10[%c0_47, %c0_48] : memref<1x32xf32, #tpu.memory_space<vmem>>, vector<1x32xf32>
      tpu.vector_store %arg10[%c0_47, %c0_48], %79 {strides = array<i32>} : memref<1x32xf32, #tpu.memory_space<vmem>>, vector<1x32xf32>,
    } else {
    }
    %c0_i32_35 = arith.constant 0 : i32
    %62 = arith.cmpi eq, %arg1, %c0_i32_35 : i32
    %c1_i32 = arith.constant 1 : i32
    %63 = arith.cmpi eq, %arg2, %c1_i32 : i32
    %64 = arith.andi %62, %63 : i1
    %65 = arith.extui %64 : i1 to i32
    %c0_i32_36 = arith.constant 0 : i32
    %66 = arith.cmpi ne, %65, %c0_i32_36 : i32
    scf.if %66 {
      %c0_39 = arith.constant 0 : index
      %c0_40 = arith.constant 0 : index
      %70 = vector.load %arg9[%c0_39, %c0_40] : memref<1x32xf32, #tpu.memory_space<vmem>>, vector<1x32xf32>
      %c0_41 = arith.constant 0 : index
      %c0_42 = arith.constant 0 : index
      %71 = vector.load %arg6[%c0_41, %c0_42] : memref<32x16xf32, #tpu.memory_space<vmem>>, vector<32x16xf32>
      %cst_43 = arith.constant dense<0.000000e+00> : vector<1x16xf32>
      %72 = tpu.matmul %70, %71, %cst_43 {dimension_numbers = #tpu.dot_dimension_numbers<[1], [0], [0], [1], [0, 0, 1, 1], [], []>} : vector<1x32xf32>, vector<32x16xf32>, vector<1x16xf32> -> vector<1x16xf32>
      %c0_44 = arith.constant 0 : index
      %c0_45 = arith.constant 0 : index
      %73 = vector.load %arg10[%c0_44, %c0_45] : memref<1x32xf32, #tpu.memory_space<vmem>>, vector<1x32xf32>
      %c0_46 = arith.constant 0 : index
      %c0_47 = arith.constant 0 : index
      %74 = vector.load %arg6[%c0_46, %c0_47] : memref<32x16xf32, #tpu.memory_space<vmem>>, vector<32x16xf32>
      %cst_48 = arith.constant dense<0.000000e+00> : vector<1x16xf32>
      %75 = tpu.matmul %73, %74, %cst_48 {dimension_numbers = #tpu.dot_dimension_numbers<[1], [0], [0], [1], [0, 0, 1, 1], [], []>} : vector<1x32xf32>, vector<32x16xf32>, vector<1x16xf32> -> vector<1x16xf32>
      %76 = arith.mulf %72, %72 : vector<1x16xf32>
      %77 = arith.subf %75, %76 : vector<1x16xf32>
      %cst_49 = arith.constant 9.99999974E-6 : f32
      %78 = vector.broadcast %cst_49 : f32 to vector<1x16xf32>
      %79 = arith.addf %77, %78 : vector<1x16xf32>
      %80 = math.rsqrt %79 : vector<1x16xf32>
      %c0_50 = arith.constant 0 : index
      %c0_51 = arith.constant 0 : index
      %81 = vector.load %arg7[%c0_50, %c0_51] : memref<16x32xf32, #tpu.memory_space<vmem>>, vector<16x32xf32>
      %cst_52 = arith.constant dense<0.000000e+00> : vector<1x32xf32>
      %82 = tpu.matmul %72, %81, %cst_52 {dimension_numbers = #tpu.dot_dimension_numbers<[1], [0], [0], [1], [0, 0, 1, 1], [], []>} : vector<1x16xf32>, vector<16x32xf32>, vector<1x32xf32> -> vector<1x32xf32>
      %c0_53 = arith.constant 0 : index
      %c0_54 = arith.constant 0 : index
      %83 = vector.load %arg7[%c0_53, %c0_54] : memref<16x32xf32, #tpu.memory_space<vmem>>, vector<16x32xf32>
      %cst_55 = arith.constant dense<0.000000e+00> : vector<1x32xf32>
      %84 = tpu.matmul %80, %83, %cst_55 {dimension_numbers = #tpu.dot_dimension_numbers<[1], [0], [0], [1], [0, 0, 1, 1], [], []>} : vector<1x16xf32>, vector<16x32xf32>, vector<1x32xf32> -> vector<1x32xf32>
      %c0_56 = arith.constant 0 : index
      %c0_57 = arith.constant 0 : index
      %85 = vector.load %arg5[%c0_56, %c0_57] : memref<2x32xf32, #tpu.memory_space<vmem>>, vector<1x32xf32>
      %c1_58 = arith.constant 1 : index
      %c0_59 = arith.constant 0 : index
      %86 = vector.load %arg5[%c1_58, %c0_59] : memref<2x32xf32, #tpu.memory_space<vmem>>, vector<1x32xf32>
      %87 = arith.mulf %85, %84 : vector<1x32xf32>
      %c0_60 = arith.constant 0 : index
      %c0_61 = arith.constant 0 : index
      %88 = vector.load %arg11[%c0_60, %c0_61] : memref<1x32xf32, #tpu.memory_space<vmem>>, vector<1x32xf32>
      tpu.vector_store %arg11[%c0_60, %c0_61], %87 {strides = array<i32>} : memref<1x32xf32, #tpu.memory_space<vmem>>, vector<1x32xf32>,
      %89 = arith.mulf %82, %87 : vector<1x32xf32>
      %90 = arith.subf %86, %89 : vector<1x32xf32>
      %c0_62 = arith.constant 0 : index
      %c0_63 = arith.constant 0 : index
      %91 = vector.load %arg12[%c0_62, %c0_63] : memref<1x32xf32, #tpu.memory_space<vmem>>, vector<1x32xf32>
      tpu.vector_store %arg12[%c0_62, %c0_63], %90 {strides = array<i32>} : memref<1x32xf32, #tpu.memory_space<vmem>>, vector<1x32xf32>,
    } else {
    }
    %c1_i32_37 = arith.constant 1 : i32
    %67 = arith.cmpi eq, %arg1, %c1_i32_37 : i32
    %68 = arith.extui %67 : i1 to i32
    %c0_i32_38 = arith.constant 0 : i32
    %69 = arith.cmpi ne, %68, %c0_i32_38 : i32
    scf.if %69 {
      %c0_39 = arith.constant 0 : index
      %c0_40 = arith.constant 0 : index
      %70 = vector.load %arg11[%c0_39, %c0_40] : memref<1x32xf32, #tpu.memory_space<vmem>>, vector<1x32xf32>
      %71 = vector.broadcast %70 : vector<1x32xf32> to vector<128x32xf32>
      %72 = arith.mulf %53, %71 : vector<128x32xf32>
      %c0_41 = arith.constant 0 : index
      %c0_42 = arith.constant 0 : index
      %73 = vector.load %arg12[%c0_41, %c0_42] : memref<1x32xf32, #tpu.memory_space<vmem>>, vector<1x32xf32>
      %74 = vector.broadcast %73 : vector<1x32xf32> to vector<128x32xf32>
      %75 = arith.addf %72, %74 : vector<128x32xf32>
      %cst_43 = arith.constant 0.000000e+00 : f32
      %76 = vector.broadcast %cst_43 : f32 to vector<128x32xf32>
      %77 = arith.maximumf %75, %76 : vector<128x32xf32>
      %78 = vector.shape_cast %77 : vector<128x32xf32> to vector<1x128x32xf32>
      %79 = arith.truncf %78 : vector<1x128x32xf32> to vector<1x128x32xbf16>
      %c0_44 = arith.constant 0 : index
      %c0_45 = arith.constant 0 : index
      %c0_46 = arith.constant 0 : index
      %80 = vector.load %arg8[%c0_44, %c0_45, %c0_46] : memref<1x128x32xbf16, #tpu.memory_space<vmem>>, vector<1x128x32xbf16>
      tpu.vector_store %arg8[%c0_44, %c0_45, %c0_46], %79 {strides = array<i32>} : memref<1x128x32xbf16, #tpu.memory_space<vmem>>, vector<1x128x32xbf16>,
    } else {
    }
    return
  }
  func.func @transform_0(%arg0: i32, %arg1: i32, %arg2: i32) -> (i32, i32, i32, i32) {
    %c2_i32 = arith.constant 2 : i32
    %0 = arith.muli %arg0, %c2_i32 : i32
    %1 = arith.addi %0, %arg2 : i32
    %c0_i32 = arith.constant 0 : i32
    %c0_i32_0 = arith.constant 0 : i32
    %c0_i32_1 = arith.constant 0 : i32
    %c0_i32_2 = arith.constant 0 : i32
    return %1, %c0_i32, %c0_i32_0, %c0_i32_1 : i32, i32, i32, i32
  }
  func.func @transform_1(%arg0: i32, %arg1: i32, %arg2: i32) -> (i32, i32, i32) {
    %c0_i32 = arith.constant 0 : i32
    %c0_i32_0 = arith.constant 0 : i32
    %c0_i32_1 = arith.constant 0 : i32
    %c0_i32_2 = arith.constant 0 : i32
    return %c0_i32, %c0_i32_0, %c0_i32_1 : i32, i32, i32
  }
  func.func @transform_2(%arg0: i32, %arg1: i32, %arg2: i32) -> (i32, i32) {
    %c0_i32 = arith.constant 0 : i32
    %c0_i32_0 = arith.constant 0 : i32
    %c0_i32_1 = arith.constant 0 : i32
    return %c0_i32, %c0_i32_0 : i32, i32
  }
  func.func @transform_3(%arg0: i32, %arg1: i32, %arg2: i32) -> (i32, i32) {
    %c0_i32 = arith.constant 0 : i32
    %c0_i32_0 = arith.constant 0 : i32
    %c0_i32_1 = arith.constant 0 : i32
    return %c0_i32, %c0_i32_0 : i32, i32
  }
  func.func @transform_4(%arg0: i32, %arg1: i32, %arg2: i32) -> (i32, i32) {
    %c0_i32 = arith.constant 0 : i32
    %c0_i32_0 = arith.constant 0 : i32
    %c0_i32_1 = arith.constant 0 : i32
    return %c0_i32, %c0_i32_0 : i32, i32
  }
  func.func @transform_5(%arg0: i32, %arg1: i32, %arg2: i32) -> (i32, i32, i32) {
    %0 = arith.muli %arg2, %arg1 : i32
    %c0_i32 = arith.constant 0 : i32
    %c0_i32_0 = arith.constant 0 : i32
    return %arg0, %0, %c0_i32 : i32, i32, i32
  }
}

module attributes {stable_mosaic.version = 11 : i64} {
  func.func @_conv3x3_gn_relu_kernel(%arg0: i32, %arg1: i32, %arg2: i32, %arg3: memref<1x10x18x32xbf16, #tpu.memory_space<vmem>>, %arg4: memref<9x32x32xbf16, #tpu.memory_space<vmem>>, %arg5: memref<2x32xf32, #tpu.memory_space<vmem>>, %arg6: memref<32x16xf32, #tpu.memory_space<vmem>>, %arg7: memref<16x32xf32, #tpu.memory_space<vmem>>, %arg8: memref<32x32xbf16, #tpu.memory_space<vmem>>, %arg9: memref<1x32xf32, #tpu.memory_space<vmem>>, %arg10: memref<1x128x32xbf16, #tpu.memory_space<vmem>>, %arg11: memref<1x128x32xbf16, #tpu.memory_space<vmem>>, %arg12: memref<1x32xf32, #tpu.memory_space<vmem>>, %arg13: memref<1x32xf32, #tpu.memory_space<vmem>>, %arg14: memref<1x32xf32, #tpu.memory_space<vmem>>, %arg15: memref<1x32xf32, #tpu.memory_space<vmem>>) attributes {dimension_semantics = [#tpu.dimension_semantics<parallel>, #tpu.dimension_semantics<arbitrary>, #tpu.dimension_semantics<arbitrary>], iteration_bounds = array<i64: 2, 2, 2>, scalar_prefetch = 0 : i64, scratch_operands = 4 : i64, tpu.core_type = #tpu.core_type<tc>, window_params = [{transform_indices = @transform_0, window_bounds = array<i64: 1, 10, 18, 32>}, {pipeline_mode = #tpu.pipeline_mode<synchronous>, transform_indices = @transform_1, window_bounds = array<i64: 9, 32, 32>}, {pipeline_mode = #tpu.pipeline_mode<synchronous>, transform_indices = @transform_2, window_bounds = array<i64: 2, 32>}, {pipeline_mode = #tpu.pipeline_mode<synchronous>, transform_indices = @transform_3, window_bounds = array<i64: 32, 16>}, {pipeline_mode = #tpu.pipeline_mode<synchronous>, transform_indices = @transform_4, window_bounds = array<i64: 16, 32>}, {pipeline_mode = #tpu.pipeline_mode<synchronous>, transform_indices = @transform_5, window_bounds = array<i64: 32, 32>}, {pipeline_mode = #tpu.pipeline_mode<synchronous>, transform_indices = @transform_6, window_bounds = array<i64: 1, 32>}, {transform_indices = @transform_7, window_bounds = array<i64: 1, 128, 32>}, {transform_indices = @transform_8, window_bounds = array<i64: 1, 128, 32>}]} {
    %c0 = arith.constant 0 : index
    %c0_0 = arith.constant 0 : index
    %c0_1 = arith.constant 0 : index
    %c0_2 = arith.constant 0 : index
    %0 = vector.load %arg3[%c0, %c0_0, %c0_1, %c0_2] : memref<1x10x18x32xbf16, #tpu.memory_space<vmem>>, vector<1x10x18x32xbf16>
    %1 = vector.shape_cast %0 : vector<1x10x18x32xbf16> to vector<10x18x32xbf16>
    %cst = arith.constant 0.000000e+00 : f32
    %2 = vector.broadcast %cst : f32 to vector<128x32xf32>
    %3 = vector.extract_strided_slice %1 {offsets = [0, 0, 0], sizes = [10, 16, 32], strides = [1, 1, 1]} : vector<10x18x32xbf16> to vector<10x16x32xbf16>
    %4 = vector.shape_cast %3 : vector<10x16x32xbf16> to vector<160x32xbf16>
    %5 = vector.extract_strided_slice %4 {offsets = [0, 0], sizes = [128, 32], strides = [1, 1]} : vector<160x32xbf16> to vector<128x32xbf16>
    %c0_3 = arith.constant 0 : index
    %c0_4 = arith.constant 0 : index
    %c0_5 = arith.constant 0 : index
    %6 = vector.load %arg4[%c0_3, %c0_4, %c0_5] : memref<9x32x32xbf16, #tpu.memory_space<vmem>>, vector<1x32x32xbf16>
    %7 = vector.shape_cast %6 : vector<1x32x32xbf16> to vector<32x32xbf16>
    %cst_6 = arith.constant dense<0.000000e+00> : vector<128x32xf32>
    %8 = tpu.matmul %5, %7, %cst_6 {dimension_numbers = #tpu.dot_dimension_numbers<[1], [0], [0], [1], [0, 0, 1, 1], [], []>} : vector<128x32xbf16>, vector<32x32xbf16>, vector<128x32xf32> -> vector<128x32xf32>
    %9 = arith.addf %2, %8 : vector<128x32xf32>
    %10 = vector.extract_strided_slice %4 {offsets = [16, 0], sizes = [128, 32], strides = [1, 1]} : vector<160x32xbf16> to vector<128x32xbf16>
    %c3 = arith.constant 3 : index
    %c0_7 = arith.constant 0 : index
    %c0_8 = arith.constant 0 : index
    %11 = vector.load %arg4[%c3, %c0_7, %c0_8] : memref<9x32x32xbf16, #tpu.memory_space<vmem>>, vector<1x32x32xbf16>
    %12 = vector.shape_cast %11 : vector<1x32x32xbf16> to vector<32x32xbf16>
    %cst_9 = arith.constant dense<0.000000e+00> : vector<128x32xf32>
    %13 = tpu.matmul %10, %12, %cst_9 {dimension_numbers = #tpu.dot_dimension_numbers<[1], [0], [0], [1], [0, 0, 1, 1], [], []>} : vector<128x32xbf16>, vector<32x32xbf16>, vector<128x32xf32> -> vector<128x32xf32>
    %14 = arith.addf %9, %13 : vector<128x32xf32>
    %15 = vector.extract_strided_slice %4 {offsets = [32, 0], sizes = [128, 32], strides = [1, 1]} : vector<160x32xbf16> to vector<128x32xbf16>
    %c6 = arith.constant 6 : index
    %c0_10 = arith.constant 0 : index
    %c0_11 = arith.constant 0 : index
    %16 = vector.load %arg4[%c6, %c0_10, %c0_11] : memref<9x32x32xbf16, #tpu.memory_space<vmem>>, vector<1x32x32xbf16>
    %17 = vector.shape_cast %16 : vector<1x32x32xbf16> to vector<32x32xbf16>
    %cst_12 = arith.constant dense<0.000000e+00> : vector<128x32xf32>
    %18 = tpu.matmul %15, %17, %cst_12 {dimension_numbers = #tpu.dot_dimension_numbers<[1], [0], [0], [1], [0, 0, 1, 1], [], []>} : vector<128x32xbf16>, vector<32x32xbf16>, vector<128x32xf32> -> vector<128x32xf32>
    %19 = arith.addf %14, %18 : vector<128x32xf32>
    %20 = vector.extract_strided_slice %1 {offsets = [0, 1, 0], sizes = [10, 16, 32], strides = [1, 1, 1]} : vector<10x18x32xbf16> to vector<10x16x32xbf16>
    %21 = vector.shape_cast %20 : vector<10x16x32xbf16> to vector<160x32xbf16>
    %22 = vector.extract_strided_slice %21 {offsets = [0, 0], sizes = [128, 32], strides = [1, 1]} : vector<160x32xbf16> to vector<128x32xbf16>
    %c1 = arith.constant 1 : index
    %c0_13 = arith.constant 0 : index
    %c0_14 = arith.constant 0 : index
    %23 = vector.load %arg4[%c1, %c0_13, %c0_14] : memref<9x32x32xbf16, #tpu.memory_space<vmem>>, vector<1x32x32xbf16>
    %24 = vector.shape_cast %23 : vector<1x32x32xbf16> to vector<32x32xbf16>
    %cst_15 = arith.constant dense<0.000000e+00> : vector<128x32xf32>
    %25 = tpu.matmul %22, %24, %cst_15 {dimension_numbers = #tpu.dot_dimension_numbers<[1], [0], [0], [1], [0, 0, 1, 1], [], []>} : vector<128x32xbf16>, vector<32x32xbf16>, vector<128x32xf32> -> vector<128x32xf32>
    %26 = arith.addf %19, %25 : vector<128x32xf32>
    %27 = vector.extract_strided_slice %21 {offsets = [16, 0], sizes = [128, 32], strides = [1, 1]} : vector<160x32xbf16> to vector<128x32xbf16>
    %c4 = arith.constant 4 : index
    %c0_16 = arith.constant 0 : index
    %c0_17 = arith.constant 0 : index
    %28 = vector.load %arg4[%c4, %c0_16, %c0_17] : memref<9x32x32xbf16, #tpu.memory_space<vmem>>, vector<1x32x32xbf16>
    %29 = vector.shape_cast %28 : vector<1x32x32xbf16> to vector<32x32xbf16>
    %cst_18 = arith.constant dense<0.000000e+00> : vector<128x32xf32>
    %30 = tpu.matmul %27, %29, %cst_18 {dimension_numbers = #tpu.dot_dimension_numbers<[1], [0], [0], [1], [0, 0, 1, 1], [], []>} : vector<128x32xbf16>, vector<32x32xbf16>, vector<128x32xf32> -> vector<128x32xf32>
    %31 = arith.addf %26, %30 : vector<128x32xf32>
    %32 = vector.extract_strided_slice %21 {offsets = [32, 0], sizes = [128, 32], strides = [1, 1]} : vector<160x32xbf16> to vector<128x32xbf16>
    %c7 = arith.constant 7 : index
    %c0_19 = arith.constant 0 : index
    %c0_20 = arith.constant 0 : index
    %33 = vector.load %arg4[%c7, %c0_19, %c0_20] : memref<9x32x32xbf16, #tpu.memory_space<vmem>>, vector<1x32x32xbf16>
    %34 = vector.shape_cast %33 : vector<1x32x32xbf16> to vector<32x32xbf16>
    %cst_21 = arith.constant dense<0.000000e+00> : vector<128x32xf32>
    %35 = tpu.matmul %32, %34, %cst_21 {dimension_numbers = #tpu.dot_dimension_numbers<[1], [0], [0], [1], [0, 0, 1, 1], [], []>} : vector<128x32xbf16>, vector<32x32xbf16>, vector<128x32xf32> -> vector<128x32xf32>
    %36 = arith.addf %31, %35 : vector<128x32xf32>
    %37 = vector.extract_strided_slice %1 {offsets = [0, 2, 0], sizes = [10, 16, 32], strides = [1, 1, 1]} : vector<10x18x32xbf16> to vector<10x16x32xbf16>
    %38 = vector.shape_cast %37 : vector<10x16x32xbf16> to vector<160x32xbf16>
    %39 = vector.extract_strided_slice %38 {offsets = [0, 0], sizes = [128, 32], strides = [1, 1]} : vector<160x32xbf16> to vector<128x32xbf16>
    %c2 = arith.constant 2 : index
    %c0_22 = arith.constant 0 : index
    %c0_23 = arith.constant 0 : index
    %40 = vector.load %arg4[%c2, %c0_22, %c0_23] : memref<9x32x32xbf16, #tpu.memory_space<vmem>>, vector<1x32x32xbf16>
    %41 = vector.shape_cast %40 : vector<1x32x32xbf16> to vector<32x32xbf16>
    %cst_24 = arith.constant dense<0.000000e+00> : vector<128x32xf32>
    %42 = tpu.matmul %39, %41, %cst_24 {dimension_numbers = #tpu.dot_dimension_numbers<[1], [0], [0], [1], [0, 0, 1, 1], [], []>} : vector<128x32xbf16>, vector<32x32xbf16>, vector<128x32xf32> -> vector<128x32xf32>
    %43 = arith.addf %36, %42 : vector<128x32xf32>
    %44 = vector.extract_strided_slice %38 {offsets = [16, 0], sizes = [128, 32], strides = [1, 1]} : vector<160x32xbf16> to vector<128x32xbf16>
    %c5 = arith.constant 5 : index
    %c0_25 = arith.constant 0 : index
    %c0_26 = arith.constant 0 : index
    %45 = vector.load %arg4[%c5, %c0_25, %c0_26] : memref<9x32x32xbf16, #tpu.memory_space<vmem>>, vector<1x32x32xbf16>
    %46 = vector.shape_cast %45 : vector<1x32x32xbf16> to vector<32x32xbf16>
    %cst_27 = arith.constant dense<0.000000e+00> : vector<128x32xf32>
    %47 = tpu.matmul %44, %46, %cst_27 {dimension_numbers = #tpu.dot_dimension_numbers<[1], [0], [0], [1], [0, 0, 1, 1], [], []>} : vector<128x32xbf16>, vector<32x32xbf16>, vector<128x32xf32> -> vector<128x32xf32>
    %48 = arith.addf %43, %47 : vector<128x32xf32>
    %49 = vector.extract_strided_slice %38 {offsets = [32, 0], sizes = [128, 32], strides = [1, 1]} : vector<160x32xbf16> to vector<128x32xbf16>
    %c8 = arith.constant 8 : index
    %c0_28 = arith.constant 0 : index
    %c0_29 = arith.constant 0 : index
    %50 = vector.load %arg4[%c8, %c0_28, %c0_29] : memref<9x32x32xbf16, #tpu.memory_space<vmem>>, vector<1x32x32xbf16>
    %51 = vector.shape_cast %50 : vector<1x32x32xbf16> to vector<32x32xbf16>
    %cst_30 = arith.constant dense<0.000000e+00> : vector<128x32xf32>
    %52 = tpu.matmul %49, %51, %cst_30 {dimension_numbers = #tpu.dot_dimension_numbers<[1], [0], [0], [1], [0, 0, 1, 1], [], []>} : vector<128x32xbf16>, vector<32x32xbf16>, vector<128x32xf32> -> vector<128x32xf32>
    %53 = arith.addf %48, %52 : vector<128x32xf32>
    %c0_i32 = arith.constant 0 : i32
    %54 = arith.cmpi eq, %arg1, %c0_i32 : i32
    %c0_i32_31 = arith.constant 0 : i32
    %55 = arith.cmpi eq, %arg2, %c0_i32_31 : i32
    %56 = arith.andi %54, %55 : i1
    %57 = arith.extui %56 : i1 to i32
    %c0_i32_32 = arith.constant 0 : i32
    %58 = arith.cmpi ne, %57, %c0_i32_32 : i32
    scf.if %58 {
      %cst_39 = arith.constant 0.000000e+00 : f32
      %70 = vector.broadcast %cst_39 : f32 to vector<1x32xf32>
      %c0_40 = arith.constant 0 : index
      %c0_41 = arith.constant 0 : index
      %71 = vector.load %arg12[%c0_40, %c0_41] : memref<1x32xf32, #tpu.memory_space<vmem>>, vector<1x32xf32>
      tpu.vector_store %arg12[%c0_40, %c0_41], %70 {strides = array<i32>} : memref<1x32xf32, #tpu.memory_space<vmem>>, vector<1x32xf32>,
      %cst_42 = arith.constant 0.000000e+00 : f32
      %72 = vector.broadcast %cst_42 : f32 to vector<1x32xf32>
      %c0_43 = arith.constant 0 : index
      %c0_44 = arith.constant 0 : index
      %73 = vector.load %arg13[%c0_43, %c0_44] : memref<1x32xf32, #tpu.memory_space<vmem>>, vector<1x32xf32>
      tpu.vector_store %arg13[%c0_43, %c0_44], %72 {strides = array<i32>} : memref<1x32xf32, #tpu.memory_space<vmem>>, vector<1x32xf32>,
    } else {
    }
    %c0_i32_33 = arith.constant 0 : i32
    %59 = arith.cmpi eq, %arg1, %c0_i32_33 : i32
    %60 = arith.extui %59 : i1 to i32
    %c0_i32_34 = arith.constant 0 : i32
    %61 = arith.cmpi ne, %60, %c0_i32_34 : i32
    scf.if %61 {
      %c0_39 = arith.constant 0 : index
      %c0_40 = arith.constant 0 : index
      %70 = vector.load %arg12[%c0_39, %c0_40] : memref<1x32xf32, #tpu.memory_space<vmem>>, vector<1x32xf32>
      %cst_41 = arith.constant dense<0.000000e+00> : vector<32xf32>
      %71 = vector.multi_reduction <add>, %53, %cst_41 [0] : vector<128x32xf32> to vector<32xf32>
      %72 = vector.shape_cast %71 : vector<32xf32> to vector<1x32xf32>
      %73 = arith.addf %70, %72 : vector<1x32xf32>
      %c0_42 = arith.constant 0 : index
      %c0_43 = arith.constant 0 : index
      %74 = vector.load %arg12[%c0_42, %c0_43] : memref<1x32xf32, #tpu.memory_space<vmem>>, vector<1x32xf32>
      tpu.vector_store %arg12[%c0_42, %c0_43], %73 {strides = array<i32>} : memref<1x32xf32, #tpu.memory_space<vmem>>, vector<1x32xf32>,
      %c0_44 = arith.constant 0 : index
      %c0_45 = arith.constant 0 : index
      %75 = vector.load %arg13[%c0_44, %c0_45] : memref<1x32xf32, #tpu.memory_space<vmem>>, vector<1x32xf32>
      %76 = arith.mulf %53, %53 : vector<128x32xf32>
      %cst_46 = arith.constant dense<0.000000e+00> : vector<32xf32>
      %77 = vector.multi_reduction <add>, %76, %cst_46 [0] : vector<128x32xf32> to vector<32xf32>
      %78 = vector.shape_cast %77 : vector<32xf32> to vector<1x32xf32>
      %79 = arith.addf %75, %78 : vector<1x32xf32>
      %c0_47 = arith.constant 0 : index
      %c0_48 = arith.constant 0 : index
      %80 = vector.load %arg13[%c0_47, %c0_48] : memref<1x32xf32, #tpu.memory_space<vmem>>, vector<1x32xf32>
      tpu.vector_store %arg13[%c0_47, %c0_48], %79 {strides = array<i32>} : memref<1x32xf32, #tpu.memory_space<vmem>>, vector<1x32xf32>,
    } else {
    }
    %c0_i32_35 = arith.constant 0 : i32
    %62 = arith.cmpi eq, %arg1, %c0_i32_35 : i32
    %c1_i32 = arith.constant 1 : i32
    %63 = arith.cmpi eq, %arg2, %c1_i32 : i32
    %64 = arith.andi %62, %63 : i1
    %65 = arith.extui %64 : i1 to i32
    %c0_i32_36 = arith.constant 0 : i32
    %66 = arith.cmpi ne, %65, %c0_i32_36 : i32
    scf.if %66 {
      %c0_39 = arith.constant 0 : index
      %c0_40 = arith.constant 0 : index
      %70 = vector.load %arg12[%c0_39, %c0_40] : memref<1x32xf32, #tpu.memory_space<vmem>>, vector<1x32xf32>
      %c0_41 = arith.constant 0 : index
      %c0_42 = arith.constant 0 : index
      %71 = vector.load %arg6[%c0_41, %c0_42] : memref<32x16xf32, #tpu.memory_space<vmem>>, vector<32x16xf32>
      %cst_43 = arith.constant dense<0.000000e+00> : vector<1x16xf32>
      %72 = tpu.matmul %70, %71, %cst_43 {dimension_numbers = #tpu.dot_dimension_numbers<[1], [0], [0], [1], [0, 0, 1, 1], [], []>} : vector<1x32xf32>, vector<32x16xf32>, vector<1x16xf32> -> vector<1x16xf32>
      %c0_44 = arith.constant 0 : index
      %c0_45 = arith.constant 0 : index
      %73 = vector.load %arg13[%c0_44, %c0_45] : memref<1x32xf32, #tpu.memory_space<vmem>>, vector<1x32xf32>
      %c0_46 = arith.constant 0 : index
      %c0_47 = arith.constant 0 : index
      %74 = vector.load %arg6[%c0_46, %c0_47] : memref<32x16xf32, #tpu.memory_space<vmem>>, vector<32x16xf32>
      %cst_48 = arith.constant dense<0.000000e+00> : vector<1x16xf32>
      %75 = tpu.matmul %73, %74, %cst_48 {dimension_numbers = #tpu.dot_dimension_numbers<[1], [0], [0], [1], [0, 0, 1, 1], [], []>} : vector<1x32xf32>, vector<32x16xf32>, vector<1x16xf32> -> vector<1x16xf32>
      %76 = arith.mulf %72, %72 : vector<1x16xf32>
      %77 = arith.subf %75, %76 : vector<1x16xf32>
      %cst_49 = arith.constant 9.99999974E-6 : f32
      %78 = vector.broadcast %cst_49 : f32 to vector<1x16xf32>
      %79 = arith.addf %77, %78 : vector<1x16xf32>
      %80 = math.rsqrt %79 : vector<1x16xf32>
      %c0_50 = arith.constant 0 : index
      %c0_51 = arith.constant 0 : index
      %81 = vector.load %arg7[%c0_50, %c0_51] : memref<16x32xf32, #tpu.memory_space<vmem>>, vector<16x32xf32>
      %cst_52 = arith.constant dense<0.000000e+00> : vector<1x32xf32>
      %82 = tpu.matmul %72, %81, %cst_52 {dimension_numbers = #tpu.dot_dimension_numbers<[1], [0], [0], [1], [0, 0, 1, 1], [], []>} : vector<1x16xf32>, vector<16x32xf32>, vector<1x32xf32> -> vector<1x32xf32>
      %c0_53 = arith.constant 0 : index
      %c0_54 = arith.constant 0 : index
      %83 = vector.load %arg7[%c0_53, %c0_54] : memref<16x32xf32, #tpu.memory_space<vmem>>, vector<16x32xf32>
      %cst_55 = arith.constant dense<0.000000e+00> : vector<1x32xf32>
      %84 = tpu.matmul %80, %83, %cst_55 {dimension_numbers = #tpu.dot_dimension_numbers<[1], [0], [0], [1], [0, 0, 1, 1], [], []>} : vector<1x16xf32>, vector<16x32xf32>, vector<1x32xf32> -> vector<1x32xf32>
      %c0_56 = arith.constant 0 : index
      %c0_57 = arith.constant 0 : index
      %85 = vector.load %arg5[%c0_56, %c0_57] : memref<2x32xf32, #tpu.memory_space<vmem>>, vector<1x32xf32>
      %c1_58 = arith.constant 1 : index
      %c0_59 = arith.constant 0 : index
      %86 = vector.load %arg5[%c1_58, %c0_59] : memref<2x32xf32, #tpu.memory_space<vmem>>, vector<1x32xf32>
      %87 = arith.mulf %85, %84 : vector<1x32xf32>
      %c0_60 = arith.constant 0 : index
      %c0_61 = arith.constant 0 : index
      %88 = vector.load %arg14[%c0_60, %c0_61] : memref<1x32xf32, #tpu.memory_space<vmem>>, vector<1x32xf32>
      tpu.vector_store %arg14[%c0_60, %c0_61], %87 {strides = array<i32>} : memref<1x32xf32, #tpu.memory_space<vmem>>, vector<1x32xf32>,
      %89 = arith.mulf %82, %87 : vector<1x32xf32>
      %90 = arith.subf %86, %89 : vector<1x32xf32>
      %c0_62 = arith.constant 0 : index
      %c0_63 = arith.constant 0 : index
      %91 = vector.load %arg15[%c0_62, %c0_63] : memref<1x32xf32, #tpu.memory_space<vmem>>, vector<1x32xf32>
      tpu.vector_store %arg15[%c0_62, %c0_63], %90 {strides = array<i32>} : memref<1x32xf32, #tpu.memory_space<vmem>>, vector<1x32xf32>,
    } else {
    }
    %c1_i32_37 = arith.constant 1 : i32
    %67 = arith.cmpi eq, %arg1, %c1_i32_37 : i32
    %68 = arith.extui %67 : i1 to i32
    %c0_i32_38 = arith.constant 0 : i32
    %69 = arith.cmpi ne, %68, %c0_i32_38 : i32
    scf.if %69 {
      %c0_39 = arith.constant 0 : index
      %c0_40 = arith.constant 0 : index
      %70 = vector.load %arg14[%c0_39, %c0_40] : memref<1x32xf32, #tpu.memory_space<vmem>>, vector<1x32xf32>
      %71 = vector.broadcast %70 : vector<1x32xf32> to vector<128x32xf32>
      %72 = arith.mulf %53, %71 : vector<128x32xf32>
      %c0_41 = arith.constant 0 : index
      %c0_42 = arith.constant 0 : index
      %73 = vector.load %arg15[%c0_41, %c0_42] : memref<1x32xf32, #tpu.memory_space<vmem>>, vector<1x32xf32>
      %74 = vector.broadcast %73 : vector<1x32xf32> to vector<128x32xf32>
      %75 = arith.addf %72, %74 : vector<128x32xf32>
      %cst_43 = arith.constant 0.000000e+00 : f32
      %76 = vector.broadcast %cst_43 : f32 to vector<128x32xf32>
      %77 = arith.maximumf %75, %76 : vector<128x32xf32>
      %78 = vector.shape_cast %77 : vector<128x32xf32> to vector<1x128x32xf32>
      %79 = arith.truncf %78 : vector<1x128x32xf32> to vector<1x128x32xbf16>
      %c0_44 = arith.constant 0 : index
      %c0_45 = arith.constant 0 : index
      %c0_46 = arith.constant 0 : index
      %80 = vector.load %arg10[%c0_44, %c0_45, %c0_46] : memref<1x128x32xbf16, #tpu.memory_space<vmem>>, vector<1x128x32xbf16>
      tpu.vector_store %arg10[%c0_44, %c0_45, %c0_46], %79 {strides = array<i32>} : memref<1x128x32xbf16, #tpu.memory_space<vmem>>, vector<1x128x32xbf16>,
      %81 = arith.truncf %77 : vector<128x32xf32> to vector<128x32xbf16>
      %c0_47 = arith.constant 0 : index
      %c0_48 = arith.constant 0 : index
      %82 = vector.load %arg8[%c0_47, %c0_48] : memref<32x32xbf16, #tpu.memory_space<vmem>>, vector<32x32xbf16>
      %cst_49 = arith.constant dense<0.000000e+00> : vector<128x32xf32>
      %83 = tpu.matmul %81, %82, %cst_49 {dimension_numbers = #tpu.dot_dimension_numbers<[1], [0], [0], [1], [0, 0, 1, 1], [], []>} : vector<128x32xbf16>, vector<32x32xbf16>, vector<128x32xf32> -> vector<128x32xf32>
      %c0_50 = arith.constant 0 : index
      %c0_51 = arith.constant 0 : index
      %84 = vector.load %arg9[%c0_50, %c0_51] : memref<1x32xf32, #tpu.memory_space<vmem>>, vector<1x32xf32>
      %85 = vector.broadcast %84 : vector<1x32xf32> to vector<128x32xf32>
      %86 = arith.addf %83, %85 : vector<128x32xf32>
      %87 = vector.shape_cast %86 : vector<128x32xf32> to vector<1x128x32xf32>
      %88 = arith.truncf %87 : vector<1x128x32xf32> to vector<1x128x32xbf16>
      %c0_52 = arith.constant 0 : index
      %c0_53 = arith.constant 0 : index
      %c0_54 = arith.constant 0 : index
      %89 = vector.load %arg11[%c0_52, %c0_53, %c0_54] : memref<1x128x32xbf16, #tpu.memory_space<vmem>>, vector<1x128x32xbf16>
      tpu.vector_store %arg11[%c0_52, %c0_53, %c0_54], %88 {strides = array<i32>} : memref<1x128x32xbf16, #tpu.memory_space<vmem>>, vector<1x128x32xbf16>,
    } else {
    }
    return
  }
  func.func @transform_0(%arg0: i32, %arg1: i32, %arg2: i32) -> (i32, i32, i32, i32) {
    %c2_i32 = arith.constant 2 : i32
    %0 = arith.muli %arg0, %c2_i32 : i32
    %1 = arith.addi %0, %arg2 : i32
    %c0_i32 = arith.constant 0 : i32
    %c0_i32_0 = arith.constant 0 : i32
    %c0_i32_1 = arith.constant 0 : i32
    %c0_i32_2 = arith.constant 0 : i32
    return %1, %c0_i32, %c0_i32_0, %c0_i32_1 : i32, i32, i32, i32
  }
  func.func @transform_1(%arg0: i32, %arg1: i32, %arg2: i32) -> (i32, i32, i32) {
    %c0_i32 = arith.constant 0 : i32
    %c0_i32_0 = arith.constant 0 : i32
    %c0_i32_1 = arith.constant 0 : i32
    %c0_i32_2 = arith.constant 0 : i32
    return %c0_i32, %c0_i32_0, %c0_i32_1 : i32, i32, i32
  }
  func.func @transform_2(%arg0: i32, %arg1: i32, %arg2: i32) -> (i32, i32) {
    %c0_i32 = arith.constant 0 : i32
    %c0_i32_0 = arith.constant 0 : i32
    %c0_i32_1 = arith.constant 0 : i32
    return %c0_i32, %c0_i32_0 : i32, i32
  }
  func.func @transform_3(%arg0: i32, %arg1: i32, %arg2: i32) -> (i32, i32) {
    %c0_i32 = arith.constant 0 : i32
    %c0_i32_0 = arith.constant 0 : i32
    %c0_i32_1 = arith.constant 0 : i32
    return %c0_i32, %c0_i32_0 : i32, i32
  }
  func.func @transform_4(%arg0: i32, %arg1: i32, %arg2: i32) -> (i32, i32) {
    %c0_i32 = arith.constant 0 : i32
    %c0_i32_0 = arith.constant 0 : i32
    %c0_i32_1 = arith.constant 0 : i32
    return %c0_i32, %c0_i32_0 : i32, i32
  }
  func.func @transform_5(%arg0: i32, %arg1: i32, %arg2: i32) -> (i32, i32) {
    %c0_i32 = arith.constant 0 : i32
    %c0_i32_0 = arith.constant 0 : i32
    %c0_i32_1 = arith.constant 0 : i32
    return %c0_i32, %c0_i32_0 : i32, i32
  }
  func.func @transform_6(%arg0: i32, %arg1: i32, %arg2: i32) -> (i32, i32) {
    %c0_i32 = arith.constant 0 : i32
    %c0_i32_0 = arith.constant 0 : i32
    %c0_i32_1 = arith.constant 0 : i32
    return %c0_i32, %c0_i32_0 : i32, i32
  }
  func.func @transform_7(%arg0: i32, %arg1: i32, %arg2: i32) -> (i32, i32, i32) {
    %0 = arith.muli %arg2, %arg1 : i32
    %c0_i32 = arith.constant 0 : i32
    %c0_i32_0 = arith.constant 0 : i32
    return %arg0, %0, %c0_i32 : i32, i32, i32
  }
  func.func @transform_8(%arg0: i32, %arg1: i32, %arg2: i32) -> (i32, i32, i32) {
    %0 = arith.muli %arg2, %arg1 : i32
    %c0_i32 = arith.constant 0 : i32
    %c0_i32_0 = arith.constant 0 : i32
    return %arg0, %0, %c0_i32 : i32, i32, i32
  }
}

</mosaic_0001>

<llo_original>
// kernel: frru_forward.2
$region0: #{frru_forward.2}
  #allocation0 [shape = 'u32[]', space=smem, size = 0x4, offset = 0x4, fixed_abs, tag = 'smem constant byte address 0x4 - core index']
  #allocation1 [shape = 'u32[72,128]{1,0:T(1,128)}', space=vmem, size = 0x9000, scoped, tag = 'internal scratch']
  #allocation2 [shape = 'f32[1,32]{1,0:T(1,128)}', space=vmem, size = 0x200, scoped, tag = 'scratch operand']
  #allocation3 [shape = 'f32[1,32]{1,0:T(1,128)}', space=vmem, size = 0x200, scoped, tag = 'scratch operand']
  #allocation4 [shape = 'f32[1,32]{1,0:T(1,128)}', space=vmem, size = 0x200, scoped, tag = 'scratch operand']
  #allocation5 [shape = 'f32[1,32]{1,0:T(1,128)}', space=vmem, size = 0x200, scoped, tag = 'scratch operand']
  %s0 = inlined_call_operand.vmem [shape: bf16[4,10,18,48], index: 0, kind: input, shape index: {}]
  %s1 = inlined_call_operand.vmem [shape: bf16[9,48,32], index: 1, kind: input, shape index: {}]
  %s2 = inlined_call_operand.vmem [shape: f32[2,32], index: 2, kind: input, shape index: {}]
  %s3 = inlined_call_operand.vmem [shape: f32[32,16], index: 3, kind: input, shape index: {}]
  %s4 = inlined_call_operand.vmem [shape: f32[16,32], index: 4, kind: input, shape index: {}]
  %s5 = inlined_call_operand.vmem [shape: bf16[2,256,32], index: 5, kind: output, shape index: {}]
  %s6 = sld [smem:[#allocation0]]
  $region69: #{frru_forward.2} parent=0
    _
  %s8 = ssub.s32 1, %s6
  %s9 = scalar_select 0, %s8, %s6
  loop: start=0, step=1, limit=10
  $region2: #{frru_forward.2} parent=0 // loop_pre_header
    _
  $region3: #{frru_forward.2} parent=0 // loop_header
    %s11 = sphi 0, %s15
    %p12 = scmp.ge.s32.totalorder %s11, 10
    %s18 = sphi 0, %s37
    %s19 = sphi 0, %s33
    %s20 = sphi 0, %s29
    %s21 = sphi 0, %s18
    %s22 = sphi 0, %s19
    %s23 = sphi 0, %s20
    %s24 = sphi 0, %s21
    %s25 = sphi 0, %s22
    %s26 = sphi 0, %s23
    %s44 = sphi 0, %s46
    %s47 = sphi 0, %s44
    %s48 = sphi 0, %s47
    %s64 = sphi 0, %s48
    %s68 = sphi 0, %s68
    %s70 = sphi 0, %s68
    %s71 = sphi 0, %s70
    %s85 = sphi 0, %s71
    %s89 = sphi 0, %s89
    %s91 = sphi 0, %s89
    %s92 = sphi 0, %s91
    %s106 = sphi 0, %s92
    %s110 = sphi 0, %s110
    %s112 = sphi 0, %s110
    %s113 = sphi 0, %s112
    %s127 = sphi 0, %s113
    %s131 = sphi 0, %s131
    %s133 = sphi 0, %s131
    %s134 = sphi 0, %s133
    %s148 = sphi 0, %s134
    %s158 = sphi 0, %s160
    %s161 = sphi 0, %s158
    %s162 = sphi 0, %s161
    %s178 = sphi 0, %s162
  $region4: #{frru_forward.2} parent=0 // loop_header_branch
    %14 = sbr.rel (%p12) target = $region8
  $region5: #{frru_forward.2} parent=0 // loop_body
    %s16 = ssub.s32 %s11, 1
    %s17 = ssub.s32 %s11, 2
    %s27 = sadd.s32 1, %s20
    %p28 = scmp.ge.s32.totalorder %s27, 2
    %s29 = scalar_select %p28, 0, %s27
    %s30 = sadd.s32 1, %s19
    %s31 = scalar_select %p28, %s30, %s19
    %p32 = scmp.ge.s32.totalorder %s31, 2
    %s33 = scalar_select %p32, 0, %s31
    %s34 = sadd.s32 1, %s18
    %s35 = scalar_select %p32, %s34, %s18
    %p36 = scmp.ge.s32.totalorder %s35, 2
    %s37 = scalar_select %p36, 0, %s35
    %s38 = smul.u32 %s18, 2
    %s39 = sadd.s32 %s38, %s20
    %s40 = smul.u32 %s37, 2
    %s41 = sadd.s32 %s40, %s29
    %s42 = ssub.s32 %s39, %s41
    %p43 = scmp.eq.s32.totalorder %s42, 0
    %s45 = sadd.s32 %s44, 1
    %s46 = scalar_select %p43, %s44, %s45
    %p49 = pneg %p43
    %p50 = scmp.eq.s32.totalorder %s11, 7
    %p51 = por %p49, %p50
    %p52 = scmp.ne.s32.totalorder %s44, %s47
    %p53 = scmp.eq.s32.totalorder %s11, 0
    %p54 = por %p52, %p53
    %p55 = scmp.ne.s32.totalorder %s44, %s47
    %p56 = scmp.eq.s32.totalorder %s16, 7
    %p57 = por %p55, %p56
    %p58 = scmp.ne.s32.totalorder %s47, %s48
    %p59 = scmp.eq.s32.totalorder %s16, 0
    %p60 = por %p58, %p59
    %p61 = scmp.ne.s32.totalorder %s47, %s48
    %p62 = scmp.eq.s32.totalorder %s17, 7
    %p63 = por %p61, %p62
    %p65 = scmp.ne.s32.totalorder %s48, %s64
    %p66 = scmp.eq.s32.totalorder %s17, 0
    %p67 = por %p65, %p66
    %s69 = sadd.s32 %s68, 1
    %p72 = scmp.eq.s32.totalorder %s11, 7
    %p73 = scmp.ne.s32.totalorder %s68, %s70
    %p74 = scmp.eq.s32.totalorder %s11, 0
    %p75 = por %p73, %p74
    %p76 = scmp.ne.s32.totalorder %s68, %s70
    %p77 = scmp.eq.s32.totalorder %s16, 7
    %p78 = por %p76, %p77
    %p79 = scmp.ne.s32.totalorder %s70, %s71
    %p80 = scmp.eq.s32.totalorder %s16, 0
    %p81 = por %p79, %p80
    %p82 = scmp.ne.s32.totalorder %s70, %s71
    %p83 = scmp.eq.s32.totalorder %s17, 7
    %p84 = por %p82, %p83
    %p86 = scmp.ne.s32.totalorder %s71, %s85
    %p87 = scmp.eq.s32.totalorder %s17, 0
    %p88 = por %p86, %p87
    %s90 = sadd.s32 %s89, 1
    %p93 = scmp.eq.s32.totalorder %s11, 7
    %p94 = scmp.ne.s32.totalorder %s89, %s91
    %p95 = scmp.eq.s32.totalorder %s11, 0
    %p96 = por %p94, %p95
    %p97 = scmp.ne.s32.totalorder %s89, %s91
    %p98 = scmp.eq.s32.totalorder %s16, 7
    %p99 = por %p97, %p98
    %p100 = scmp.ne.s32.totalorder %s91, %s92
    %p101 = scmp.eq.s32.totalorder %s16, 0
    %p102 = por %p100, %p101
    %p103 = scmp.ne.s32.totalorder %s91, %s92
    %p104 = scmp.eq.s32.totalorder %s17, 7
    %p105 = por %p103, %p104
    %p107 = scmp.ne.s32.totalorder %s92, %s106
    %p108 = scmp.eq.s32.totalorder %s17, 0
    %p109 = por %p107, %p108
    %s111 = sadd.s32 %s110, 1
    %p114 = scmp.eq.s32.totalorder %s11, 7
    %p115 = scmp.ne.s32.totalorder %s110, %s112
    %p116 = scmp.eq.s32.totalorder %s11, 0
    %p117 = por %p115, %p116
    %p118 = scmp.ne.s32.totalorder %s110, %s112
    %p119 = scmp.eq.s32.totalorder %s16, 7
    %p120 = por %p118, %p119
    %p121 = scmp.ne.s32.totalorder %s112, %s113
    %p122 = scmp.eq.s32.totalorder %s16, 0
    %p123 = por %p121, %p122
    %p124 = scmp.ne.s32.totalorder %s112, %s113
    %p125 = scmp.eq.s32.totalorder %s17, 7
    %p126 = por %p124, %p125
    %p128 = scmp.ne.s32.totalorder %s113, %s127
    %p129 = scmp.eq.s32.totalorder %s17, 0
    %p130 = por %p128, %p129
    %s132 = sadd.s32 %s131, 1
    %p135 = scmp.eq.s32.totalorder %s11, 7
    %p136 = scmp.ne.s32.totalorder %s131, %s133
    %p137 = scmp.eq.s32.totalorder %s11, 0
    %p138 = por %p136, %p137
    %p139 = scmp.ne.s32.totalorder %s131, %s133
    %p140 = scmp.eq.s32.totalorder %s16, 7
    %p141 = por %p139, %p140
    %p142 = scmp.ne.s32.totalorder %s133, %s134
    %p143 = scmp.eq.s32.totalorder %s16, 0
    %p144 = por %p142, %p143
    %p145 = scmp.ne.s32.totalorder %s133, %s134
    %p146 = scmp.eq.s32.totalorder %s17, 7
    %p147 = por %p145, %p146
    %p149 = scmp.ne.s32.totalorder %s134, %s148
    %p150 = scmp.eq.s32.totalorder %s17, 0
    %p151 = por %p149, %p150
    %s152 = smul.u32 %s20, %s19
    %s153 = smul.u32 %s29, %s33
    %s154 = ssub.s32 %s18, %s37
    %s155 = ssub.s32 %s152, %s153
    %s156 = sor.u32 %s154, %s155
    %p157 = scmp.eq.s32.totalorder %s156, 0
    %s159 = sadd.s32 %s158, 1
    %s160 = scalar_select %p157, %s158, %s159
    %p163 = pneg %p157
    %p164 = scmp.eq.s32.totalorder %s11, 7
    %p165 = por %p163, %p164
    %p166 = scmp.ne.s32.totalorder %s158, %s161
    %p167 = scmp.eq.s32.totalorder %s11, 0
    %p168 = por %p166, %p167
    %p169 = scmp.ne.s32.totalorder %s158, %s161
    %p170 = scmp.eq.s32.totalorder %s16, 7
    %p171 = por %p169, %p170
    %p172 = scmp.ne.s32.totalorder %s161, %s162
    %p173 = scmp.eq.s32.totalorder %s16, 0
    %p174 = por %p172, %p173
    %p175 = scmp.ne.s32.totalorder %s161, %s162
    %p176 = scmp.eq.s32.totalorder %s17, 7
    %p177 = por %p175, %p176
    %p179 = scmp.ne.s32.totalorder %s162, %s178
    %p180 = scmp.eq.s32.totalorder %s17, 0
    %p181 = por %p179, %p180
    %p182 = scmp.le.s32.totalorder 1, %s11
    %p183 = scmp.lt.s32.totalorder %s11, 9
    %p184 = pnand %p182, %p183
    %p185 = pneg %p184
    // Predicated region
    $region9: #{frru_forward.2} parent=5 // pred_check
      _
    $region10: #{frru_forward.2} parent=5 // pred_check_branch
      %187 = sbr.rel (%p184) target = $region12
    $region11: #{frru_forward.2} parent=5 // pred_region
      %s188 = ssub.s32 %s11, 1
      // Predicated region
      $region13: #{frru_forward.2} parent=11 // pred_check
        %p189 = pneg %p81
      $region14: #{frru_forward.2} parent=11 // pred_check_branch
        %191 = sbr.rel (%p189) target = $region16
      $region15: #{frru_forward.2} parent=11 // pred_region
        _
      $region16: #{frru_forward.2} parent=11 // pred_fallthru
        _
      // Predicated region
      $region17: #{frru_forward.2} parent=11 // pred_check
        %p192 = pneg %p102
      $region18: #{frru_forward.2} parent=11 // pred_check_branch
        %194 = sbr.rel (%p192) target = $region20
      $region19: #{frru_forward.2} parent=11 // pred_region
        _
      $region20: #{frru_forward.2} parent=11 // pred_fallthru
        _
      // Predicated region
      $region21: #{frru_forward.2} parent=11 // pred_check
        %p195 = pneg %p123
      $region22: #{frru_forward.2} parent=11 // pred_check_branch
        %197 = sbr.rel (%p195) target = $region24
      $region23: #{frru_forward.2} parent=11 // pred_region
        _
      $region24: #{frru_forward.2} parent=11 // pred_fallthru
        _
      // Predicated region
      $region25: #{frru_forward.2} parent=11 // pred_check
        %p198 = pneg %p144
      $region26: #{frru_forward.2} parent=11 // pred_check_branch
        %200 = sbr.rel (%p198) target = $region28
      $region27: #{frru_forward.2} parent=11 // pred_region
        _
      $region28: #{frru_forward.2} parent=11 // pred_fallthru
        _
    $region12: #{frru_forward.2} parent=5 // pred_fallthru
      _
    %p201 = scmp.lt.s32.totalorder %s11, 8
    // Predicated region
    $region29: #{frru_forward.2} parent=5 // pred_check
      %p202 = pneg %p201
    $region30: #{frru_forward.2} parent=5 // pred_check_branch
      %204 = sbr.rel (%p202) target = $region32
    $region31: #{frru_forward.2} parent=5 // pred_region
      // Predicated region
      $region33: #{frru_forward.2} parent=31 // pred_check
        %p205 = pneg %p54
      $region34: #{frru_forward.2} parent=31 // pred_check_branch
        %207 = sbr.rel (%p205) target = $region36
      $region35: #{frru_forward.2} parent=31 // pred_region
        %s208 = smul.u32 %s18, 2
        %s209 = sadd.s32 %s208, %s20
        %p210 = scmp.lt.s32.totalorder %s209, 3
        %s211 = scalar_select %p210, %s209, 3
        %s212 = smul.addr %s211, 30
        %s213 = smul.addr %s212, 4
        %s214 = scalar_lea.vmem %s0, %s213
        %s215 = smul.u32 %s18, 2
        %s216 = sadd.s32 %s215, %s20
      $region36: #{frru_forward.2} parent=31 // pred_fallthru
        _
    $region32: #{frru_forward.2} parent=5 // pred_fallthru
      _
    %p217 = scmp.le.s32.totalorder 1, %s11
    %p218 = scmp.lt.s32.totalorder %s11, 9
    %p219 = pnand %p217, %p218
    %p220 = pneg %p219
    // Predicated region
    $region37: #{frru_forward.2} parent=5 // pred_check
      _
    $region38: #{frru_forward.2} parent=5 // pred_check_branch
      %222 = sbr.rel (%p219) target = $region40
    $region39: #{frru_forward.2} parent=5 // pred_region
      %s223 = ssub.s32 %s11, 1
      %s224 = smul.u32 %s21, 2
      %s225 = sadd.s32 %s224, %s23
      %p226 = scmp.lt.s32.totalorder %s225, 3
      %s227 = scalar_select %p226, %s225, 3
      %s228 = smul.addr %s227, 30
      %s229 = smul.addr %s228, 4
      %s230 = scalar_lea.vmem %s0, %s229
      %p231 = pneg %p60
      %p232 = pneg %p57
      %p233 = pneg %p81
      %p234 = pneg %p78
      %p235 = pneg %p102
      %p236 = pneg %p99
      %p237 = pneg %p123
      %p238 = pneg %p120
      %p239 = pneg %p144
      %p240 = pneg %p141
      %p241 = pneg %p174
      %p242 = pneg %p171
      %s243 = smul.u32 %s23, %s22
      %s244 = smul.u32 16, %s243
      %p245 = scmp.lt.s32.totalorder %s21, 1
      %s246 = scalar_select %p245, %s21, 1
      %p247 = scmp.lt.s32.totalorder %s244, 31
      %s248 = scalar_select %p247, %s244, 31
      %s249 = smul.addr %s246, 32
      %s250 = sadd.s32 %s248, %s249
      %s251 = smul.addr %s250, 4
      %s252 = scalar_lea.vmem %s5, %s251
      %s253 = smul.u32 %s21, 2
      %s254 = sadd.s32 %s253, %s23
      %p255 = scmp.lt.s32.totalorder %s254, 3
      %s256 = scalar_select %p255, %s254, 3
      %s257 = smul.addr %s256, 30
      %s258 = smul.addr %s257, 4
      %s259 = scalar_lea.vmem %s0, %s258
      %s260 = smul.u32 %s21, 2
      %s261 = sadd.s32 %s260, %s23
      %s262 = smul.u32 %s23, %s22
      %s263 = smul.u32 16, %s262
      %p264 = scmp.lt.s32.totalorder %s21, 1
      %s265 = scalar_select %p264, %s21, 1
      %p266 = scmp.lt.s32.totalorder %s263, 31
      %s267 = scalar_select %p266, %s263, 31
      %s268 = smul.addr %s265, 32
      %s269 = sadd.s32 %s267, %s268
      %s270 = smul.addr %s269, 4
      %s271 = scalar_lea.vmem %s5, %s270
      %s272 = smul.u32 %s23, %s22
      %s273 = smul.u32 16, %s272
      %v275 = vld [vmem:[%s259] sm:$0xf]
      %v276 = vld [vmem:[%s259 + $0x4] sm:$0xf]
      %v277 = vld [vmem:[%s259 + $0x8] sm:$0x1]
      %v278 = vld [vmem:[%s259 + $0xc] sm:$0xf]
      %v279 = vld [vmem:[%s259 + $0x10] sm:$0xf]
      %v280 = vld [vmem:[%s259 + $0x14] sm:$0x1]
      %v281 = vld [vmem:[%s259 + $0x18] sm:$0xf]
      %v282 = vld [vmem:[%s259 + $0x1c] sm:$0xf]
      %v283 = vld [vmem:[%s259 + $0x20] sm:$0x1]
      %v284 = vld [vmem:[%s259 + $0x24] sm:$0xf]
      %v285 = vld [vmem:[%s259 + $0x28] sm:$0xf]
      %v286 = vld [vmem:[%s259 + $0x2c] sm:$0x1]
      %v287 = vld [vmem:[%s259 + $0x30] sm:$0xf]
      %v288 = vld [vmem:[%s259 + $0x34] sm:$0xf]
      %v289 = vld [vmem:[%s259 + $0x38] sm:$0x1]
      %v290 = vld [vmem:[%s259 + $0x3c] sm:$0xf]
      %v291 = vld [vmem:[%s259 + $0x40] sm:$0xf]
      %v292 = vld [vmem:[%s259 + $0x44] sm:$0x1]
      %v293 = vld [vmem:[%s259 + $0x48] sm:$0xf]
      %v294 = vld [vmem:[%s259 + $0x4c] sm:$0xf]
      %v295 = vld [vmem:[%s259 + $0x50] sm:$0x1]
      %v296 = vld [vmem:[%s259 + $0x54] sm:$0xf]
      %v297 = vld [vmem:[%s259 + $0x58] sm:$0xf]
      %v298 = vld [vmem:[%s259 + $0x5c] sm:$0x1]
      %v299 = vld [vmem:[%s259 + $0x60] sm:$0xf]
      %v300 = vld [vmem:[%s259 + $0x64] sm:$0xf]
      %v301 = vld [vmem:[%s259 + $0x68] sm:$0x1]
      %v302 = vld [vmem:[%s259 + $0x6c] sm:$0xf]
      %v303 = vld [vmem:[%s259 + $0x70] sm:$0xf]
      %v304 = vld [vmem:[%s259 + $0x74] sm:$0x1]
      %v305 = vld [vmem:[%s1] sm:$0xf]
      %v306 = vld [vmem:[%s1 + $0x4] sm:$0xf]
      %v307 = vld [vmem:[%s1 + $0x8] sm:$0xf]
      %v308 = vld [vmem:[%s1 + $0xc] sm:$0xf]
      %v309 = vld [vmem:[%s1 + $0x10] sm:$0xf]
      %v310 = vld [vmem:[%s1 + $0x14] sm:$0xf]
      %s311 = scalar_lea.vmem %s1, 72
      %v312 = vld [vmem:[%s311] sm:$0xf]
      %v313 = vld [vmem:[%s311 + $0x4] sm:$0xf]
      %v314 = vld [vmem:[%s311 + $0x8] sm:$0xf]
      %v315 = vld [vmem:[%s311 + $0xc] sm:$0xf]
      %v316 = vld [vmem:[%s311 + $0x10] sm:$0xf]
      %v317 = vld [vmem:[%s311 + $0x14] sm:$0xf]
      %v334 = vunpack.c.l.b16 %v278
      %v335 = vunpack.c.l.b16 %v279
      %v336 = vunpack.c.l.b16 %v281
      %v337 = vunpack.c.l.b16 %v282
      %v338 = vunpack.c.l.b16 %v284
      %v339 = vunpack.c.l.b16 %v285
      %v340 = vunpack.c.l.b16 %v287
      %v341 = vunpack.c.l.b16 %v288
      %v342 = vunpack.c.l.b16 %v290
      %v343 = vunpack.c.l.b16 %v291
      %v344 = vunpack.c.l.b16 %v293
      %v345 = vunpack.c.l.b16 %v294
      %v346 = vunpack.c.l.b16 %v296
      %v347 = vunpack.c.l.b16 %v297
      %v348 = vunpack.c.l.b16 %v299
      %v349 = vunpack.c.l.b16 %v300
      %v350 = vpack.c.b16 %v335, %v334
      %v351 = vpack.c.b16 %v337, %v336
      %v352 = vpack.c.b16 %v339, %v338
      %v353 = vpack.c.b16 %v341, %v340
      %v354 = vpack.c.b16 %v343, %v342
      %v355 = vpack.c.b16 %v345, %v344
      %v356 = vpack.c.b16 %v347, %v346
      %v357 = vpack.c.b16 %v349, %v348
      %v364 = vunpack.c.l.b16 %v312
      %v365 = vunpack.c.l.b16 %v313
      %v366 = vunpack.c.l.b16 %v314
      %v367 = vunpack.c.l.b16 %v315
      %v368 = vunpack.c.l.b16 %v316
      %v369 = vunpack.c.l.b16 %v317
      %v370 = vpack.c.b16 %v365, %v364
      %v371 = vpack.c.b16 %v367, %v366
      %v372 = vpack.c.b16 %v369, %v368
      %vm376 = vcmask 392192
      %v378 = vsel %vm376, %v350, 0
      %v381 = vsel %vm376, %v351, 0
      %v384 = vsel %vm376, %v352, 0
      %v387 = vsel %vm376, %v353, 0
      %v390 = vsel %vm376, %v354, 0
      %v393 = vsel %vm376, %v355, 0
      %v396 = vsel %vm376, %v356, 0
      %v399 = vsel %vm376, %v357, 0
      %401 = vmatpush.bf16.msra.mxu0 0
      %402 = vmatpush.bf16.msra.mxu0 0
      %403 = vmatpush.bf16.msra.mxu0 0
      %404 = vmatpush.bf16.msra.mxu0 0
      %405 = vmatpush.bf16.msra.mxu0 0
      %406 = vmatpush.bf16.msra.mxu0 %v372
      %407 = vmatpush.bf16.msra.mxu0 %v371
      %408 = vmatpush.bf16.msra.mxu0 %v370
      %409 = vmatmul.bf16.gmra.mxu0 %v378
      %v410 = vpop.f32.mrf.mxu0
      %v411 = vadd.f32 0.0, %v410
      %v412 = vpop.f32.mrf.mxu0
      %v413 = vadd.f32 0.0, %v412
      %414 = vmatmul.bf16.gmra.mxu0 %v381
      %v415 = vpop.f32.mrf.mxu0
      %v416 = vadd.f32 0.0, %v415
      %v417 = vpop.f32.mrf.mxu0
      %v418 = vadd.f32 0.0, %v417
      %419 = vmatmul.bf16.gmra.mxu0 %v384
      %v420 = vpop.f32.mrf.mxu0
      %v421 = vadd.f32 0.0, %v420
      %v422 = vpop.f32.mrf.mxu0
      %v423 = vadd.f32 0.0, %v422
      %424 = vmatmul.bf16.gmra.mxu0 %v387
      %v425 = vpop.f32.mrf.mxu0
      %v426 = vadd.f32 0.0, %v425
      %v427 = vpop.f32.mrf.mxu0
      %v428 = vadd.f32 0.0, %v427
      %429 = vmatmul.bf16.gmra.mxu0 %v390
      %v430 = vpop.f32.mrf.mxu0
      %v431 = vadd.f32 0.0, %v430
      %v432 = vpop.f32.mrf.mxu0
      %v433 = vadd.f32 0.0, %v432
      %434 = vmatmul.bf16.gmra.mxu0 %v393
      %v435 = vpop.f32.mrf.mxu0
      %v436 = vadd.f32 0.0, %v435
      %v437 = vpop.f32.mrf.mxu0
      %v438 = vadd.f32 0.0, %v437
      %439 = vmatmul.bf16.gmra.mxu0 %v396
      %v440 = vpop.f32.mrf.mxu0
      %v441 = vadd.f32 0.0, %v440
      %v442 = vpop.f32.mrf.mxu0
      %v443 = vadd.f32 0.0, %v442
      %444 = vmatmul.bf16.gmra.mxu0 %v399
      %v445 = vpop.f32.mrf.mxu0
      %v446 = vadd.f32 0.0, %v445
      %v447 = vpop.f32.mrf.mxu0
      %v448 = vadd.f32 0.0, %v447
      %449 = vdwg.mxu0
      %v452 = vunpack.c.l.b16 %v275
      %v453 = vunpack.c.l.b16 %v276
      %v454 = vpack.c.b16 %v453, %v452
      %v461 = vunpack.c.l.b16 %v305
      %v462 = vunpack.c.l.b16 %v306
      %v463 = vunpack.c.l.b16 %v307
      %v464 = vunpack.c.l.b16 %v308
      %v465 = vunpack.c.l.b16 %v309
      %v466 = vunpack.c.l.b16 %v310
      %v467 = vpack.c.b16 %v462, %v461
      %v468 = vpack.c.b16 %v464, %v463
      %v469 = vpack.c.b16 %v466, %v465
      %v474 = vsel %vm376, %v454, 0
      %476 = vmatpush.bf16.msra.mxu0 0
      %477 = vmatpush.bf16.msra.mxu0 0
      %478 = vmatpush.bf16.msra.mxu0 0
      %479 = vmatpush.bf16.msra.mxu0 0
      %480 = vmatpush.bf16.msra.mxu0 0
      %481 = vmatpush.bf16.msra.mxu0 %v469
      %482 = vmatpush.bf16.msra.mxu0 %v468
      %483 = vmatpush.bf16.msra.mxu0 %v467
      %484 = vmatmul.bf16.gmra.mxu0 %v474
      %v485 = vpop.f32.mrf.mxu0
      %v486 = vadd.f32 %v411, %v485
      %v487 = vpop.f32.mrf.mxu0
      %v488 = vadd.f32 %v413, %v487
      %489 = vmatmul.bf16.gmra.mxu0 %v378
      %v490 = vpop.f32.mrf.mxu0
      %v491 = vadd.f32 %v416, %v490
      %v492 = vpop.f32.mrf.mxu0
      %v493 = vadd.f32 %v418, %v492
      %494 = vmatmul.bf16.gmra.mxu0 %v381
      %v495 = vpop.f32.mrf.mxu0
      %v496 = vadd.f32 %v421, %v495
      %v497 = vpop.f32.mrf.mxu0
      %v498 = vadd.f32 %v423, %v497
      %499 = vmatmul.bf16.gmra.mxu0 %v384
      %v500 = vpop.f32.mrf.mxu0
      %v501 = vadd.f32 %v426, %v500
      %v502 = vpop.f32.mrf.mxu0
      %v503 = vadd.f32 %v428, %v502
      %504 = vmatmul.bf16.gmra.mxu0 %v387
      %v505 = vpop.f32.mrf.mxu0
      %v506 = vadd.f32 %v431, %v505
      %v507 = vpop.f32.mrf.mxu0
      %v508 = vadd.f32 %v433, %v507
      %509 = vmatmul.bf16.gmra.mxu0 %v390
      %v510 = vpop.f32.mrf.mxu0
      %v511 = vadd.f32 %v436, %v510
      %v512 = vpop.f32.mrf.mxu0
      %v513 = vadd.f32 %v438, %v512
      %514 = vmatmul.bf16.gmra.mxu0 %v393
      %v515 = vpop.f32.mrf.mxu0
      %v516 = vadd.f32 %v441, %v515
      %v517 = vpop.f32.mrf.mxu0
      %v518 = vadd.f32 %v443, %v517
      %519 = vmatmul.bf16.gmra.mxu0 %v396
      %v520 = vpop.f32.mrf.mxu0
      %v521 = vadd.f32 %v446, %v520
      %v522 = vpop.f32.mrf.mxu0
      %v523 = vadd.f32 %v448, %v522
      %524 = vdwg.mxu0
      %s525 = scalar_lea.vmem %s1, 144
      %v526 = vld [vmem:[%s525] sm:$0xf]
      %v527 = vld [vmem:[%s525 + $0x4] sm:$0xf]
      %v528 = vld [vmem:[%s525 + $0x8] sm:$0xf]
      %v529 = vld [vmem:[%s525 + $0xc] sm:$0xf]
      %v530 = vld [vmem:[%s525 + $0x10] sm:$0xf]
      %v531 = vld [vmem:[%s525 + $0x14] sm:$0xf]
      %v534 = vunpack.c.l.b16 %v302
      %v535 = vunpack.c.l.b16 %v303
      %v536 = vpack.c.b16 %v535, %v534
      %v543 = vunpack.c.l.b16 %v526
      %v544 = vunpack.c.l.b16 %v527
      %v545 = vunpack.c.l.b16 %v528
      %v546 = vunpack.c.l.b16 %v529
      %v547 = vunpack.c.l.b16 %v530
      %v548 = vunpack.c.l.b16 %v531
      %v549 = vpack.c.b16 %v544, %v543
      %v550 = vpack.c.b16 %v546, %v545
      %v551 = vpack.c.b16 %v548, %v547
      %v556 = vsel %vm376, %v536, 0
      %558 = vmatpush.bf16.msra.mxu0 0
      %559 = vmatpush.bf16.msra.mxu0 0
      %560 = vmatpush.bf16.msra.mxu0 0
      %561 = vmatpush.bf16.msra.mxu0 0
      %562 = vmatpush.bf16.msra.mxu0 0
      %563 = vmatpush.bf16.msra.mxu0 %v551
      %564 = vmatpush.bf16.msra.mxu0 %v550
      %565 = vmatpush.bf16.msra.mxu0 %v549
      %566 = vmatmul.bf16.gmra.mxu0 %v381
      %v567 = vpop.f32.mrf.mxu0
      %v568 = vadd.f32 0.0, %v567
      %v569 = vpop.f32.mrf.mxu0
      %v570 = vadd.f32 0.0, %v569
      %571 = vmatmul.bf16.gmra.mxu0 %v384
      %v572 = vpop.f32.mrf.mxu0
      %v573 = vadd.f32 0.0, %v572
      %v574 = vpop.f32.mrf.mxu0
      %v575 = vadd.f32 0.0, %v574
      %576 = vmatmul.bf16.gmra.mxu0 %v387
      %v577 = vpop.f32.mrf.mxu0
      %v578 = vadd.f32 0.0, %v577
      %v579 = vpop.f32.mrf.mxu0
      %v580 = vadd.f32 0.0, %v579
      %581 = vmatmul.bf16.gmra.mxu0 %v390
      %v582 = vpop.f32.mrf.mxu0
      %v583 = vadd.f32 0.0, %v582
      %v584 = vpop.f32.mrf.mxu0
      %v585 = vadd.f32 0.0, %v584
      %586 = vmatmul.bf16.gmra.mxu0 %v393
      %v587 = vpop.f32.mrf.mxu0
      %v588 = vadd.f32 0.0, %v587
      %v589 = vpop.f32.mrf.mxu0
      %v590 = vadd.f32 0.0, %v589
      %591 = vmatmul.bf16.gmra.mxu0 %v396
      %v592 = vpop.f32.mrf.mxu0
      %v593 = vadd.f32 0.0, %v592
      %v594 = vpop.f32.mrf.mxu0
      %v595 = vadd.f32 0.0, %v594
      %596 = vmatmul.bf16.gmra.mxu0 %v399
      %v597 = vpop.f32.mrf.mxu0
      %v598 = vadd.f32 0.0, %v597
      %v599 = vpop.f32.mrf.mxu0
      %v600 = vadd.f32 0.0, %v599
      %601 = vmatmul.bf16.gmra.mxu0 %v556
      %v602 = vpop.f32.mrf.mxu0
      %v603 = vadd.f32 0.0, %v602
      %v604 = vpop.f32.mrf.mxu0
      %v605 = vadd.f32 0.0, %v604
      %606 = vdwg.mxu0
      %v607 = vadd.f32 %v486, %v568
      %v608 = vadd.f32 %v488, %v570
      %v609 = vadd.f32 %v491, %v573
      %v610 = vadd.f32 %v493, %v575
      %v611 = vadd.f32 %v496, %v578
      %v612 = vadd.f32 %v498, %v580
      %v613 = vadd.f32 %v501, %v583
      %v614 = vadd.f32 %v503, %v585
      %v615 = vadd.f32 %v506, %v588
      %v616 = vadd.f32 %v508, %v590
      %v617 = vadd.f32 %v511, %v593
      %v618 = vadd.f32 %v513, %v595
      %v619 = vadd.f32 %v516, %v598
      %v620 = vadd.f32 %v518, %v600
      %v621 = vadd.f32 %v521, %v603
      %v622 = vadd.f32 %v523, %v605
      %vm623 = vsmask.f32 3328
      %vm624 = vsmask.f32 7440
      %vm625 = vmor %vm623, %vm624
      %v627 = vshrl.u32 %v275, 16
      %v629 = vrot.slane %v627, 4
      %v630 = vshll.u32 %v275, 16
      %v632 = vrot.slane %v630, 5
      %v633 = vor.u32 %v629, %v632
      %v634 = vrot.slane %v633, 4
      %v636 = vshll.u32 %v276, 16
      %v638 = vrot.slane %v636, 5
      %v639 = vsel %vm625, %v634, %v638
      %v640 = vshrl.u32 %v276, 16
      %v642 = vrot.slane %v640, 4
      %v643 = vor.u32 %v642, %v638
      %v644 = vrot.slane %v643, 4
      %v646 = vshll.u32 %v277, 16
      %v648 = vrot.slane %v646, 5
      %v649 = vsel %vm625, %v644, %v648
      %v651 = vshrl.u32 %v278, 16
      %v653 = vrot.slane %v651, 4
      %v654 = vshll.u32 %v278, 16
      %v656 = vrot.slane %v654, 5
      %v657 = vor.u32 %v653, %v656
      %v658 = vrot.slane %v657, 4
      %v660 = vshll.u32 %v279, 16
      %v662 = vrot.slane %v660, 5
      %v663 = vsel %vm625, %v658, %v662
      %v664 = vshrl.u32 %v279, 16
      %v666 = vrot.slane %v664, 4
      %v667 = vor.u32 %v666, %v662
      %v668 = vrot.slane %v667, 4
      %v670 = vshll.u32 %v280, 16
      %v672 = vrot.slane %v670, 5
      %v673 = vsel %vm625, %v668, %v672
      %v675 = vshrl.u32 %v281, 16
      %v677 = vrot.slane %v675, 4
      %v678 = vshll.u32 %v281, 16
      %v680 = vrot.slane %v678, 5
      %v681 = vor.u32 %v677, %v680
      %v682 = vrot.slane %v681, 4
      %v684 = vshll.u32 %v282, 16
      %v686 = vrot.slane %v684, 5
      %v687 = vsel %vm625, %v682, %v686
      %v688 = vshrl.u32 %v282, 16
      %v690 = vrot.slane %v688, 4
      %v691 = vor.u32 %v690, %v686
      %v692 = vrot.slane %v691, 4
      %v694 = vshll.u32 %v283, 16
      %v696 = vrot.slane %v694, 5
      %v697 = vsel %vm625, %v692, %v696
      %v699 = vshrl.u32 %v284, 16
      %v701 = vrot.slane %v699, 4
      %v702 = vshll.u32 %v284, 16
      %v704 = vrot.slane %v702, 5
      %v705 = vor.u32 %v701, %v704
      %v706 = vrot.slane %v705, 4
      %v708 = vshll.u32 %v285, 16
      %v710 = vrot.slane %v708, 5
      %v711 = vsel %vm625, %v706, %v710
      %v712 = vshrl.u32 %v285, 16
      %v714 = vrot.slane %v712, 4
      %v715 = vor.u32 %v714, %v710
      %v716 = vrot.slane %v715, 4
      %v718 = vshll.u32 %v286, 16
      %v720 = vrot.slane %v718, 5
      %v721 = vsel %vm625, %v716, %v720
      %v723 = vshrl.u32 %v287, 16
      %v725 = vrot.slane %v723, 4
      %v726 = vshll.u32 %v287, 16
      %v728 = vrot.slane %v726, 5
      %v729 = vor.u32 %v725, %v728
      %v730 = vrot.slane %v729, 4
      %v732 = vshll.u32 %v288, 16
      %v734 = vrot.slane %v732, 5
      %v735 = vsel %vm625, %v730, %v734
      %v736 = vshrl.u32 %v288, 16
      %v738 = vrot.slane %v736, 4
      %v739 = vor.u32 %v738, %v734
      %v740 = vrot.slane %v739, 4
      %v742 = vshll.u32 %v289, 16
      %v744 = vrot.slane %v742, 5
      %v745 = vsel %vm625, %v740, %v744
      %v747 = vshrl.u32 %v290, 16
      %v749 = vrot.slane %v747, 4
      %v750 = vshll.u32 %v290, 16
      %v752 = vrot.slane %v750, 5
      %v753 = vor.u32 %v749, %v752
      %v754 = vrot.slane %v753, 4
      %v756 = vshll.u32 %v291, 16
      %v758 = vrot.slane %v756, 5
      %v759 = vsel %vm625, %v754, %v758
      %v760 = vshrl.u32 %v291, 16
      %v762 = vrot.slane %v760, 4
      %v763 = vor.u32 %v762, %v758
      %v764 = vrot.slane %v763, 4
      %v766 = vshll.u32 %v292, 16
      %v768 = vrot.slane %v766, 5
      %v769 = vsel %vm625, %v764, %v768
      %v771 = vshrl.u32 %v293, 16
      %v773 = vrot.slane %v771, 4
      %v774 = vshll.u32 %v293, 16
      %v776 = vrot.slane %v774, 5
      %v777 = vor.u32 %v773, %v776
      %v778 = vrot.slane %v777, 4
      %v780 = vshll.u32 %v294, 16
      %v782 = vrot.slane %v780, 5
      %v783 = vsel %vm625, %v778, %v782
      %v784 = vshrl.u32 %v294, 16
      %v786 = vrot.slane %v784, 4
      %v787 = vor.u32 %v786, %v782
      %v788 = vrot.slane %v787, 4
      %v790 = vshll.u32 %v295, 16
      %v792 = vrot.slane %v790, 5
      %v793 = vsel %vm625, %v788, %v792
      %v795 = vshrl.u32 %v296, 16
      %v797 = vrot.slane %v795, 4
      %v798 = vshll.u32 %v296, 16
      %v800 = vrot.slane %v798, 5
      %v801 = vor.u32 %v797, %v800
      %v802 = vrot.slane %v801, 4
      %v804 = vshll.u32 %v297, 16
      %v806 = vrot.slane %v804, 5
      %v807 = vsel %vm625, %v802, %v806
      %v808 = vshrl.u32 %v297, 16
      %v810 = vrot.slane %v808, 4
      %v811 = vor.u32 %v810, %v806
      %v812 = vrot.slane %v811, 4
      %v814 = vshll.u32 %v298, 16
      %v816 = vrot.slane %v814, 5
      %v817 = vsel %vm625, %v812, %v816
      %v819 = vshrl.u32 %v299, 16
      %v821 = vrot.slane %v819, 4
      %v822 = vshll.u32 %v299, 16
      %v824 = vrot.slane %v822, 5
      %v825 = vor.u32 %v821, %v824
      %v826 = vrot.slane %v825, 4
      %v828 = vshll.u32 %v300, 16
      %v830 = vrot.slane %v828, 5
      %v831 = vsel %vm625, %v826, %v830
      %v832 = vshrl.u32 %v300, 16
      %v834 = vrot.slane %v832, 4
      %v835 = vor.u32 %v834, %v830
      %v836 = vrot.slane %v835, 4
      %v838 = vshll.u32 %v301, 16
      %v840 = vrot.slane %v838, 5
      %v841 = vsel %vm625, %v836, %v840
      %v843 = vshrl.u32 %v302, 16
      %v845 = vrot.slane %v843, 4
      %v846 = vshll.u32 %v302, 16
      %v848 = vrot.slane %v846, 5
      %v849 = vor.u32 %v845, %v848
      %v850 = vrot.slane %v849, 4
      %v852 = vshll.u32 %v303, 16
      %v854 = vrot.slane %v852, 5
      %v855 = vsel %vm625, %v850, %v854
      %v856 = vshrl.u32 %v303, 16
      %v858 = vrot.slane %v856, 4
      %v859 = vor.u32 %v858, %v854
      %v860 = vrot.slane %v859, 4
      %v862 = vshll.u32 %v304, 16
      %v864 = vrot.slane %v862, 5
      %v865 = vsel %vm625, %v860, %v864
      %s866 = scalar_lea.vmem %s1, 24
      %v867 = vld [vmem:[%s866] sm:$0xf]
      %v868 = vld [vmem:[%s866 + $0x4] sm:$0xf]
      %v869 = vld [vmem:[%s866 + $0x8] sm:$0xf]
      %v870 = vld [vmem:[%s866 + $0xc] sm:$0xf]
      %v871 = vld [vmem:[%s866 + $0x10] sm:$0xf]
      %v872 = vld [vmem:[%s866 + $0x14] sm:$0xf]
      %v873 = vunpack.c.l.b16 %v639
      %v874 = vunpack.c.l.b16 %v649
      %v875 = vunpack.c.l.b16 %v663
      %v876 = vunpack.c.l.b16 %v673
      %v877 = vunpack.c.l.b16 %v687
      %v878 = vunpack.c.l.b16 %v697
      %v879 = vunpack.c.l.b16 %v711
      %v880 = vunpack.c.l.b16 %v721
      %v881 = vunpack.c.l.b16 %v735
      %v882 = vunpack.c.l.b16 %v745
      %v883 = vunpack.c.l.b16 %v759
      %v884 = vunpack.c.l.b16 %v769
      %v885 = vunpack.c.l.b16 %v783
      %v886 = vunpack.c.l.b16 %v793
      %v887 = vunpack.c.l.b16 %v807
      %v888 = vunpack.c.l.b16 %v817
      %v889 = vpack.c.b16 %v874, %v873
      %v890 = vpack.c.b16 %v876, %v875
      %v891 = vpack.c.b16 %v878, %v877
      %v892 = vpack.c.b16 %v880, %v879
      %v893 = vpack.c.b16 %v882, %v881
      %v894 = vpack.c.b16 %v884, %v883
      %v895 = vpack.c.b16 %v886, %v885
      %v896 = vpack.c.b16 %v888, %v887
      %v903 = vunpack.c.l.b16 %v867
      %v904 = vunpack.c.l.b16 %v868
      %v905 = vunpack.c.l.b16 %v869
      %v906 = vunpack.c.l.b16 %v870
      %v907 = vunpack.c.l.b16 %v871
      %v908 = vunpack.c.l.b16 %v872
      %v909 = vpack.c.b16 %v904, %v903
      %v910 = vpack.c.b16 %v906, %v905
      %v911 = vpack.c.b16 %v908, %v907
      %v916 = vsel %vm376, %v889, 0
      %v919 = vsel %vm376, %v890, 0
      %v922 = vsel %vm376, %v891, 0
      %v925 = vsel %vm376, %v892, 0
      %v928 = vsel %vm376, %v893, 0
      %v931 = vsel %vm376, %v894, 0
      %v934 = vsel %vm376, %v895, 0
      %v937 = vsel %vm376, %v896, 0
      %939 = vmatpush.bf16.msra.mxu0 0
      %940 = vmatpush.bf16.msra.mxu0 0
      %941 = vmatpush.bf16.msra.mxu0 0
      %942 = vmatpush.bf16.msra.mxu0 0
      %943 = vmatpush.bf16.msra.mxu0 0
      %944 = vmatpush.bf16.msra.mxu0 %v911
      %945 = vmatpush.bf16.msra.mxu0 %v910
      %946 = vmatpush.bf16.msra.mxu0 %v909
      %947 = vmatmul.bf16.gmra.mxu0 %v916
      %v948 = vpop.f32.mrf.mxu0
      %v949 = vadd.f32 0.0, %v948
      %v950 = vpop.f32.mrf.mxu0
      %v951 = vadd.f32 0.0, %v950
      %952 = vmatmul.bf16.gmra.mxu0 %v919
      %v953 = vpop.f32.mrf.mxu0
      %v954 = vadd.f32 0.0, %v953
      %v955 = vpop.f32.mrf.mxu0
      %v956 = vadd.f32 0.0, %v955
      %957 = vmatmul.bf16.gmra.mxu0 %v922
      %v958 = vpop.f32.mrf.mxu0
      %v959 = vadd.f32 0.0, %v958
      %v960 = vpop.f32.mrf.mxu0
      %v961 = vadd.f32 0.0, %v960
      %962 = vmatmul.bf16.gmra.mxu0 %v925
      %v963 = vpop.f32.mrf.mxu0
      %v964 = vadd.f32 0.0, %v963
      %v965 = vpop.f32.mrf.mxu0
      %v966 = vadd.f32 0.0, %v965
      %967 = vmatmul.bf16.gmra.mxu0 %v928
      %v968 = vpop.f32.mrf.mxu0
      %v969 = vadd.f32 0.0, %v968
      %v970 = vpop.f32.mrf.mxu0
      %v971 = vadd.f32 0.0, %v970
      %972 = vmatmul.bf16.gmra.mxu0 %v931
      %v973 = vpop.f32.mrf.mxu0
      %v974 = vadd.f32 0.0, %v973
      %v975 = vpop.f32.mrf.mxu0
      %v976 = vadd.f32 0.0, %v975
      %977 = vmatmul.bf16.gmra.mxu0 %v934
      %v978 = vpop.f32.mrf.mxu0
      %v979 = vadd.f32 0.0, %v978
      %v980 = vpop.f32.mrf.mxu0
      %v981 = vadd.f32 0.0, %v980
      %982 = vmatmul.bf16.gmra.mxu0 %v937
      %v983 = vpop.f32.mrf.mxu0
      %v984 = vadd.f32 0.0, %v983
      %v985 = vpop.f32.mrf.mxu0
      %v986 = vadd.f32 0.0, %v985
      %987 = vdwg.mxu0
      %v988 = vadd.f32 %v607, %v949
      %v989 = vadd.f32 %v608, %v951
      %v990 = vadd.f32 %v609, %v954
      %v991 = vadd.f32 %v610, %v956
      %v992 = vadd.f32 %v611, %v959
      %v993 = vadd.f32 %v612, %v961
      %v994 = vadd.f32 %v613, %v964
      %v995 = vadd.f32 %v614, %v966
      %v996 = vadd.f32 %v615, %v969
      %v997 = vadd.f32 %v616, %v971
      %v998 = vadd.f32 %v617, %v974
      %v999 = vadd.f32 %v618, %v976
      %v1000 = vadd.f32 %v619, %v979
      %v1001 = vadd.f32 %v620, %v981
      %v1002 = vadd.f32 %v621, %v984
      %v1003 = vadd.f32 %v622, %v986
      %s1004 = scalar_lea.vmem %s1, 96
      %v1005 = vld [vmem:[%s1004] sm:$0xf]
      %v1006 = vld [vmem:[%s1004 + $0x4] sm:$0xf]
      %v1007 = vld [vmem:[%s1004 + $0x8] sm:$0xf]
      %v1008 = vld [vmem:[%s1004 + $0xc] sm:$0xf]
      %v1009 = vld [vmem:[%s1004 + $0x10] sm:$0xf]
      %v1010 = vld [vmem:[%s1004 + $0x14] sm:$0xf]
      %v1011 = vunpack.c.l.b16 %v831
      %v1012 = vunpack.c.l.b16 %v841
      %v1013 = vpack.c.b16 %v1012, %v1011
      %v1020 = vunpack.c.l.b16 %v1005
      %v1021 = vunpack.c.l.b16 %v1006
      %v1022 = vunpack.c.l.b16 %v1007
      %v1023 = vunpack.c.l.b16 %v1008
      %v1024 = vunpack.c.l.b16 %v1009
      %v1025 = vunpack.c.l.b16 %v1010
      %v1026 = vpack.c.b16 %v1021, %v1020
      %v1027 = vpack.c.b16 %v1023, %v1022
      %v1028 = vpack.c.b16 %v1025, %v1024
      %v1033 = vsel %vm376, %v1013, 0
      %1035 = vmatpush.bf16.msra.mxu0 0
      %1036 = vmatpush.bf16.msra.mxu0 0
      %1037 = vmatpush.bf16.msra.mxu0 0
      %1038 = vmatpush.bf16.msra.mxu0 0
      %1039 = vmatpush.bf16.msra.mxu0 0
      %1040 = vmatpush.bf16.msra.mxu0 %v1028
      %1041 = vmatpush.bf16.msra.mxu0 %v1027
      %1042 = vmatpush.bf16.msra.mxu0 %v1026
      %1043 = vmatmul.bf16.gmra.mxu0 %v919
      %v1044 = vpop.f32.mrf.mxu0
      %v1045 = vadd.f32 0.0, %v1044
      %v1046 = vpop.f32.mrf.mxu0
      %v1047 = vadd.f32 0.0, %v1046
      %1048 = vmatmul.bf16.gmra.mxu0 %v922
      %v1049 = vpop.f32.mrf.mxu0
      %v1050 = vadd.f32 0.0, %v1049
      %v1051 = vpop.f32.mrf.mxu0
      %v1052 = vadd.f32 0.0, %v1051
      %1053 = vmatmul.bf16.gmra.mxu0 %v925
      %v1054 = vpop.f32.mrf.mxu0
      %v1055 = vadd.f32 0.0, %v1054
      %v1056 = vpop.f32.mrf.mxu0
      %v1057 = vadd.f32 0.0, %v1056
      %1058 = vmatmul.bf16.gmra.mxu0 %v928
      %v1059 = vpop.f32.mrf.mxu0
      %v1060 = vadd.f32 0.0, %v1059
      %v1061 = vpop.f32.mrf.mxu0
      %v1062 = vadd.f32 0.0, %v1061
      %1063 = vmatmul.bf16.gmra.mxu0 %v931
      %v1064 = vpop.f32.mrf.mxu0
      %v1065 = vadd.f32 0.0, %v1064
      %v1066 = vpop.f32.mrf.mxu0
      %v1067 = vadd.f32 0.0, %v1066
      %1068 = vmatmul.bf16.gmra.mxu0 %v934
      %v1069 = vpop.f32.mrf.mxu0
      %v1070 = vadd.f32 0.0, %v1069
      %v1071 = vpop.f32.mrf.mxu0
      %v1072 = vadd.f32 0.0, %v1071
      %1073 = vmatmul.bf16.gmra.mxu0 %v937
      %v1074 = vpop.f32.mrf.mxu0
      %v1075 = vadd.f32 0.0, %v1074
      %v1076 = vpop.f32.mrf.mxu0
      %v1077 = vadd.f32 0.0, %v1076
      %1078 = vmatmul.bf16.gmra.mxu0 %v1033
      %v1079 = vpop.f32.mrf.mxu0
      %v1080 = vadd.f32 0.0, %v1079
      %v1081 = vpop.f32.mrf.mxu0
      %v1082 = vadd.f32 0.0, %v1081
      %1083 = vdwg.mxu0
      %v1084 = vadd.f32 %v988, %v1045
      %v1085 = vadd.f32 %v989, %v1047
      %v1086 = vadd.f32 %v990, %v1050
      %v1087 = vadd.f32 %v991, %v1052
      %v1088 = vadd.f32 %v992, %v1055
      %v1089 = vadd.f32 %v993, %v1057
      %v1090 = vadd.f32 %v994, %v1060
      %v1091 = vadd.f32 %v995, %v1062
      %v1092 = vadd.f32 %v996, %v1065
      %v1093 = vadd.f32 %v997, %v1067
      %v1094 = vadd.f32 %v998, %v1070
      %v1095 = vadd.f32 %v999, %v1072
      %v1096 = vadd.f32 %v1000, %v1075
      %v1097 = vadd.f32 %v1001, %v1077
      %v1098 = vadd.f32 %v1002, %v1080
      %v1099 = vadd.f32 %v1003, %v1082
      %s1100 = scalar_lea.vmem %s1, 168
      %v1101 = vld [vmem:[%s1100] sm:$0xf]
      %v1102 = vld [vmem:[%s1100 + $0x4] sm:$0xf]
      %v1103 = vld [vmem:[%s1100 + $0x8] sm:$0xf]
      %v1104 = vld [vmem:[%s1100 + $0xc] sm:$0xf]
      %v1105 = vld [vmem:[%s1100 + $0x10] sm:$0xf]
      %v1106 = vld [vmem:[%s1100 + $0x14] sm:$0xf]
      %v1107 = vunpack.c.l.b16 %v855
      %v1108 = vunpack.c.l.b16 %v865
      %v1109 = vpack.c.b16 %v1108, %v1107
      %v1116 = vunpack.c.l.b16 %v1101
      %v1117 = vunpack.c.l.b16 %v1102
      %v1118 = vunpack.c.l.b16 %v1103
      %v1119 = vunpack.c.l.b16 %v1104
      %v1120 = vunpack.c.l.b16 %v1105
      %v1121 = vunpack.c.l.b16 %v1106
      %v1122 = vpack.c.b16 %v1117, %v1116
      %v1123 = vpack.c.b16 %v1119, %v1118
      %v1124 = vpack.c.b16 %v1121, %v1120
      %v1129 = vsel %vm376, %v1109, 0
      %1131 = vmatpush.bf16.msra.mxu0 0
      %1132 = vmatpush.bf16.msra.mxu0 0
      %1133 = vmatpush.bf16.msra.mxu0 0
      %1134 = vmatpush.bf16.msra.mxu0 0
      %1135 = vmatpush.bf16.msra.mxu0 0
      %1136 = vmatpush.bf16.msra.mxu0 %v1124
      %1137 = vmatpush.bf16.msra.mxu0 %v1123
      %1138 = vmatpush.bf16.msra.mxu0 %v1122
      %1139 = vmatmul.bf16.gmra.mxu0 %v922
      %v1140 = vpop.f32.mrf.mxu0
      %v1141 = vadd.f32 0.0, %v1140
      %v1142 = vpop.f32.mrf.mxu0
      %v1143 = vadd.f32 0.0, %v1142
      %1144 = vmatmul.bf16.gmra.mxu0 %v925
      %v1145 = vpop.f32.mrf.mxu0
      %v1146 = vadd.f32 0.0, %v1145
      %v1147 = vpop.f32.mrf.mxu0
      %v1148 = vadd.f32 0.0, %v1147
      %1149 = vmatmul.bf16.gmra.mxu0 %v928
      %v1150 = vpop.f32.mrf.mxu0
      %v1151 = vadd.f32 0.0, %v1150
      %v1152 = vpop.f32.mrf.mxu0
      %v1153 = vadd.f32 0.0, %v1152
      %1154 = vmatmul.bf16.gmra.mxu0 %v931
      %v1155 = vpop.f32.mrf.mxu0
      %v1156 = vadd.f32 0.0, %v1155
      %v1157 = vpop.f32.mrf.mxu0
      %v1158 = vadd.f32 0.0, %v1157
      %1159 = vmatmul.bf16.gmra.mxu0 %v934
      %v1160 = vpop.f32.mrf.mxu0
      %v1161 = vadd.f32 0.0, %v1160
      %v1162 = vpop.f32.mrf.mxu0
      %v1163 = vadd.f32 0.0, %v1162
      %1164 = vmatmul.bf16.gmra.mxu0 %v937
      %v1165 = vpop.f32.mrf.mxu0
      %v1166 = vadd.f32 0.0, %v1165
      %v1167 = vpop.f32.mrf.mxu0
      %v1168 = vadd.f32 0.0, %v1167
      %1169 = vmatmul.bf16.gmra.mxu0 %v1033
      %v1170 = vpop.f32.mrf.mxu0
      %v1171 = vadd.f32 0.0, %v1170
      %v1172 = vpop.f32.mrf.mxu0
      %v1173 = vadd.f32 0.0, %v1172
      %1174 = vmatmul.bf16.gmra.mxu0 %v1129
      %v1175 = vpop.f32.mrf.mxu0
      %v1176 = vadd.f32 0.0, %v1175
      %v1177 = vpop.f32.mrf.mxu0
      %v1178 = vadd.f32 0.0, %v1177
      %1179 = vdwg.mxu0
      %v1180 = vadd.f32 %v1084, %v1141
      %v1181 = vadd.f32 %v1085, %v1143
      %v1182 = vadd.f32 %v1086, %v1146
      %v1183 = vadd.f32 %v1087, %v1148
      %v1184 = vadd.f32 %v1088, %v1151
      %v1185 = vadd.f32 %v1089, %v1153
      %v1186 = vadd.f32 %v1090, %v1156
      %v1187 = vadd.f32 %v1091, %v1158
      %v1188 = vadd.f32 %v1092, %v1161
      %v1189 = vadd.f32 %v1093, %v1163
      %v1190 = vadd.f32 %v1094, %v1166
      %v1191 = vadd.f32 %v1095, %v1168
      %v1192 = vadd.f32 %v1096, %v1171
      %v1193 = vadd.f32 %v1097, %v1173
      %v1194 = vadd.f32 %v1098, %v1176
      %v1195 = vadd.f32 %v1099, %v1178
      %vm1206 = vcmask 1042432
      %vm1207 = vcmask 1046532
      %vm1208 = vmor %vm1206, %vm1207
      %v1209 = vrot.slane %v275, 5
      %v1210 = vrot.slane %v1209, 4
      %v1211 = vrot.slane %v276, 5
      %v1212 = vsel %vm1208, %v1210, %v1211
      %v1213 = vrot.slane %v1211, 4
      %v1214 = vrot.slane %v277, 5
      %v1215 = vsel %vm1208, %v1213, %v1214
      %v1216 = vrot.slane %v278, 5
      %v1217 = vrot.slane %v1216, 4
      %v1218 = vrot.slane %v279, 5
      %v1219 = vsel %vm1208, %v1217, %v1218
      %v1220 = vrot.slane %v1218, 4
      %v1221 = vrot.slane %v280, 5
      %v1222 = vsel %vm1208, %v1220, %v1221
      %v1223 = vrot.slane %v281, 5
      %v1224 = vrot.slane %v1223, 4
      %v1225 = vrot.slane %v282, 5
      %v1226 = vsel %vm1208, %v1224, %v1225
      %v1227 = vrot.slane %v1225, 4
      %v1228 = vrot.slane %v283, 5
      %v1229 = vsel %vm1208, %v1227, %v1228
      %v1230 = vrot.slane %v284, 5
      %v1231 = vrot.slane %v1230, 4
      %v1232 = vrot.slane %v285, 5
      %v1233 = vsel %vm1208, %v1231, %v1232
      %v1234 = vrot.slane %v1232, 4
      %v1235 = vrot.slane %v286, 5
      %v1236 = vsel %vm1208, %v1234, %v1235
      %v1237 = vrot.slane %v287, 5
      %v1238 = vrot.slane %v1237, 4
      %v1239 = vrot.slane %v288, 5
      %v1240 = vsel %vm1208, %v1238, %v1239
      %v1241 = vrot.slane %v1239, 4
      %v1242 = vrot.slane %v289, 5
      %v1243 = vsel %vm1208, %v1241, %v1242
      %v1244 = vrot.slane %v290, 5
      %v1245 = vrot.slane %v1244, 4
      %v1246 = vrot.slane %v291, 5
      %v1247 = vsel %vm1208, %v1245, %v1246
      %v1248 = vrot.slane %v1246, 4
      %v1249 = vrot.slane %v292, 5
      %v1250 = vsel %vm1208, %v1248, %v1249
      %v1251 = vrot.slane %v293, 5
      %v1252 = vrot.slane %v1251, 4
      %v1253 = vrot.slane %v294, 5
      %v1254 = vsel %vm1208, %v1252, %v1253
      %v1255 = vrot.slane %v1253, 4
      %v1256 = vrot.slane %v295, 5
      %v1257 = vsel %vm1208, %v1255, %v1256
      %v1258 = vrot.slane %v296, 5
      %v1259 = vrot.slane %v1258, 4
      %v1260 = vrot.slane %v297, 5
      %v1261 = vsel %vm1208, %v1259, %v1260
      %v1262 = vrot.slane %v1260, 4
      %v1263 = vrot.slane %v298, 5
      %v1264 = vsel %vm1208, %v1262, %v1263
      %v1265 = vrot.slane %v299, 5
      %v1266 = vrot.slane %v1265, 4
      %v1267 = vrot.slane %v300, 5
      %v1268 = vsel %vm1208, %v1266, %v1267
      %v1269 = vrot.slane %v1267, 4
      %v1270 = vrot.slane %v301, 5
      %v1271 = vsel %vm1208, %v1269, %v1270
      %v1272 = vrot.slane %v302, 5
      %v1273 = vrot.slane %v1272, 4
      %v1274 = vrot.slane %v303, 5
      %v1275 = vsel %vm1208, %v1273, %v1274
      %v1276 = vrot.slane %v1274, 4
      %v1277 = vrot.slane %v304, 5
      %v1278 = vsel %vm1208, %v1276, %v1277
      %s1279 = scalar_lea.vmem %s1, 48
      %v1280 = vld [vmem:[%s1279] sm:$0xf]
      %v1281 = vld [vmem:[%s1279 + $0x4] sm:$0xf]
      %v1282 = vld [vmem:[%s1279 + $0x8] sm:$0xf]
      %v1283 = vld [vmem:[%s1279 + $0xc] sm:$0xf]
      %v1284 = vld [vmem:[%s1279 + $0x10] sm:$0xf]
      %v1285 = vld [vmem:[%s1279 + $0x14] sm:$0xf]
      %v1286 = vunpack.c.l.b16 %v1212
      %v1287 = vunpack.c.l.b16 %v1215
      %v1288 = vunpack.c.l.b16 %v1219
      %v1289 = vunpack.c.l.b16 %v1222
      %v1290 = vunpack.c.l.b16 %v1226
      %v1291 = vunpack.c.l.b16 %v1229
      %v1292 = vunpack.c.l.b16 %v1233
      %v1293 = vunpack.c.l.b16 %v1236
      %v1294 = vunpack.c.l.b16 %v1240
      %v1295 = vunpack.c.l.b16 %v1243
      %v1296 = vunpack.c.l.b16 %v1247
      %v1297 = vunpack.c.l.b16 %v1250
      %v1298 = vunpack.c.l.b16 %v1254
      %v1299 = vunpack.c.l.b16 %v1257
      %v1300 = vunpack.c.l.b16 %v1261
      %v1301 = vunpack.c.l.b16 %v1264
      %v1302 = vpack.c.b16 %v1287, %v1286
      %v1303 = vpack.c.b16 %v1289, %v1288
      %v1304 = vpack.c.b16 %v1291, %v1290
      %v1305 = vpack.c.b16 %v1293, %v1292
      %v1306 = vpack.c.b16 %v1295, %v1294
      %v1307 = vpack.c.b16 %v1297, %v1296
      %v1308 = vpack.c.b16 %v1299, %v1298
      %v1309 = vpack.c.b16 %v1301, %v1300
      %v1316 = vunpack.c.l.b16 %v1280
      %v1317 = vunpack.c.l.b16 %v1281
      %v1318 = vunpack.c.l.b16 %v1282
      %v1319 = vunpack.c.l.b16 %v1283
      %v1320 = vunpack.c.l.b16 %v1284
      %v1321 = vunpack.c.l.b16 %v1285
      %v1322 = vpack.c.b16 %v1317, %v1316
      %v1323 = vpack.c.b16 %v1319, %v1318
      %v1324 = vpack.c.b16 %v1321, %v1320
      %v1329 = vsel %vm376, %v1302, 0
      %v1332 = vsel %vm376, %v1303, 0
      %v1335 = vsel %vm376, %v1304, 0
      %v1338 = vsel %vm376, %v1305, 0
      %v1341 = vsel %vm376, %v1306, 0
      %v1344 = vsel %vm376, %v1307, 0
      %v1347 = vsel %vm376, %v1308, 0
      %v1350 = vsel %vm376, %v1309, 0
      %1352 = vmatpush.bf16.msra.mxu0 0
      %1353 = vmatpush.bf16.msra.mxu0 0
      %1354 = vmatpush.bf16.msra.mxu0 0
      %1355 = vmatpush.bf16.msra.mxu0 0
      %1356 = vmatpush.bf16.msra.mxu0 0
      %1357 = vmatpush.bf16.msra.mxu0 %v1324
      %1358 = vmatpush.bf16.msra.mxu0 %v1323
      %1359 = vmatpush.bf16.msra.mxu0 %v1322
      %1360 = vmatmul.bf16.gmra.mxu0 %v1329
      %v1361 = vpop.f32.mrf.mxu0
      %v1362 = vadd.f32 0.0, %v1361
      %v1363 = vpop.f32.mrf.mxu0
      %v1364 = vadd.f32 0.0, %v1363
      %1365 = vmatmul.bf16.gmra.mxu0 %v1332
      %v1366 = vpop.f32.mrf.mxu0
      %v1367 = vadd.f32 0.0, %v1366
      %v1368 = vpop.f32.mrf.mxu0
      %v1369 = vadd.f32 0.0, %v1368
      %1370 = vmatmul.bf16.gmra.mxu0 %v1335
      %v1371 = vpop.f32.mrf.mxu0
      %v1372 = vadd.f32 0.0, %v1371
      %v1373 = vpop.f32.mrf.mxu0
      %v1374 = vadd.f32 0.0, %v1373
      %1375 = vmatmul.bf16.gmra.mxu0 %v1338
      %v1376 = vpop.f32.mrf.mxu0
      %v1377 = vadd.f32 0.0, %v1376
      %v1378 = vpop.f32.mrf.mxu0
      %v1379 = vadd.f32 0.0, %v1378
      %1380 = vmatmul.bf16.gmra.mxu0 %v1341
      %v1381 = vpop.f32.mrf.mxu0
      %v1382 = vadd.f32 0.0, %v1381
      %v1383 = vpop.f32.mrf.mxu0
      %v1384 = vadd.f32 0.0, %v1383
      %1385 = vmatmul.bf16.gmra.mxu0 %v1344
      %v1386 = vpop.f32.mrf.mxu0
      %v1387 = vadd.f32 0.0, %v1386
      %v1388 = vpop.f32.mrf.mxu0
      %v1389 = vadd.f32 0.0, %v1388
      %1390 = vmatmul.bf16.gmra.mxu0 %v1347
      %v1391 = vpop.f32.mrf.mxu0
      %v1392 = vadd.f32 0.0, %v1391
      %v1393 = vpop.f32.mrf.mxu0
      %v1394 = vadd.f32 0.0, %v1393
      %1395 = vmatmul.bf16.gmra.mxu0 %v1350
      %v1396 = vpop.f32.mrf.mxu0
      %v1397 = vadd.f32 0.0, %v1396
      %v1398 = vpop.f32.mrf.mxu0
      %v1399 = vadd.f32 0.0, %v1398
      %1400 = vdwg.mxu0
      %v1401 = vadd.f32 %v1180, %v1362
      %v1402 = vadd.f32 %v1181, %v1364
      %v1403 = vadd.f32 %v1182, %v1367
      %v1404 = vadd.f32 %v1183, %v1369
      %v1405 = vadd.f32 %v1184, %v1372
      %v1406 = vadd.f32 %v1185, %v1374
      %v1407 = vadd.f32 %v1186, %v1377
      %v1408 = vadd.f32 %v1187, %v1379
      %v1409 = vadd.f32 %v1188, %v1382
      %v1410 = vadd.f32 %v1189, %v1384
      %v1411 = vadd.f32 %v1190, %v1387
      %v1412 = vadd.f32 %v1191, %v1389
      %v1413 = vadd.f32 %v1192, %v1392
      %v1414 = vadd.f32 %v1193, %v1394
      %v1415 = vadd.f32 %v1194, %v1397
      %v1416 = vadd.f32 %v1195, %v1399
      %s1417 = scalar_lea.vmem %s1, 120
      %v1418 = vld [vmem:[%s1417] sm:$0xf]
      %v1419 = vld [vmem:[%s1417 + $0x4] sm:$0xf]
      %v1420 = vld [vmem:[%s1417 + $0x8] sm:$0xf]
      %v1421 = vld [vmem:[%s1417 + $0xc] sm:$0xf]
      %v1422 = vld [vmem:[%s1417 + $0x10] sm:$0xf]
      %v1423 = vld [vmem:[%s1417 + $0x14] sm:$0xf]
      %v1424 = vunpack.c.l.b16 %v1268
      %v1425 = vunpack.c.l.b16 %v1271
      %v1426 = vpack.c.b16 %v1425, %v1424
      %v1433 = vunpack.c.l.b16 %v1418
      %v1434 = vunpack.c.l.b16 %v1419
      %v1435 = vunpack.c.l.b16 %v1420
      %v1436 = vunpack.c.l.b16 %v1421
      %v1437 = vunpack.c.l.b16 %v1422
      %v1438 = vunpack.c.l.b16 %v1423
      %v1439 = vpack.c.b16 %v1434, %v1433
      %v1440 = vpack.c.b16 %v1436, %v1435
      %v1441 = vpack.c.b16 %v1438, %v1437
      %v1446 = vsel %vm376, %v1426, 0
      %1448 = vmatpush.bf16.msra.mxu0 0
      %1449 = vmatpush.bf16.msra.mxu0 0
      %1450 = vmatpush.bf16.msra.mxu0 0
      %1451 = vmatpush.bf16.msra.mxu0 0
      %1452 = vmatpush.bf16.msra.mxu0 0
      %1453 = vmatpush.bf16.msra.mxu0 %v1441
      %1454 = vmatpush.bf16.msra.mxu0 %v1440
      %1455 = vmatpush.bf16.msra.mxu0 %v1439
      %1456 = vmatmul.bf16.gmra.mxu0 %v1332
      %v1457 = vpop.f32.mrf.mxu0
      %v1458 = vadd.f32 0.0, %v1457
      %v1459 = vpop.f32.mrf.mxu0
      %v1460 = vadd.f32 0.0, %v1459
      %1461 = vmatmul.bf16.gmra.mxu0 %v1335
      %v1462 = vpop.f32.mrf.mxu0
      %v1463 = vadd.f32 0.0, %v1462
      %v1464 = vpop.f32.mrf.mxu0
      %v1465 = vadd.f32 0.0, %v1464
      %1466 = vmatmul.bf16.gmra.mxu0 %v1338
      %v1467 = vpop.f32.mrf.mxu0
      %v1468 = vadd.f32 0.0, %v1467
      %v1469 = vpop.f32.mrf.mxu0
      %v1470 = vadd.f32 0.0, %v1469
      %1471 = vmatmul.bf16.gmra.mxu0 %v1341
      %v1472 = vpop.f32.mrf.mxu0
      %v1473 = vadd.f32 0.0, %v1472
      %v1474 = vpop.f32.mrf.mxu0
      %v1475 = vadd.f32 0.0, %v1474
      %1476 = vmatmul.bf16.gmra.mxu0 %v1344
      %v1477 = vpop.f32.mrf.mxu0
      %v1478 = vadd.f32 0.0, %v1477
      %v1479 = vpop.f32.mrf.mxu0
      %v1480 = vadd.f32 0.0, %v1479
      %1481 = vmatmul.bf16.gmra.mxu0 %v1347
      %v1482 = vpop.f32.mrf.mxu0
      %v1483 = vadd.f32 0.0, %v1482
      %v1484 = vpop.f32.mrf.mxu0
      %v1485 = vadd.f32 0.0, %v1484
      %1486 = vmatmul.bf16.gmra.mxu0 %v1350
      %v1487 = vpop.f32.mrf.mxu0
      %v1488 = vadd.f32 0.0, %v1487
      %v1489 = vpop.f32.mrf.mxu0
      %v1490 = vadd.f32 0.0, %v1489
      %1491 = vmatmul.bf16.gmra.mxu0 %v1446
      %v1492 = vpop.f32.mrf.mxu0
      %v1493 = vadd.f32 0.0, %v1492
      %v1494 = vpop.f32.mrf.mxu0
      %v1495 = vadd.f32 0.0, %v1494
      %1496 = vdwg.mxu0
      %v1497 = vadd.f32 %v1401, %v1458
      %v1498 = vadd.f32 %v1402, %v1460
      %v1499 = vadd.f32 %v1403, %v1463
      %v1500 = vadd.f32 %v1404, %v1465
      %v1501 = vadd.f32 %v1405, %v1468
      %v1502 = vadd.f32 %v1406, %v1470
      %v1503 = vadd.f32 %v1407, %v1473
      %v1504 = vadd.f32 %v1408, %v1475
      %v1505 = vadd.f32 %v1409, %v1478
      %v1506 = vadd.f32 %v1410, %v1480
      %v1507 = vadd.f32 %v1411, %v1483
      %v1508 = vadd.f32 %v1412, %v1485
      %v1509 = vadd.f32 %v1413, %v1488
      %v1510 = vadd.f32 %v1414, %v1490
      %v1511 = vadd.f32 %v1415, %v1493
      %v1512 = vadd.f32 %v1416, %v1495
      %s1513 = scalar_lea.vmem %s1, 192
      %v1514 = vld [vmem:[%s1513] sm:$0xf]
      %v1515 = vld [vmem:[%s1513 + $0x4] sm:$0xf]
      %v1516 = vld [vmem:[%s1513 + $0x8] sm:$0xf]
      %v1517 = vld [vmem:[%s1513 + $0xc] sm:$0xf]
      %v1518 = vld [vmem:[%s1513 + $0x10] sm:$0xf]
      %v1519 = vld [vmem:[%s1513 + $0x14] sm:$0xf]
      %v1520 = vunpack.c.l.b16 %v1275
      %v1521 = vunpack.c.l.b16 %v1278
      %v1522 = vpack.c.b16 %v1521, %v1520
      %v1529 = vunpack.c.l.b16 %v1514
      %v1530 = vunpack.c.l.b16 %v1515
      %v1531 = vunpack.c.l.b16 %v1516
      %v1532 = vunpack.c.l.b16 %v1517
      %v1533 = vunpack.c.l.b16 %v1518
      %v1534 = vunpack.c.l.b16 %v1519
      %v1535 = vpack.c.b16 %v1530, %v1529
      %v1536 = vpack.c.b16 %v1532, %v1531
      %v1537 = vpack.c.b16 %v1534, %v1533
      %v1542 = vsel %vm376, %v1522, 0
      %1544 = vmatpush.bf16.msra.mxu0 0
      %1545 = vmatpush.bf16.msra.mxu0 0
      %1546 = vmatpush.bf16.msra.mxu0 0
      %1547 = vmatpush.bf16.msra.mxu0 0
      %1548 = vmatpush.bf16.msra.mxu0 0
      %1549 = vmatpush.bf16.msra.mxu0 %v1537
      %1550 = vmatpush.bf16.msra.mxu0 %v1536
      %1551 = vmatpush.bf16.msra.mxu0 %v1535
      %1552 = vmatmul.bf16.gmra.mxu0 %v1335
      %v1553 = vpop.f32.mrf.mxu0
      %v1554 = vadd.f32 0.0, %v1553
      %v1555 = vpop.f32.mrf.mxu0
      %v1556 = vadd.f32 0.0, %v1555
      %1557 = vmatmul.bf16.gmra.mxu0 %v1338
      %v1558 = vpop.f32.mrf.mxu0
      %v1559 = vadd.f32 0.0, %v1558
      %v1560 = vpop.f32.mrf.mxu0
      %v1561 = vadd.f32 0.0, %v1560
      %1562 = vmatmul.bf16.gmra.mxu0 %v1341
      %v1563 = vpop.f32.mrf.mxu0
      %v1564 = vadd.f32 0.0, %v1563
      %v1565 = vpop.f32.mrf.mxu0
      %v1566 = vadd.f32 0.0, %v1565
      %1567 = vmatmul.bf16.gmra.mxu0 %v1344
      %v1568 = vpop.f32.mrf.mxu0
      %v1569 = vadd.f32 0.0, %v1568
      %v1570 = vpop.f32.mrf.mxu0
      %v1571 = vadd.f32 0.0, %v1570
      %1572 = vmatmul.bf16.gmra.mxu0 %v1347
      %v1573 = vpop.f32.mrf.mxu0
      %v1574 = vadd.f32 0.0, %v1573
      %v1575 = vpop.f32.mrf.mxu0
      %v1576 = vadd.f32 0.0, %v1575
      %1577 = vmatmul.bf16.gmra.mxu0 %v1350
      %v1578 = vpop.f32.mrf.mxu0
      %v1579 = vadd.f32 0.0, %v1578
      %v1580 = vpop.f32.mrf.mxu0
      %v1581 = vadd.f32 0.0, %v1580
      %1582 = vmatmul.bf16.gmra.mxu0 %v1446
      %v1583 = vpop.f32.mrf.mxu0
      %v1584 = vadd.f32 0.0, %v1583
      %v1585 = vpop.f32.mrf.mxu0
      %v1586 = vadd.f32 0.0, %v1585
      %1587 = vmatmul.bf16.gmra.mxu0 %v1542
      %v1588 = vpop.f32.mrf.mxu0
      %v1589 = vadd.f32 0.0, %v1588
      %v1590 = vpop.f32.mrf.mxu0
      %v1591 = vadd.f32 0.0, %v1590
      %1592 = vdwg.mxu0
      %v1593 = vadd.f32 %v1497, %v1554
      %v1594 = vadd.f32 %v1498, %v1556
      %v1595 = vadd.f32 %v1499, %v1559
      %v1596 = vadd.f32 %v1500, %v1561
      %v1597 = vadd.f32 %v1501, %v1564
      %v1598 = vadd.f32 %v1502, %v1566
      %v1599 = vadd.f32 %v1503, %v1569
      %v1600 = vadd.f32 %v1504, %v1571
      %v1601 = vadd.f32 %v1505, %v1574
      %v1602 = vadd.f32 %v1506, %v1576
      %v1603 = vadd.f32 %v1507, %v1579
      %v1604 = vadd.f32 %v1508, %v1581
      %v1605 = vadd.f32 %v1509, %v1584
      %v1606 = vadd.f32 %v1510, %v1586
      %v1607 = vadd.f32 %v1511, %v1589
      %v1608 = vadd.f32 %v1512, %v1591
      %p1609 = scmp.eq.s32.totalorder %s22, 0
      %p1610 = scmp.eq.s32.totalorder %s23, 0
      %p1611 = pnand %p1609, %p1610
      %p1612 = pneg %p1611
      // Predicated region
      $region41: #{frru_forward.2} parent=39 // pred_check
        _
      $region42: #{frru_forward.2} parent=39 // pred_check_branch
        %1614 = sbr.rel (%p1611) target = $region44
      $region43: #{frru_forward.2} parent=39 // pred_region
        %vm1615 = vcmask 253952
        %1616 = vst.msk [vmem:[#allocation2] sm:$0x1] %vm1615, 0.0
        %1617 = vst.msk [vmem:[#allocation3] sm:$0x1] %vm1615, 0.0
      $region44: #{frru_forward.2} parent=39 // pred_fallthru
        _
      // Predicated region
      $region45: #{frru_forward.2} parent=39 // pred_check
        %p1618 = pneg %p1609
      $region46: #{frru_forward.2} parent=39 // pred_check_branch
        %1620 = sbr.rel (%p1618) target = $region48
      $region47: #{frru_forward.2} parent=39 // pred_region
        %v1621 = vld [vmem:[#allocation2] sm:$0x1]
        %vm1622 = vcmask 261120
        %v1623 = vsel %vm1622, %v1593, 0.0
        %v1624 = vsel %vm1622, %v1594, 0.0
        %v1625 = vadd.f32 %v1623, %v1624
        %v1626 = vsel %vm1622, %v1595, 0.0
        %v1627 = vadd.f32 %v1625, %v1626
        %v1628 = vsel %vm1622, %v1596, 0.0
        %v1629 = vadd.f32 %v1627, %v1628
        %v1630 = vsel %vm1622, %v1597, 0.0
        %v1631 = vadd.f32 %v1629, %v1630
        %v1632 = vsel %vm1622, %v1598, 0.0
        %v1633 = vadd.f32 %v1631, %v1632
        %v1634 = vsel %vm1622, %v1599, 0.0
        %v1635 = vadd.f32 %v1633, %v1634
        %v1636 = vsel %vm1622, %v1600, 0.0
        %v1637 = vadd.f32 %v1635, %v1636
        %v1638 = vsel %vm1622, %v1601, 0.0
        %v1639 = vadd.f32 %v1637, %v1638
        %v1640 = vsel %vm1622, %v1602, 0.0
        %v1641 = vadd.f32 %v1639, %v1640
        %v1642 = vsel %vm1622, %v1603, 0.0
        %v1643 = vadd.f32 %v1641, %v1642
        %v1644 = vsel %vm1622, %v1604, 0.0
        %v1645 = vadd.f32 %v1643, %v1644
        %v1646 = vsel %vm1622, %v1605, 0.0
        %v1647 = vadd.f32 %v1645, %v1646
        %v1648 = vsel %vm1622, %v1606, 0.0
        %v1649 = vadd.f32 %v1647, %v1648
        %v1650 = vsel %vm1622, %v1607, 0.0
        %v1651 = vadd.f32 %v1649, %v1650
        %v1652 = vsel %vm1622, %v1608, 0.0
        %v1653 = vadd.f32 %v1651, %v1652
        %v1654 = vrot.slane %v1653, 4
        %v1655 = vadd.f32 %v1653, %v1654
        %v1656 = vrot.slane %v1655, 2
        %v1657 = vadd.f32 %v1655, %v1656
        %v1658 = vrot.slane %v1657, 1
        %v1659 = vadd.f32 %v1657, %v1658
        %v1660 = vadd.f32 %v1621, %v1659
        %vm1661 = vcmask 253952
        %1662 = vst.msk [vmem:[#allocation2] sm:$0x1] %vm1661, %v1660
        %v1663 = vld [vmem:[#allocation3] sm:$0x1]
        %v1664 = vmul.f32 %v1593, %v1593
        %v1665 = vmul.f32 %v1594, %v1594
        %v1666 = vmul.f32 %v1595, %v1595
        %v1667 = vmul.f32 %v1596, %v1596
        %v1668 = vmul.f32 %v1597, %v1597
        %v1669 = vmul.f32 %v1598, %v1598
        %v1670 = vmul.f32 %v1599, %v1599
        %v1671 = vmul.f32 %v1600, %v1600
        %v1672 = vmul.f32 %v1601, %v1601
        %v1673 = vmul.f32 %v1602, %v1602
        %v1674 = vmul.f32 %v1603, %v1603
        %v1675 = vmul.f32 %v1604, %v1604
        %v1676 = vmul.f32 %v1605, %v1605
        %v1677 = vmul.f32 %v1606, %v1606
        %v1678 = vmul.f32 %v1607, %v1607
        %v1679 = vmul.f32 %v1608, %v1608
        %v1680 = vsel %vm1622, %v1664, 0.0
        %v1681 = vsel %vm1622, %v1665, 0.0
        %v1682 = vadd.f32 %v1680, %v1681
        %v1683 = vsel %vm1622, %v1666, 0.0
        %v1684 = vadd.f32 %v1682, %v1683
        %v1685 = vsel %vm1622, %v1667, 0.0
        %v1686 = vadd.f32 %v1684, %v1685
        %v1687 = vsel %vm1622, %v1668, 0.0
        %v1688 = vadd.f32 %v1686, %v1687
        %v1689 = vsel %vm1622, %v1669, 0.0
        %v1690 = vadd.f32 %v1688, %v1689
        %v1691 = vsel %vm1622, %v1670, 0.0
        %v1692 = vadd.f32 %v1690, %v1691
        %v1693 = vsel %vm1622, %v1671, 0.0
        %v1694 = vadd.f32 %v1692, %v1693
        %v1695 = vsel %vm1622, %v1672, 0.0
        %v1696 = vadd.f32 %v1694, %v1695
        %v1697 = vsel %vm1622, %v1673, 0.0
        %v1698 = vadd.f32 %v1696, %v1697
        %v1699 = vsel %vm1622, %v1674, 0.0
        %v1700 = vadd.f32 %v1698, %v1699
        %v1701 = vsel %vm1622, %v1675, 0.0
        %v1702 = vadd.f32 %v1700, %v1701
        %v1703 = vsel %vm1622, %v1676, 0.0
        %v1704 = vadd.f32 %v1702, %v1703
        %v1705 = vsel %vm1622, %v1677, 0.0
        %v1706 = vadd.f32 %v1704, %v1705
        %v1707 = vsel %vm1622, %v1678, 0.0
        %v1708 = vadd.f32 %v1706, %v1707
        %v1709 = vsel %vm1622, %v1679, 0.0
        %v1710 = vadd.f32 %v1708, %v1709
        %v1711 = vrot.slane %v1710, 4
        %v1712 = vadd.f32 %v1710, %v1711
        %v1713 = vrot.slane %v1712, 2
        %v1714 = vadd.f32 %v1712, %v1713
        %v1715 = vrot.slane %v1714, 1
        %v1716 = vadd.f32 %v1714, %v1715
        %v1717 = vadd.f32 %v1663, %v1716
        %1718 = vst.msk [vmem:[#allocation3] sm:$0x1] %vm1661, %v1717
      $region48: #{frru_forward.2} parent=39 // pred_fallthru
        _
      %p1719 = scmp.eq.s32.totalorder %s23, 1
      %p1720 = pnand %p1609, %p1719
      %p1721 = pneg %p1720
      // Predicated region
      $region49: #{frru_forward.2} parent=39 // pred_check
        _
      $region50: #{frru_forward.2} parent=39 // pred_check_branch
        %1723 = sbr.rel (%p1720) target = $region52
      $region51: #{frru_forward.2} parent=39 // pred_region
        %v1724 = vld [vmem:[#allocation2] sm:$0x1]
        %v1725 = vld [vmem:[%s3] sm:$0xff]
        %v1726 = vld [vmem:[%s3 + $0x8] sm:$0xff]
        %v1727 = vld [vmem:[%s3 + $0x10] sm:$0xff]
        %v1728 = vld [vmem:[%s3 + $0x18] sm:$0xff]
        %vm1729 = vcmask 261120
        %v1731 = vsel %vm1729, %v1724, 0
        %1733 = vmatpush.msra.mxu0 0.0
        %1734 = vmatpush.msra.mxu0 0.0
        %1735 = vmatpush.msra.mxu0 0.0
        %1736 = vmatpush.msra.mxu0 0.0
        %1737 = vmatpush.msra.mxu0 0.0
        %1738 = vmatpush.msra.mxu0 0.0
        %1739 = vmatpush.msra.mxu0 0.0
        %1740 = vmatpush.msra.mxu0 0.0
        %1741 = vmatpush.msra.mxu0 0.0
        %1742 = vmatpush.msra.mxu0 0.0
        %1743 = vmatpush.msra.mxu0 0.0
        %1744 = vmatpush.msra.mxu0 0.0
        %1745 = vmatpush.msra.mxu0 %v1728
        %1746 = vmatpush.msra.mxu0 %v1727
        %1747 = vmatpush.msra.mxu0 %v1726
        %1748 = vmatpush.msra.mxu0 %v1725
        %1749 = vmatmul.f32.gmra.mxu0 %v1731
        %v1750 = vpop.f32.mrf.mxu0
        %v1751 = vadd.f32 0.0, %v1750
        %1752 = vdwg.mxu0
        %v1753 = vld [vmem:[#allocation3] sm:$0x1]
        %v1755 = vsel %vm1729, %v1753, 0
        %1757 = vmatpush.msra.mxu0 0.0
        %1758 = vmatpush.msra.mxu0 0.0
        %1759 = vmatpush.msra.mxu0 0.0
        %1760 = vmatpush.msra.mxu0 0.0
        %1761 = vmatpush.msra.mxu0 0.0
        %1762 = vmatpush.msra.mxu0 0.0
        %1763 = vmatpush.msra.mxu0 0.0
        %1764 = vmatpush.msra.mxu0 0.0
        %1765 = vmatpush.msra.mxu0 0.0
        %1766 = vmatpush.msra.mxu0 0.0
        %1767 = vmatpush.msra.mxu0 0.0
        %1768 = vmatpush.msra.mxu0 0.0
        %1769 = vmatpush.msra.mxu0 %v1728
        %1770 = vmatpush.msra.mxu0 %v1727
        %1771 = vmatpush.msra.mxu0 %v1726
        %1772 = vmatpush.msra.mxu0 %v1725
        %1773 = vmatmul.f32.gmra.mxu0 %v1755
        %v1774 = vpop.f32.mrf.mxu0
        %v1775 = vadd.f32 0.0, %v1774
        %1776 = vdwg.mxu0
        %v1777 = vmul.f32 %v1751, %v1751
        %v1778 = vsub.f32 %v1775, %v1777
        %v1779 = vadd.f32 %v1778, 1e-05
        %v1780 = vrsqrt.pop %v1779
        %v1781 = vmul.f32 %v1780, %v1779
        %v1782 = vmul.f32 %v1781, %v1780
        %v1783 = vmul.f32 0.5, %v1782
        %v1784 = vsub.f32 1.5, %v1783
        %v1785 = vmul.f32 %v1780, %v1784
        %vm1786 = vweird.f32 %v1779
        %vm1787 = vweird.f32 %v1780
        %vm1788 = vmor %vm1786, %vm1787
        %v1789 = vsel %vm1788, %v1780, %v1785
        %v1790 = vld [vmem:[%s4] sm:$0xff]
        %v1791 = vld [vmem:[%s4 + $0x8] sm:$0xff]
        %vm1792 = vcmask 130048
        %v1794 = vsel %vm1792, %v1751, 0
        %1796 = vmatpush.msra.mxu0 0.0
        %1797 = vmatpush.msra.mxu0 0.0
        %1798 = vmatpush.msra.mxu0 0.0
        %1799 = vmatpush.msra.mxu0 0.0
        %1800 = vmatpush.msra.mxu0 0.0
        %1801 = vmatpush.msra.mxu0 0.0
        %1802 = vmatpush.msra.mxu0 0.0
        %1803 = vmatpush.msra.mxu0 0.0
        %1804 = vmatpush.msra.mxu0 0.0
        %1805 = vmatpush.msra.mxu0 0.0
        %1806 = vmatpush.msra.mxu0 0.0
        %1807 = vmatpush.msra.mxu0 0.0
        %1808 = vmatpush.msra.mxu0 0.0
        %1809 = vmatpush.msra.mxu0 0.0
        %1810 = vmatpush.msra.mxu0 %v1791
        %1811 = vmatpush.msra.mxu0 %v1790
        %1812 = vmatmul.f32.gmra.mxu0 %v1794
        %v1813 = vpop.f32.mrf.mxu0
        %v1814 = vadd.f32 0.0, %v1813
        %1815 = vdwg.mxu0
        %v1817 = vsel %vm1792, %v1789, 0
        %1819 = vmatpush.msra.mxu0 0.0
        %1820 = vmatpush.msra.mxu0 0.0
        %1821 = vmatpush.msra.mxu0 0.0
        %1822 = vmatpush.msra.mxu0 0.0
        %1823 = vmatpush.msra.mxu0 0.0
        %1824 = vmatpush.msra.mxu0 0.0
        %1825 = vmatpush.msra.mxu0 0.0
        %1826 = vmatpush.msra.mxu0 0.0
        %1827 = vmatpush.msra.mxu0 0.0
        %1828 = vmatpush.msra.mxu0 0.0
        %1829 = vmatpush.msra.mxu0 0.0
        %1830 = vmatpush.msra.mxu0 0.0
        %1831 = vmatpush.msra.mxu0 0.0
        %1832 = vmatpush.msra.mxu0 0.0
        %1833 = vmatpush.msra.mxu0 %v1791
        %1834 = vmatpush.msra.mxu0 %v1790
        %1835 = vmatmul.f32.gmra.mxu0 %v1817
        %v1836 = vpop.f32.mrf.mxu0
        %v1837 = vadd.f32 0.0, %v1836
        %1838 = vdwg.mxu0
        %v1839 = vld [vmem:[%s2] sm:$0x1]
        %v1840 = vld [vmem:[%s2 + $0x1] sm:$0x1]
        %v1841 = vmul.f32 %v1839, %v1837
        %vm1842 = vcmask 253952
        %1843 = vst.msk [vmem:[#allocation4] sm:$0x1] %vm1842, %v1841
        %v1844 = vmul.f32 %v1814, %v1841
        %v1845 = vsub.f32 %v1840, %v1844
        %1846 = vst.msk [vmem:[#allocation5] sm:$0x1] %vm1842, %v1845
      $region52: #{frru_forward.2} parent=39 // pred_fallthru
        _
      %p1847 = scmp.eq.s32.totalorder %s22, 1
      // Predicated region
      $region53: #{frru_forward.2} parent=39 // pred_check
        %p1848 = pneg %p1847
      $region54: #{frru_forward.2} parent=39 // pred_check_branch
        %1850 = sbr.rel (%p1848) target = $region56
      $region55: #{frru_forward.2} parent=39 // pred_region
        %v1851 = vld [vmem:[#allocation4] sm:$0x1]
        %v1853 = vperm.slane %v1851, 0
        %v1855 = vmul.f32 %v1593, %v1853
        %v1856 = vmul.f32 %v1594, %v1853
        %v1857 = vmul.f32 %v1595, %v1853
        %v1858 = vmul.f32 %v1596, %v1853
        %v1859 = vmul.f32 %v1597, %v1853
        %v1860 = vmul.f32 %v1598, %v1853
        %v1861 = vmul.f32 %v1599, %v1853
        %v1862 = vmul.f32 %v1600, %v1853
        %v1863 = vmul.f32 %v1601, %v1853
        %v1864 = vmul.f32 %v1602, %v1853
        %v1865 = vmul.f32 %v1603, %v1853
        %v1866 = vmul.f32 %v1604, %v1853
        %v1867 = vmul.f32 %v1605, %v1853
        %v1868 = vmul.f32 %v1606, %v1853
        %v1869 = vmul.f32 %v1607, %v1853
        %v1870 = vmul.f32 %v1608, %v1853
        %v1871 = vld [vmem:[#allocation5] sm:$0x1]
        %v1873 = vperm.slane %v1871, 0
        %v1875 = vadd.f32 %v1855, %v1873
        %v1876 = vadd.f32 %v1856, %v1873
        %v1877 = vadd.f32 %v1857, %v1873
        %v1878 = vadd.f32 %v1858, %v1873
        %v1879 = vadd.f32 %v1859, %v1873
        %v1880 = vadd.f32 %v1860, %v1873
        %v1881 = vadd.f32 %v1861, %v1873
        %v1882 = vadd.f32 %v1862, %v1873
        %v1883 = vadd.f32 %v1863, %v1873
        %v1884 = vadd.f32 %v1864, %v1873
        %v1885 = vadd.f32 %v1865, %v1873
        %v1886 = vadd.f32 %v1866, %v1873
        %v1887 = vadd.f32 %v1867, %v1873
        %v1888 = vadd.f32 %v1868, %v1873
        %v1889 = vadd.f32 %v1869, %v1873
        %v1890 = vadd.f32 %v1870, %v1873
        %v1891 = vmax.f32 %v1875, 0.0
        %v1892 = vmax.f32 %v1876, 0.0
        %v1893 = vmax.f32 %v1877, 0.0
        %v1894 = vmax.f32 %v1878, 0.0
        %v1895 = vmax.f32 %v1879, 0.0
        %v1896 = vmax.f32 %v1880, 0.0
        %v1897 = vmax.f32 %v1881, 0.0
        %v1898 = vmax.f32 %v1882, 0.0
        %v1899 = vmax.f32 %v1883, 0.0
        %v1900 = vmax.f32 %v1884, 0.0
        %v1901 = vmax.f32 %v1885, 0.0
        %v1902 = vmax.f32 %v1886, 0.0
        %v1903 = vmax.f32 %v1887, 0.0
        %v1904 = vmax.f32 %v1888, 0.0
        %v1905 = vmax.f32 %v1889, 0.0
        %v1906 = vmax.f32 %v1890, 0.0
        %v1907 = vpack.c.bf16 %v1891, %v1891
        %v1908 = vpack.c.bf16 %v1892, %v1892
        %v1909 = vpack.c.bf16 %v1893, %v1893
        %v1910 = vpack.c.bf16 %v1894, %v1894
        %v1911 = vpack.c.bf16 %v1895, %v1895
        %v1912 = vpack.c.bf16 %v1896, %v1896
        %v1913 = vpack.c.bf16 %v1897, %v1897
        %v1914 = vpack.c.bf16 %v1898, %v1898
        %v1915 = vpack.c.bf16 %v1899, %v1899
        %v1916 = vpack.c.bf16 %v1900, %v1900
        %v1917 = vpack.c.bf16 %v1901, %v1901
        %v1918 = vpack.c.bf16 %v1902, %v1902
        %v1919 = vpack.c.bf16 %v1903, %v1903
        %v1920 = vpack.c.bf16 %v1904, %v1904
        %v1921 = vpack.c.bf16 %v1905, %v1905
        %v1922 = vpack.c.bf16 %v1906, %v1906
        %vm1923 = vcmask 257024
        %1924 = vst.msk [vmem:[%s271] sm:$0xf] %vm1923, %v1907
        %1925 = vst.msk [vmem:[%s271 + $0x4] sm:$0xf] %vm1923, %v1908
        %1926 = vst.msk [vmem:[%s271 + $0x8] sm:$0xf] %vm1923, %v1909
        %1927 = vst.msk [vmem:[%s271 + $0xc] sm:$0xf] %vm1923, %v1910
        %1928 = vst.msk [vmem:[%s271 + $0x10] sm:$0xf] %vm1923, %v1911
        %1929 = vst.msk [vmem:[%s271 + $0x14] sm:$0xf] %vm1923, %v1912
        %1930 = vst.msk [vmem:[%s271 + $0x18] sm:$0xf] %vm1923, %v1913
        %1931 = vst.msk [vmem:[%s271 + $0x1c] sm:$0xf] %vm1923, %v1914
        %1932 = vst.msk [vmem:[%s271 + $0x20] sm:$0xf] %vm1923, %v1915
        %1933 = vst.msk [vmem:[%s271 + $0x24] sm:$0xf] %vm1923, %v1916
        %1934 = vst.msk [vmem:[%s271 + $0x28] sm:$0xf] %vm1923, %v1917
        %1935 = vst.msk [vmem:[%s271 + $0x2c] sm:$0xf] %vm1923, %v1918
        %1936 = vst.msk [vmem:[%s271 + $0x30] sm:$0xf] %vm1923, %v1919
        %1937 = vst.msk [vmem:[%s271 + $0x34] sm:$0xf] %vm1923, %v1920
        %1938 = vst.msk [vmem:[%s271 + $0x38] sm:$0xf] %vm1923, %v1921
        %1939 = vst.msk [vmem:[%s271 + $0x3c] sm:$0xf] %vm1923, %v1922
      $region56: #{frru_forward.2} parent=39 // pred_fallthru
        _
      %s1940 = smul.u32 %s23, %s22
      %s1941 = smul.u32 16, %s1940
      %p1942 = scmp.lt.s32.totalorder %s21, 1
      %s1943 = scalar_select %p1942, %s21, 1
      %p1944 = scmp.lt.s32.totalorder %s1941, 31
      %s1945 = scalar_select %p1944, %s1941, 31
      %s1946 = smul.addr %s1943, 32
      %s1947 = sadd.s32 %s1945, %s1946
      %s1948 = smul.addr %s1947, 4
      %s1949 = scalar_lea.vmem %s5, %s1948
      // Predicated region
      $region57: #{frru_forward.2} parent=39 // pred_check
        %p1950 = pneg %p171
      $region58: #{frru_forward.2} parent=39 // pred_check_branch
        %1952 = sbr.rel (%p1950) target = $region60
      $region59: #{frru_forward.2} parent=39 // pred_region
        %s1953 = smul.u32 %s23, %s22
        %s1954 = smul.u32 16, %s1953
      $region60: #{frru_forward.2} parent=39 // pred_fallthru
        _
    $region40: #{frru_forward.2} parent=5 // pred_fallthru
      _
    %p1955 = scmp.le.s32.totalorder 2, %s11
    // Predicated region
    $region61: #{frru_forward.2} parent=5 // pred_check
      %p1956 = pneg %p1955
    $region62: #{frru_forward.2} parent=5 // pred_check_branch
      %1958 = sbr.rel (%p1956) target = $region64
    $region63: #{frru_forward.2} parent=5 // pred_region
      %s1959 = ssub.s32 %s11, 2
      // Predicated region
      $region65: #{frru_forward.2} parent=63 // pred_check
        %p1960 = pneg %p177
      $region66: #{frru_forward.2} parent=63 // pred_check_branch
        %1962 = sbr.rel (%p1960) target = $region68
      $region67: #{frru_forward.2} parent=63 // pred_region
        %s1963 = smul.u32 %s26, %s25
        %s1964 = smul.u32 16, %s1963
        %p1965 = scmp.lt.s32.totalorder %s24, 1
        %s1966 = scalar_select %p1965, %s24, 1
        %p1967 = scmp.lt.s32.totalorder %s1964, 31
        %s1968 = scalar_select %p1967, %s1964, 31
        %s1969 = smul.addr %s1966, 32
        %s1970 = sadd.s32 %s1968, %s1969
        %s1971 = smul.addr %s1970, 4
        %s1972 = scalar_lea.vmem %s5, %s1971
      $region68: #{frru_forward.2} parent=63 // pred_fallthru
        _
    $region64: #{frru_forward.2} parent=5 // pred_fallthru
      _
  $region6: #{frru_forward.2} parent=0 // loop_footer
    %s15 = sadd.s32 1, %s11
  $region7: #{frru_forward.2} parent=0 // loop_footer_branch
    %10 = sbr.rel target = $region3
  $region8: #{frru_forward.2} parent=0 // loop_exit
    _

// kernel: frru_forward.3
$region0: #{frru_forward.3}
  #allocation0 [shape = 'u32[]', space=smem, size = 0x4, offset = 0x4, fixed_abs, tag = 'smem constant byte address 0x4 - core index']
  #allocation1 [shape = 'u32[72,128]{1,0:T(1,128)}', space=vmem, size = 0x9000, scoped, tag = 'internal scratch']
  #allocation2 [shape = 'f32[1,32]{1,0:T(1,128)}', space=vmem, size = 0x200, scoped, tag = 'scratch operand']
  #allocation3 [shape = 'f32[1,32]{1,0:T(1,128)}', space=vmem, size = 0x200, scoped, tag = 'scratch operand']
  #allocation4 [shape = 'f32[1,32]{1,0:T(1,128)}', space=vmem, size = 0x200, scoped, tag = 'scratch operand']
  #allocation5 [shape = 'f32[1,32]{1,0:T(1,128)}', space=vmem, size = 0x200, scoped, tag = 'scratch operand']
  %s0 = inlined_call_operand.vmem [shape: bf16[4,10,18,32], index: 0, kind: input, shape index: {}]
  %s1 = inlined_call_operand.vmem [shape: bf16[9,32,32], index: 1, kind: input, shape index: {}]
  %s2 = inlined_call_operand.vmem [shape: f32[2,32], index: 2, kind: input, shape index: {}]
  %s3 = inlined_call_operand.vmem [shape: f32[32,16], index: 3, kind: input, shape index: {}]
  %s4 = inlined_call_operand.vmem [shape: f32[16,32], index: 4, kind: input, shape index: {}]
  %s5 = inlined_call_operand.vmem [shape: bf16[32,32], index: 5, kind: input, shape index: {}]
  %s6 = inlined_call_operand.vmem [shape: f32[1,32], index: 6, kind: input, shape index: {}]
  %s7 = inlined_call_operand.vmem [shape: bf16[2,256,32], index: 7, kind: output, shape index: {0}]
  %s8 = inlined_call_operand.vmem [shape: bf16[2,256,32], index: 8, kind: output, shape index: {1}]
  %9 = xla_tuple %s7, %s8
  %s10 = sld [smem:[#allocation0]]
  $region85: #{frru_forward.3} parent=0
    _
  %s12 = ssub.s32 1, %s10
  %s13 = scalar_select 0, %s12, %s10
  loop: start=0, step=1, limit=10
  $region2: #{frru_forward.3} parent=0 // loop_pre_header
    _
  $region3: #{frru_forward.3} parent=0 // loop_header
    %s15 = sphi 0, %s19
    %p16 = scmp.ge.s32.totalorder %s15, 10
    %s22 = sphi 0, %s41
    %s23 = sphi 0, %s37
    %s24 = sphi 0, %s33
    %s25 = sphi 0, %s22
    %s26 = sphi 0, %s23
    %s27 = sphi 0, %s24
    %s28 = sphi 0, %s25
    %s29 = sphi 0, %s26
    %s30 = sphi 0, %s27
    %s48 = sphi 0, %s50
    %s51 = sphi 0, %s48
    %s52 = sphi 0, %s51
    %s68 = sphi 0, %s52
    %s72 = sphi 0, %s72
    %s74 = sphi 0, %s72
    %s75 = sphi 0, %s74
    %s89 = sphi 0, %s75
    %s93 = sphi 0, %s93
    %s95 = sphi 0, %s93
    %s96 = sphi 0, %s95
    %s110 = sphi 0, %s96
    %s114 = sphi 0, %s114
    %s116 = sphi 0, %s114
    %s117 = sphi 0, %s116
    %s131 = sphi 0, %s117
    %s135 = sphi 0, %s135
    %s137 = sphi 0, %s135
    %s138 = sphi 0, %s137
    %s152 = sphi 0, %s138
    %s156 = sphi 0, %s156
    %s158 = sphi 0, %s156
    %s159 = sphi 0, %s158
    %s173 = sphi 0, %s159
    %s177 = sphi 0, %s177
    %s179 = sphi 0, %s177
    %s180 = sphi 0, %s179
    %s194 = sphi 0, %s180
    %s204 = sphi 0, %s206
    %s207 = sphi 0, %s204
    %s208 = sphi 0, %s207
    %s224 = sphi 0, %s208
    %s234 = sphi 0, %s236
    %s237 = sphi 0, %s234
    %s238 = sphi 0, %s237
    %s254 = sphi 0, %s238
  $region4: #{frru_forward.3} parent=0 // loop_header_branch
    %18 = sbr.rel (%p16) target = $region8
  $region5: #{frru_forward.3} parent=0 // loop_body
    %s20 = ssub.s32 %s15, 1
    %s21 = ssub.s32 %s15, 2
    %s31 = sadd.s32 1, %s24
    %p32 = scmp.ge.s32.totalorder %s31, 2
    %s33 = scalar_select %p32, 0, %s31
    %s34 = sadd.s32 1, %s23
    %s35 = scalar_select %p32, %s34, %s23
    %p36 = scmp.ge.s32.totalorder %s35, 2
    %s37 = scalar_select %p36, 0, %s35
    %s38 = sadd.s32 1, %s22
    %s39 = scalar_select %p36, %s38, %s22
    %p40 = scmp.ge.s32.totalorder %s39, 2
    %s41 = scalar_select %p40, 0, %s39
    %s42 = smul.u32 %s22, 2
    %s43 = sadd.s32 %s42, %s24
    %s44 = smul.u32 %s41, 2
    %s45 = sadd.s32 %s44, %s33
    %s46 = ssub.s32 %s43, %s45
    %p47 = scmp.eq.s32.totalorder %s46, 0
    %s49 = sadd.s32 %s48, 1
    %s50 = scalar_select %p47, %s48, %s49
    %p53 = pneg %p47
    %p54 = scmp.eq.s32.totalorder %s15, 7
    %p55 = por %p53, %p54
    %p56 = scmp.ne.s32.totalorder %s48, %s51
    %p57 = scmp.eq.s32.totalorder %s15, 0
    %p58 = por %p56, %p57
    %p59 = scmp.ne.s32.totalorder %s48, %s51
    %p60 = scmp.eq.s32.totalorder %s20, 7
    %p61 = por %p59, %p60
    %p62 = scmp.ne.s32.totalorder %s51, %s52
    %p63 = scmp.eq.s32.totalorder %s20, 0
    %p64 = por %p62, %p63
    %p65 = scmp.ne.s32.totalorder %s51, %s52
    %p66 = scmp.eq.s32.totalorder %s21, 7
    %p67 = por %p65, %p66
    %p69 = scmp.ne.s32.totalorder %s52, %s68
    %p70 = scmp.eq.s32.totalorder %s21, 0
    %p71 = por %p69, %p70
    %s73 = sadd.s32 %s72, 1
    %p76 = scmp.eq.s32.totalorder %s15, 7
    %p77 = scmp.ne.s32.totalorder %s72, %s74
    %p78 = scmp.eq.s32.totalorder %s15, 0
    %p79 = por %p77, %p78
    %p80 = scmp.ne.s32.totalorder %s72, %s74
    %p81 = scmp.eq.s32.totalorder %s20, 7
    %p82 = por %p80, %p81
    %p83 = scmp.ne.s32.totalorder %s74, %s75
    %p84 = scmp.eq.s32.totalorder %s20, 0
    %p85 = por %p83, %p84
    %p86 = scmp.ne.s32.totalorder %s74, %s75
    %p87 = scmp.eq.s32.totalorder %s21, 7
    %p88 = por %p86, %p87
    %p90 = scmp.ne.s32.totalorder %s75, %s89
    %p91 = scmp.eq.s32.totalorder %s21, 0
    %p92 = por %p90, %p91
    %s94 = sadd.s32 %s93, 1
    %p97 = scmp.eq.s32.totalorder %s15, 7
    %p98 = scmp.ne.s32.totalorder %s93, %s95
    %p99 = scmp.eq.s32.totalorder %s15, 0
    %p100 = por %p98, %p99
    %p101 = scmp.ne.s32.totalorder %s93, %s95
    %p102 = scmp.eq.s32.totalorder %s20, 7
    %p103 = por %p101, %p102
    %p104 = scmp.ne.s32.totalorder %s95, %s96
    %p105 = scmp.eq.s32.totalorder %s20, 0
    %p106 = por %p104, %p105
    %p107 = scmp.ne.s32.totalorder %s95, %s96
    %p108 = scmp.eq.s32.totalorder %s21, 7
    %p109 = por %p107, %p108
    %p111 = scmp.ne.s32.totalorder %s96, %s110
    %p112 = scmp.eq.s32.totalorder %s21, 0
    %p113 = por %p111, %p112
    %s115 = sadd.s32 %s114, 1
    %p118 = scmp.eq.s32.totalorder %s15, 7
    %p119 = scmp.ne.s32.totalorder %s114, %s116
    %p120 = scmp.eq.s32.totalorder %s15, 0
    %p121 = por %p119, %p120
    %p122 = scmp.ne.s32.totalorder %s114, %s116
    %p123 = scmp.eq.s32.totalorder %s20, 7
    %p124 = por %p122, %p123
    %p125 = scmp.ne.s32.totalorder %s116, %s117
    %p126 = scmp.eq.s32.totalorder %s20, 0
    %p127 = por %p125, %p126
    %p128 = scmp.ne.s32.totalorder %s116, %s117
    %p129 = scmp.eq.s32.totalorder %s21, 7
    %p130 = por %p128, %p129
    %p132 = scmp.ne.s32.totalorder %s117, %s131
    %p133 = scmp.eq.s32.totalorder %s21, 0
    %p134 = por %p132, %p133
    %s136 = sadd.s32 %s135, 1
    %p139 = scmp.eq.s32.totalorder %s15, 7
    %p140 = scmp.ne.s32.totalorder %s135, %s137
    %p141 = scmp.eq.s32.totalorder %s15, 0
    %p142 = por %p140, %p141
    %p143 = scmp.ne.s32.totalorder %s135, %s137
    %p144 = scmp.eq.s32.totalorder %s20, 7
    %p145 = por %p143, %p144
    %p146 = scmp.ne.s32.totalorder %s137, %s138
    %p147 = scmp.eq.s32.totalorder %s20, 0
    %p148 = por %p146, %p147
    %p149 = scmp.ne.s32.totalorder %s137, %s138
    %p150 = scmp.eq.s32.totalorder %s21, 7
    %p151 = por %p149, %p150
    %p153 = scmp.ne.s32.totalorder %s138, %s152
    %p154 = scmp.eq.s32.totalorder %s21, 0
    %p155 = por %p153, %p154
    %s157 = sadd.s32 %s156, 1
    %p160 = scmp.eq.s32.totalorder %s15, 7
    %p161 = scmp.ne.s32.totalorder %s156, %s158
    %p162 = scmp.eq.s32.totalorder %s15, 0
    %p163 = por %p161, %p162
    %p164 = scmp.ne.s32.totalorder %s156, %s158
    %p165 = scmp.eq.s32.totalorder %s20, 7
    %p166 = por %p164, %p165
    %p167 = scmp.ne.s32.totalorder %s158, %s159
    %p168 = scmp.eq.s32.totalorder %s20, 0
    %p169 = por %p167, %p168
    %p170 = scmp.ne.s32.totalorder %s158, %s159
    %p171 = scmp.eq.s32.totalorder %s21, 7
    %p172 = por %p170, %p171
    %p174 = scmp.ne.s32.totalorder %s159, %s173
    %p175 = scmp.eq.s32.totalorder %s21, 0
    %p176 = por %p174, %p175
    %s178 = sadd.s32 %s177, 1
    %p181 = scmp.eq.s32.totalorder %s15, 7
    %p182 = scmp.ne.s32.totalorder %s177, %s179
    %p183 = scmp.eq.s32.totalorder %s15, 0
    %p184 = por %p182, %p183
    %p185 = scmp.ne.s32.totalorder %s177, %s179
    %p186 = scmp.eq.s32.totalorder %s20, 7
    %p187 = por %p185, %p186
    %p188 = scmp.ne.s32.totalorder %s179, %s180
    %p189 = scmp.eq.s32.totalorder %s20, 0
    %p190 = por %p188, %p189
    %p191 = scmp.ne.s32.totalorder %s179, %s180
    %p192 = scmp.eq.s32.totalorder %s21, 7
    %p193 = por %p191, %p192
    %p195 = scmp.ne.s32.totalorder %s180, %s194
    %p196 = scmp.eq.s32.totalorder %s21, 0
    %p197 = por %p195, %p196
    %s198 = smul.u32 %s24, %s23
    %s199 = smul.u32 %s33, %s37
    %s200 = ssub.s32 %s22, %s41
    %s201 = ssub.s32 %s198, %s199
    %s202 = sor.u32 %s200, %s201
    %p203 = scmp.eq.s32.totalorder %s202, 0
    %s205 = sadd.s32 %s204, 1
    %s206 = scalar_select %p203, %s204, %s205
    %p209 = pneg %p203
    %p210 = scmp.eq.s32.totalorder %s15, 7
    %p211 = por %p209, %p210
    %p212 = scmp.ne.s32.totalorder %s204, %s207
    %p213 = scmp.eq.s32.totalorder %s15, 0
    %p214 = por %p212, %p213
    %p215 = scmp.ne.s32.totalorder %s204, %s207
    %p216 = scmp.eq.s32.totalorder %s20, 7
    %p217 = por %p215, %p216
    %p218 = scmp.ne.s32.totalorder %s207, %s208
    %p219 = scmp.eq.s32.totalorder %s20, 0
    %p220 = por %p218, %p219
    %p221 = scmp.ne.s32.totalorder %s207, %s208
    %p222 = scmp.eq.s32.totalorder %s21, 7
    %p223 = por %p221, %p222
    %p225 = scmp.ne.s32.totalorder %s208, %s224
    %p226 = scmp.eq.s32.totalorder %s21, 0
    %p227 = por %p225, %p226
    %s228 = smul.u32 %s24, %s23
    %s229 = smul.u32 %s33, %s37
    %s230 = ssub.s32 %s22, %s41
    %s231 = ssub.s32 %s228, %s229
    %s232 = sor.u32 %s230, %s231
    %p233 = scmp.eq.s32.totalorder %s232, 0
    %s235 = sadd.s32 %s234, 1
    %s236 = scalar_select %p233, %s234, %s235
    %p239 = pneg %p233
    %p240 = scmp.eq.s32.totalorder %s15, 7
    %p241 = por %p239, %p240
    %p242 = scmp.ne.s32.totalorder %s234, %s237
    %p243 = scmp.eq.s32.totalorder %s15, 0
    %p244 = por %p242, %p243
    %p245 = scmp.ne.s32.totalorder %s234, %s237
    %p246 = scmp.eq.s32.totalorder %s20, 7
    %p247 = por %p245, %p246
    %p248 = scmp.ne.s32.totalorder %s237, %s238
    %p249 = scmp.eq.s32.totalorder %s20, 0
    %p250 = por %p248, %p249
    %p251 = scmp.ne.s32.totalorder %s237, %s238
    %p252 = scmp.eq.s32.totalorder %s21, 7
    %p253 = por %p251, %p252
    %p255 = scmp.ne.s32.totalorder %s238, %s254
    %p256 = scmp.eq.s32.totalorder %s21, 0
    %p257 = por %p255, %p256
    %p258 = scmp.le.s32.totalorder 1, %s15
    %p259 = scmp.lt.s32.totalorder %s15, 9
    %p260 = pnand %p258, %p259
    %p261 = pneg %p260
    // Predicated region
    $region9: #{frru_forward.3} parent=5 // pred_check
      _
    $region10: #{frru_forward.3} parent=5 // pred_check_branch
      %263 = sbr.rel (%p260) target = $region12
    $region11: #{frru_forward.3} parent=5 // pred_region
      %s264 = ssub.s32 %s15, 1
      // Predicated region
      $region13: #{frru_forward.3} parent=11 // pred_check
        %p265 = pneg %p85
      $region14: #{frru_forward.3} parent=11 // pred_check_branch
        %267 = sbr.rel (%p265) target = $region16
      $region15: #{frru_forward.3} parent=11 // pred_region
        _
      $region16: #{frru_forward.3} parent=11 // pred_fallthru
        _
      // Predicated region
      $region17: #{frru_forward.3} parent=11 // pred_check
        %p268 = pneg %p106
      $region18: #{frru_forward.3} parent=11 // pred_check_branch
        %270 = sbr.rel (%p268) target = $region20
      $region19: #{frru_forward.3} parent=11 // pred_region
        _
      $region20: #{frru_forward.3} parent=11 // pred_fallthru
        _
      // Predicated region
      $region21: #{frru_forward.3} parent=11 // pred_check
        %p271 = pneg %p127
      $region22: #{frru_forward.3} parent=11 // pred_check_branch
        %273 = sbr.rel (%p271) target = $region24
      $region23: #{frru_forward.3} parent=11 // pred_region
        _
      $region24: #{frru_forward.3} parent=11 // pred_fallthru
        _
      // Predicated region
      $region25: #{frru_forward.3} parent=11 // pred_check
        %p274 = pneg %p148
      $region26: #{frru_forward.3} parent=11 // pred_check_branch
        %276 = sbr.rel (%p274) target = $region28
      $region27: #{frru_forward.3} parent=11 // pred_region
        _
      $region28: #{frru_forward.3} parent=11 // pred_fallthru
        _
      // Predicated region
      $region29: #{frru_forward.3} parent=11 // pred_check
        %p277 = pneg %p169
      $region30: #{frru_forward.3} parent=11 // pred_check_branch
        %279 = sbr.rel (%p277) target = $region32
      $region31: #{frru_forward.3} parent=11 // pred_region
        _
      $region32: #{frru_forward.3} parent=11 // pred_fallthru
        _
      // Predicated region
      $region33: #{frru_forward.3} parent=11 // pred_check
        %p280 = pneg %p190
      $region34: #{frru_forward.3} parent=11 // pred_check_branch
        %282 = sbr.rel (%p280) target = $region36
      $region35: #{frru_forward.3} parent=11 // pred_region
        _
      $region36: #{frru_forward.3} parent=11 // pred_fallthru
        _
    $region12: #{frru_forward.3} parent=5 // pred_fallthru
      _
    %p283 = scmp.lt.s32.totalorder %s15, 8
    // Predicated region
    $region37: #{frru_forward.3} parent=5 // pred_check
      %p284 = pneg %p283
    $region38: #{frru_forward.3} parent=5 // pred_check_branch
      %286 = sbr.rel (%p284) target = $region40
    $region39: #{frru_forward.3} parent=5 // pred_region
      // Predicated region
      $region41: #{frru_forward.3} parent=39 // pred_check
        %p287 = pneg %p58
      $region42: #{frru_forward.3} parent=39 // pred_check_branch
        %289 = sbr.rel (%p287) target = $region44
      $region43: #{frru_forward.3} parent=39 // pred_region
        %s290 = smul.u32 %s22, 2
        %s291 = sadd.s32 %s290, %s24
        %p292 = scmp.lt.s32.totalorder %s291, 3
        %s293 = scalar_select %p292, %s291, 3
        %s294 = smul.addr %s293, 30
        %s295 = smul.addr %s294, 4
        %s296 = scalar_lea.vmem %s0, %s295
        %s297 = smul.u32 %s22, 2
        %s298 = sadd.s32 %s297, %s24
      $region44: #{frru_forward.3} parent=39 // pred_fallthru
        _
    $region40: #{frru_forward.3} parent=5 // pred_fallthru
      _
    %p299 = scmp.le.s32.totalorder 1, %s15
    %p300 = scmp.lt.s32.totalorder %s15, 9
    %p301 = pnand %p299, %p300
    %p302 = pneg %p301
    // Predicated region
    $region45: #{frru_forward.3} parent=5 // pred_check
      _
    $region46: #{frru_forward.3} parent=5 // pred_check_branch
      %304 = sbr.rel (%p301) target = $region48
    $region47: #{frru_forward.3} parent=5 // pred_region
      %s305 = ssub.s32 %s15, 1
      %s306 = smul.u32 %s25, 2
      %s307 = sadd.s32 %s306, %s27
      %p308 = scmp.lt.s32.totalorder %s307, 3
      %s309 = scalar_select %p308, %s307, 3
      %s310 = smul.addr %s309, 30
      %s311 = smul.addr %s310, 4
      %s312 = scalar_lea.vmem %s0, %s311
      %p313 = pneg %p64
      %p314 = pneg %p61
      %p315 = pneg %p85
      %p316 = pneg %p82
      %p317 = pneg %p106
      %p318 = pneg %p103
      %p319 = pneg %p127
      %p320 = pneg %p124
      %p321 = pneg %p148
      %p322 = pneg %p145
      %p323 = pneg %p169
      %p324 = pneg %p166
      %p325 = pneg %p190
      %p326 = pneg %p187
      %p327 = pneg %p220
      %p328 = pneg %p217
      %s329 = smul.u32 %s27, %s26
      %s330 = smul.u32 16, %s329
      %p331 = scmp.lt.s32.totalorder %s25, 1
      %s332 = scalar_select %p331, %s25, 1
      %p333 = scmp.lt.s32.totalorder %s330, 31
      %s334 = scalar_select %p333, %s330, 31
      %s335 = smul.addr %s332, 32
      %s336 = sadd.s32 %s334, %s335
      %s337 = smul.addr %s336, 4
      %s338 = scalar_lea.vmem %s7, %s337
      %p339 = pneg %p250
      %p340 = pneg %p247
      %s341 = smul.u32 %s27, %s26
      %s342 = smul.u32 16, %s341
      %p343 = scmp.lt.s32.totalorder %s25, 1
      %s344 = scalar_select %p343, %s25, 1
      %p345 = scmp.lt.s32.totalorder %s342, 31
      %s346 = scalar_select %p345, %s342, 31
      %s347 = smul.addr %s344, 32
      %s348 = sadd.s32 %s346, %s347
      %s349 = smul.addr %s348, 4
      %s350 = scalar_lea.vmem %s8, %s349
      %s351 = smul.u32 %s25, 2
      %s352 = sadd.s32 %s351, %s27
      %p353 = scmp.lt.s32.totalorder %s352, 3
      %s354 = scalar_select %p353, %s352, 3
      %s355 = smul.addr %s354, 30
      %s356 = smul.addr %s355, 4
      %s357 = scalar_lea.vmem %s0, %s356
      %s358 = smul.u32 %s25, 2
      %s359 = sadd.s32 %s358, %s27
      %s360 = smul.u32 %s27, %s26
      %s361 = smul.u32 16, %s360
      %p362 = scmp.lt.s32.totalorder %s25, 1
      %s363 = scalar_select %p362, %s25, 1
      %p364 = scmp.lt.s32.totalorder %s361, 31
      %s365 = scalar_select %p364, %s361, 31
      %s366 = smul.addr %s363, 32
      %s367 = sadd.s32 %s365, %s366
      %s368 = smul.addr %s367, 4
      %s369 = scalar_lea.vmem %s7, %s368
      %s370 = smul.u32 %s27, %s26
      %s371 = smul.u32 16, %s370
      %s372 = smul.u32 %s27, %s26
      %s373 = smul.u32 16, %s372
      %p374 = scmp.lt.s32.totalorder %s25, 1
      %s375 = scalar_select %p374, %s25, 1
      %p376 = scmp.lt.s32.totalorder %s373, 31
      %s377 = scalar_select %p376, %s373, 31
      %s378 = smul.addr %s375, 32
      %s379 = sadd.s32 %s377, %s378
      %s380 = smul.addr %s379, 4
      %s381 = scalar_lea.vmem %s8, %s380
      %s382 = smul.u32 %s27, %s26
      %s383 = smul.u32 16, %s382
      %v385 = vld [vmem:[%s357] sm:$0xf]
      %v386 = vld [vmem:[%s357 + $0x4] sm:$0xf]
      %v387 = vld [vmem:[%s357 + $0x8] sm:$0x1]
      %v388 = vld [vmem:[%s357 + $0xc] sm:$0xf]
      %v389 = vld [vmem:[%s357 + $0x10] sm:$0xf]
      %v390 = vld [vmem:[%s357 + $0x14] sm:$0x1]
      %v391 = vld [vmem:[%s357 + $0x18] sm:$0xf]
      %v392 = vld [vmem:[%s357 + $0x1c] sm:$0xf]
      %v393 = vld [vmem:[%s357 + $0x20] sm:$0x1]
      %v394 = vld [vmem:[%s357 + $0x24] sm:$0xf]
      %v395 = vld [vmem:[%s357 + $0x28] sm:$0xf]
      %v396 = vld [vmem:[%s357 + $0x2c] sm:$0x1]
      %v397 = vld [vmem:[%s357 + $0x30] sm:$0xf]
      %v398 = vld [vmem:[%s357 + $0x34] sm:$0xf]
      %v399 = vld [vmem:[%s357 + $0x38] sm:$0x1]
      %v400 = vld [vmem:[%s357 + $0x3c] sm:$0xf]
      %v401 = vld [vmem:[%s357 + $0x40] sm:$0xf]
      %v402 = vld [vmem:[%s357 + $0x44] sm:$0x1]
      %v403 = vld [vmem:[%s357 + $0x48] sm:$0xf]
      %v404 = vld [vmem:[%s357 + $0x4c] sm:$0xf]
      %v405 = vld [vmem:[%s357 + $0x50] sm:$0x1]
      %v406 = vld [vmem:[%s357 + $0x54] sm:$0xf]
      %v407 = vld [vmem:[%s357 + $0x58] sm:$0xf]
      %v408 = vld [vmem:[%s357 + $0x5c] sm:$0x1]
      %v409 = vld [vmem:[%s357 + $0x60] sm:$0xf]
      %v410 = vld [vmem:[%s357 + $0x64] sm:$0xf]
      %v411 = vld [vmem:[%s357 + $0x68] sm:$0x1]
      %v412 = vld [vmem:[%s357 + $0x6c] sm:$0xf]
      %v413 = vld [vmem:[%s357 + $0x70] sm:$0xf]
      %v414 = vld [vmem:[%s357 + $0x74] sm:$0x1]
      %v415 = vld [vmem:[%s1] sm:$0xf]
      %v416 = vld [vmem:[%s1 + $0x4] sm:$0xf]
      %v417 = vld [vmem:[%s1 + $0x8] sm:$0xf]
      %v418 = vld [vmem:[%s1 + $0xc] sm:$0xf]
      %s419 = scalar_lea.vmem %s1, 48
      %v420 = vld [vmem:[%s419] sm:$0xf]
      %v421 = vld [vmem:[%s419 + $0x4] sm:$0xf]
      %v422 = vld [vmem:[%s419 + $0x8] sm:$0xf]
      %v423 = vld [vmem:[%s419 + $0xc] sm:$0xf]
      %v440 = vunpack.c.l.b16 %v388
      %v441 = vunpack.c.l.b16 %v389
      %v442 = vunpack.c.l.b16 %v391
      %v443 = vunpack.c.l.b16 %v392
      %v444 = vunpack.c.l.b16 %v394
      %v445 = vunpack.c.l.b16 %v395
      %v446 = vunpack.c.l.b16 %v397
      %v447 = vunpack.c.l.b16 %v398
      %v448 = vunpack.c.l.b16 %v400
      %v449 = vunpack.c.l.b16 %v401
      %v450 = vunpack.c.l.b16 %v403
      %v451 = vunpack.c.l.b16 %v404
      %v452 = vunpack.c.l.b16 %v406
      %v453 = vunpack.c.l.b16 %v407
      %v454 = vunpack.c.l.b16 %v409
      %v455 = vunpack.c.l.b16 %v410
      %v456 = vpack.c.b16 %v441, %v440
      %v457 = vpack.c.b16 %v443, %v442
      %v458 = vpack.c.b16 %v445, %v444
      %v459 = vpack.c.b16 %v447, %v446
      %v460 = vpack.c.b16 %v449, %v448
      %v461 = vpack.c.b16 %v451, %v450
      %v462 = vpack.c.b16 %v453, %v452
      %v463 = vpack.c.b16 %v455, %v454
      %v468 = vunpack.c.l.b16 %v420
      %v469 = vunpack.c.l.b16 %v421
      %v470 = vunpack.c.l.b16 %v422
      %v471 = vunpack.c.l.b16 %v423
      %v472 = vpack.c.b16 %v469, %v468
      %v473 = vpack.c.b16 %v471, %v470
      %vm476 = vcmask 261120
      %v478 = vsel %vm476, %v456, 0
      %v481 = vsel %vm476, %v457, 0
      %v484 = vsel %vm476, %v458, 0
      %v487 = vsel %vm476, %v459, 0
      %v490 = vsel %vm476, %v460, 0
      %v493 = vsel %vm476, %v461, 0
      %v496 = vsel %vm476, %v462, 0
      %v499 = vsel %vm476, %v463, 0
      %501 = vmatpush.bf16.msra.mxu0 0
      %502 = vmatpush.bf16.msra.mxu0 0
      %503 = vmatpush.bf16.msra.mxu0 0
      %504 = vmatpush.bf16.msra.mxu0 0
      %505 = vmatpush.bf16.msra.mxu0 0
      %506 = vmatpush.bf16.msra.mxu0 0
      %507 = vmatpush.bf16.msra.mxu0 %v473
      %508 = vmatpush.bf16.msra.mxu0 %v472
      %509 = vmatmul.bf16.gmra.mxu0 %v478
      %v510 = vpop.f32.mrf.mxu0
      %v511 = vadd.f32 0.0, %v510
      %v512 = vpop.f32.mrf.mxu0
      %v513 = vadd.f32 0.0, %v512
      %514 = vmatmul.bf16.gmra.mxu0 %v481
      %v515 = vpop.f32.mrf.mxu0
      %v516 = vadd.f32 0.0, %v515
      %v517 = vpop.f32.mrf.mxu0
      %v518 = vadd.f32 0.0, %v517
      %519 = vmatmul.bf16.gmra.mxu0 %v484
      %v520 = vpop.f32.mrf.mxu0
      %v521 = vadd.f32 0.0, %v520
      %v522 = vpop.f32.mrf.mxu0
      %v523 = vadd.f32 0.0, %v522
      %524 = vmatmul.bf16.gmra.mxu0 %v487
      %v525 = vpop.f32.mrf.mxu0
      %v526 = vadd.f32 0.0, %v525
      %v527 = vpop.f32.mrf.mxu0
      %v528 = vadd.f32 0.0, %v527
      %529 = vmatmul.bf16.gmra.mxu0 %v490
      %v530 = vpop.f32.mrf.mxu0
      %v531 = vadd.f32 0.0, %v530
      %v532 = vpop.f32.mrf.mxu0
      %v533 = vadd.f32 0.0, %v532
      %534 = vmatmul.bf16.gmra.mxu0 %v493
      %v535 = vpop.f32.mrf.mxu0
      %v536 = vadd.f32 0.0, %v535
      %v537 = vpop.f32.mrf.mxu0
      %v538 = vadd.f32 0.0, %v537
      %539 = vmatmul.bf16.gmra.mxu0 %v496
      %v540 = vpop.f32.mrf.mxu0
      %v541 = vadd.f32 0.0, %v540
      %v542 = vpop.f32.mrf.mxu0
      %v543 = vadd.f32 0.0, %v542
      %544 = vmatmul.bf16.gmra.mxu0 %v499
      %v545 = vpop.f32.mrf.mxu0
      %v546 = vadd.f32 0.0, %v545
      %v547 = vpop.f32.mrf.mxu0
      %v548 = vadd.f32 0.0, %v547
      %549 = vdwg.mxu0
      %v552 = vunpack.c.l.b16 %v385
      %v553 = vunpack.c.l.b16 %v386
      %v554 = vpack.c.b16 %v553, %v552
      %v559 = vunpack.c.l.b16 %v415
      %v560 = vunpack.c.l.b16 %v416
      %v561 = vunpack.c.l.b16 %v417
      %v562 = vunpack.c.l.b16 %v418
      %v563 = vpack.c.b16 %v560, %v559
      %v564 = vpack.c.b16 %v562, %v561
      %v568 = vsel %vm476, %v554, 0
      %570 = vmatpush.bf16.msra.mxu0 0
      %571 = vmatpush.bf16.msra.mxu0 0
      %572 = vmatpush.bf16.msra.mxu0 0
      %573 = vmatpush.bf16.msra.mxu0 0
      %574 = vmatpush.bf16.msra.mxu0 0
      %575 = vmatpush.bf16.msra.mxu0 0
      %576 = vmatpush.bf16.msra.mxu0 %v564
      %577 = vmatpush.bf16.msra.mxu0 %v563
      %578 = vmatmul.bf16.gmra.mxu0 %v568
      %v579 = vpop.f32.mrf.mxu0
      %v580 = vadd.f32 %v511, %v579
      %v581 = vpop.f32.mrf.mxu0
      %v582 = vadd.f32 %v513, %v581
      %583 = vmatmul.bf16.gmra.mxu0 %v478
      %v584 = vpop.f32.mrf.mxu0
      %v585 = vadd.f32 %v516, %v584
      %v586 = vpop.f32.mrf.mxu0
      %v587 = vadd.f32 %v518, %v586
      %588 = vmatmul.bf16.gmra.mxu0 %v481
      %v589 = vpop.f32.mrf.mxu0
      %v590 = vadd.f32 %v521, %v589
      %v591 = vpop.f32.mrf.mxu0
      %v592 = vadd.f32 %v523, %v591
      %593 = vmatmul.bf16.gmra.mxu0 %v484
      %v594 = vpop.f32.mrf.mxu0
      %v595 = vadd.f32 %v526, %v594
      %v596 = vpop.f32.mrf.mxu0
      %v597 = vadd.f32 %v528, %v596
      %598 = vmatmul.bf16.gmra.mxu0 %v487
      %v599 = vpop.f32.mrf.mxu0
      %v600 = vadd.f32 %v531, %v599
      %v601 = vpop.f32.mrf.mxu0
      %v602 = vadd.f32 %v533, %v601
      %603 = vmatmul.bf16.gmra.mxu0 %v490
      %v604 = vpop.f32.mrf.mxu0
      %v605 = vadd.f32 %v536, %v604
      %v606 = vpop.f32.mrf.mxu0
      %v607 = vadd.f32 %v538, %v606
      %608 = vmatmul.bf16.gmra.mxu0 %v493
      %v609 = vpop.f32.mrf.mxu0
      %v610 = vadd.f32 %v541, %v609
      %v611 = vpop.f32.mrf.mxu0
      %v612 = vadd.f32 %v543, %v611
      %613 = vmatmul.bf16.gmra.mxu0 %v496
      %v614 = vpop.f32.mrf.mxu0
      %v615 = vadd.f32 %v546, %v614
      %v616 = vpop.f32.mrf.mxu0
      %v617 = vadd.f32 %v548, %v616
      %618 = vdwg.mxu0
      %s619 = scalar_lea.vmem %s1, 96
      %v620 = vld [vmem:[%s619] sm:$0xf]
      %v621 = vld [vmem:[%s619 + $0x4] sm:$0xf]
      %v622 = vld [vmem:[%s619 + $0x8] sm:$0xf]
      %v623 = vld [vmem:[%s619 + $0xc] sm:$0xf]
      %v626 = vunpack.c.l.b16 %v412
      %v627 = vunpack.c.l.b16 %v413
      %v628 = vpack.c.b16 %v627, %v626
      %v633 = vunpack.c.l.b16 %v620
      %v634 = vunpack.c.l.b16 %v621
      %v635 = vunpack.c.l.b16 %v622
      %v636 = vunpack.c.l.b16 %v623
      %v637 = vpack.c.b16 %v634, %v633
      %v638 = vpack.c.b16 %v636, %v635
      %v642 = vsel %vm476, %v628, 0
      %644 = vmatpush.bf16.msra.mxu0 0
      %645 = vmatpush.bf16.msra.mxu0 0
      %646 = vmatpush.bf16.msra.mxu0 0
      %647 = vmatpush.bf16.msra.mxu0 0
      %648 = vmatpush.bf16.msra.mxu0 0
      %649 = vmatpush.bf16.msra.mxu0 0
      %650 = vmatpush.bf16.msra.mxu0 %v638
      %651 = vmatpush.bf16.msra.mxu0 %v637
      %652 = vmatmul.bf16.gmra.mxu0 %v481
      %v653 = vpop.f32.mrf.mxu0
      %v654 = vadd.f32 0.0, %v653
      %v655 = vpop.f32.mrf.mxu0
      %v656 = vadd.f32 0.0, %v655
      %657 = vmatmul.bf16.gmra.mxu0 %v484
      %v658 = vpop.f32.mrf.mxu0
      %v659 = vadd.f32 0.0, %v658
      %v660 = vpop.f32.mrf.mxu0
      %v661 = vadd.f32 0.0, %v660
      %662 = vmatmul.bf16.gmra.mxu0 %v487
      %v663 = vpop.f32.mrf.mxu0
      %v664 = vadd.f32 0.0, %v663
      %v665 = vpop.f32.mrf.mxu0
      %v666 = vadd.f32 0.0, %v665
      %667 = vmatmul.bf16.gmra.mxu0 %v490
      %v668 = vpop.f32.mrf.mxu0
      %v669 = vadd.f32 0.0, %v668
      %v670 = vpop.f32.mrf.mxu0
      %v671 = vadd.f32 0.0, %v670
      %672 = vmatmul.bf16.gmra.mxu0 %v493
      %v673 = vpop.f32.mrf.mxu0
      %v674 = vadd.f32 0.0, %v673
      %v675 = vpop.f32.mrf.mxu0
      %v676 = vadd.f32 0.0, %v675
      %677 = vmatmul.bf16.gmra.mxu0 %v496
      %v678 = vpop.f32.mrf.mxu0
      %v679 = vadd.f32 0.0, %v678
      %v680 = vpop.f32.mrf.mxu0
      %v681 = vadd.f32 0.0, %v680
      %682 = vmatmul.bf16.gmra.mxu0 %v499
      %v683 = vpop.f32.mrf.mxu0
      %v684 = vadd.f32 0.0, %v683
      %v685 = vpop.f32.mrf.mxu0
      %v686 = vadd.f32 0.0, %v685
      %687 = vmatmul.bf16.gmra.mxu0 %v642
      %v688 = vpop.f32.mrf.mxu0
      %v689 = vadd.f32 0.0, %v688
      %v690 = vpop.f32.mrf.mxu0
      %v691 = vadd.f32 0.0, %v690
      %692 = vdwg.mxu0
      %v693 = vadd.f32 %v580, %v654
      %v694 = vadd.f32 %v582, %v656
      %v695 = vadd.f32 %v585, %v659
      %v696 = vadd.f32 %v587, %v661
      %v697 = vadd.f32 %v590, %v664
      %v698 = vadd.f32 %v592, %v666
      %v699 = vadd.f32 %v595, %v669
      %v700 = vadd.f32 %v597, %v671
      %v701 = vadd.f32 %v600, %v674
      %v702 = vadd.f32 %v602, %v676
      %v703 = vadd.f32 %v605, %v679
      %v704 = vadd.f32 %v607, %v681
      %v705 = vadd.f32 %v610, %v684
      %v706 = vadd.f32 %v612, %v686
      %v707 = vadd.f32 %v615, %v689
      %v708 = vadd.f32 %v617, %v691
      %vm709 = vsmask.f32 3328
      %vm710 = vsmask.f32 7440
      %vm711 = vmor %vm709, %vm710
      %v713 = vshrl.u32 %v385, 16
      %v715 = vrot.slane %v713, 4
      %v716 = vshll.u32 %v385, 16
      %v718 = vrot.slane %v716, 5
      %v719 = vor.u32 %v715, %v718
      %v720 = vrot.slane %v719, 4
      %v722 = vshll.u32 %v386, 16
      %v724 = vrot.slane %v722, 5
      %v725 = vsel %vm711, %v720, %v724
      %v726 = vshrl.u32 %v386, 16
      %v728 = vrot.slane %v726, 4
      %v729 = vor.u32 %v728, %v724
      %v730 = vrot.slane %v729, 4
      %v732 = vshll.u32 %v387, 16
      %v734 = vrot.slane %v732, 5
      %v735 = vsel %vm711, %v730, %v734
      %v737 = vshrl.u32 %v388, 16
      %v739 = vrot.slane %v737, 4
      %v740 = vshll.u32 %v388, 16
      %v742 = vrot.slane %v740, 5
      %v743 = vor.u32 %v739, %v742
      %v744 = vrot.slane %v743, 4
      %v746 = vshll.u32 %v389, 16
      %v748 = vrot.slane %v746, 5
      %v749 = vsel %vm711, %v744, %v748
      %v750 = vshrl.u32 %v389, 16
      %v752 = vrot.slane %v750, 4
      %v753 = vor.u32 %v752, %v748
      %v754 = vrot.slane %v753, 4
      %v756 = vshll.u32 %v390, 16
      %v758 = vrot.slane %v756, 5
      %v759 = vsel %vm711, %v754, %v758
      %v761 = vshrl.u32 %v391, 16
      %v763 = vrot.slane %v761, 4
      %v764 = vshll.u32 %v391, 16
      %v766 = vrot.slane %v764, 5
      %v767 = vor.u32 %v763, %v766
      %v768 = vrot.slane %v767, 4
      %v770 = vshll.u32 %v392, 16
      %v772 = vrot.slane %v770, 5
      %v773 = vsel %vm711, %v768, %v772
      %v774 = vshrl.u32 %v392, 16
      %v776 = vrot.slane %v774, 4
      %v777 = vor.u32 %v776, %v772
      %v778 = vrot.slane %v777, 4
      %v780 = vshll.u32 %v393, 16
      %v782 = vrot.slane %v780, 5
      %v783 = vsel %vm711, %v778, %v782
      %v785 = vshrl.u32 %v394, 16
      %v787 = vrot.slane %v785, 4
      %v788 = vshll.u32 %v394, 16
      %v790 = vrot.slane %v788, 5
      %v791 = vor.u32 %v787, %v790
      %v792 = vrot.slane %v791, 4
      %v794 = vshll.u32 %v395, 16
      %v796 = vrot.slane %v794, 5
      %v797 = vsel %vm711, %v792, %v796
      %v798 = vshrl.u32 %v395, 16
      %v800 = vrot.slane %v798, 4
      %v801 = vor.u32 %v800, %v796
      %v802 = vrot.slane %v801, 4
      %v804 = vshll.u32 %v396, 16
      %v806 = vrot.slane %v804, 5
      %v807 = vsel %vm711, %v802, %v806
      %v809 = vshrl.u32 %v397, 16
      %v811 = vrot.slane %v809, 4
      %v812 = vshll.u32 %v397, 16
      %v814 = vrot.slane %v812, 5
      %v815 = vor.u32 %v811, %v814
      %v816 = vrot.slane %v815, 4
      %v818 = vshll.u32 %v398, 16
      %v820 = vrot.slane %v818, 5
      %v821 = vsel %vm711, %v816, %v820
      %v822 = vshrl.u32 %v398, 16
      %v824 = vrot.slane %v822, 4
      %v825 = vor.u32 %v824, %v820
      %v826 = vrot.slane %v825, 4
      %v828 = vshll.u32 %v399, 16
      %v830 = vrot.slane %v828, 5
      %v831 = vsel %vm711, %v826, %v830
      %v833 = vshrl.u32 %v400, 16
      %v835 = vrot.slane %v833, 4
      %v836 = vshll.u32 %v400, 16
      %v838 = vrot.slane %v836, 5
      %v839 = vor.u32 %v835, %v838
      %v840 = vrot.slane %v839, 4
      %v842 = vshll.u32 %v401, 16
      %v844 = vrot.slane %v842, 5
      %v845 = vsel %vm711, %v840, %v844
      %v846 = vshrl.u32 %v401, 16
      %v848 = vrot.slane %v846, 4
      %v849 = vor.u32 %v848, %v844
      %v850 = vrot.slane %v849, 4
      %v852 = vshll.u32 %v402, 16
      %v854 = vrot.slane %v852, 5
      %v855 = vsel %vm711, %v850, %v854
      %v857 = vshrl.u32 %v403, 16
      %v859 = vrot.slane %v857, 4
      %v860 = vshll.u32 %v403, 16
      %v862 = vrot.slane %v860, 5
      %v863 = vor.u32 %v859, %v862
      %v864 = vrot.slane %v863, 4
      %v866 = vshll.u32 %v404, 16
      %v868 = vrot.slane %v866, 5
      %v869 = vsel %vm711, %v864, %v868
      %v870 = vshrl.u32 %v404, 16
      %v872 = vrot.slane %v870, 4
      %v873 = vor.u32 %v872, %v868
      %v874 = vrot.slane %v873, 4
      %v876 = vshll.u32 %v405, 16
      %v878 = vrot.slane %v876, 5
      %v879 = vsel %vm711, %v874, %v878
      %v881 = vshrl.u32 %v406, 16
      %v883 = vrot.slane %v881, 4
      %v884 = vshll.u32 %v406, 16
      %v886 = vrot.slane %v884, 5
      %v887 = vor.u32 %v883, %v886
      %v888 = vrot.slane %v887, 4
      %v890 = vshll.u32 %v407, 16
      %v892 = vrot.slane %v890, 5
      %v893 = vsel %vm711, %v888, %v892
      %v894 = vshrl.u32 %v407, 16
      %v896 = vrot.slane %v894, 4
      %v897 = vor.u32 %v896, %v892
      %v898 = vrot.slane %v897, 4
      %v900 = vshll.u32 %v408, 16
      %v902 = vrot.slane %v900, 5
      %v903 = vsel %vm711, %v898, %v902
      %v905 = vshrl.u32 %v409, 16
      %v907 = vrot.slane %v905, 4
      %v908 = vshll.u32 %v409, 16
      %v910 = vrot.slane %v908, 5
      %v911 = vor.u32 %v907, %v910
      %v912 = vrot.slane %v911, 4
      %v914 = vshll.u32 %v410, 16
      %v916 = vrot.slane %v914, 5
      %v917 = vsel %vm711, %v912, %v916
      %v918 = vshrl.u32 %v410, 16
      %v920 = vrot.slane %v918, 4
      %v921 = vor.u32 %v920, %v916
      %v922 = vrot.slane %v921, 4
      %v924 = vshll.u32 %v411, 16
      %v926 = vrot.slane %v924, 5
      %v927 = vsel %vm711, %v922, %v926
      %v929 = vshrl.u32 %v412, 16
      %v931 = vrot.slane %v929, 4
      %v932 = vshll.u32 %v412, 16
      %v934 = vrot.slane %v932, 5
      %v935 = vor.u32 %v931, %v934
      %v936 = vrot.slane %v935, 4
      %v938 = vshll.u32 %v413, 16
      %v940 = vrot.slane %v938, 5
      %v941 = vsel %vm711, %v936, %v940
      %v942 = vshrl.u32 %v413, 16
      %v944 = vrot.slane %v942, 4
      %v945 = vor.u32 %v944, %v940
      %v946 = vrot.slane %v945, 4
      %v948 = vshll.u32 %v414, 16
      %v950 = vrot.slane %v948, 5
      %v951 = vsel %vm711, %v946, %v950
      %s952 = scalar_lea.vmem %s1, 16
      %v953 = vld [vmem:[%s952] sm:$0xf]
      %v954 = vld [vmem:[%s952 + $0x4] sm:$0xf]
      %v955 = vld [vmem:[%s952 + $0x8] sm:$0xf]
      %v956 = vld [vmem:[%s952 + $0xc] sm:$0xf]
      %v957 = vunpack.c.l.b16 %v725
      %v958 = vunpack.c.l.b16 %v735
      %v959 = vunpack.c.l.b16 %v749
      %v960 = vunpack.c.l.b16 %v759
      %v961 = vunpack.c.l.b16 %v773
      %v962 = vunpack.c.l.b16 %v783
      %v963 = vunpack.c.l.b16 %v797
      %v964 = vunpack.c.l.b16 %v807
      %v965 = vunpack.c.l.b16 %v821
      %v966 = vunpack.c.l.b16 %v831
      %v967 = vunpack.c.l.b16 %v845
      %v968 = vunpack.c.l.b16 %v855
      %v969 = vunpack.c.l.b16 %v869
      %v970 = vunpack.c.l.b16 %v879
      %v971 = vunpack.c.l.b16 %v893
      %v972 = vunpack.c.l.b16 %v903
      %v973 = vpack.c.b16 %v958, %v957
      %v974 = vpack.c.b16 %v960, %v959
      %v975 = vpack.c.b16 %v962, %v961
      %v976 = vpack.c.b16 %v964, %v963
      %v977 = vpack.c.b16 %v966, %v965
      %v978 = vpack.c.b16 %v968, %v967
      %v979 = vpack.c.b16 %v970, %v969
      %v980 = vpack.c.b16 %v972, %v971
      %v985 = vunpack.c.l.b16 %v953
      %v986 = vunpack.c.l.b16 %v954
      %v987 = vunpack.c.l.b16 %v955
      %v988 = vunpack.c.l.b16 %v956
      %v989 = vpack.c.b16 %v986, %v985
      %v990 = vpack.c.b16 %v988, %v987
      %v994 = vsel %vm476, %v973, 0
      %v997 = vsel %vm476, %v974, 0
      %v1000 = vsel %vm476, %v975, 0
      %v1003 = vsel %vm476, %v976, 0
      %v1006 = vsel %vm476, %v977, 0
      %v1009 = vsel %vm476, %v978, 0
      %v1012 = vsel %vm476, %v979, 0
      %v1015 = vsel %vm476, %v980, 0
      %1017 = vmatpush.bf16.msra.mxu0 0
      %1018 = vmatpush.bf16.msra.mxu0 0
      %1019 = vmatpush.bf16.msra.mxu0 0
      %1020 = vmatpush.bf16.msra.mxu0 0
      %1021 = vmatpush.bf16.msra.mxu0 0
      %1022 = vmatpush.bf16.msra.mxu0 0
      %1023 = vmatpush.bf16.msra.mxu0 %v990
      %1024 = vmatpush.bf16.msra.mxu0 %v989
      %1025 = vmatmul.bf16.gmra.mxu0 %v994
      %v1026 = vpop.f32.mrf.mxu0
      %v1027 = vadd.f32 0.0, %v1026
      %v1028 = vpop.f32.mrf.mxu0
      %v1029 = vadd.f32 0.0, %v1028
      %1030 = vmatmul.bf16.gmra.mxu0 %v997
      %v1031 = vpop.f32.mrf.mxu0
      %v1032 = vadd.f32 0.0, %v1031
      %v1033 = vpop.f32.mrf.mxu0
      %v1034 = vadd.f32 0.0, %v1033
      %1035 = vmatmul.bf16.gmra.mxu0 %v1000
      %v1036 = vpop.f32.mrf.mxu0
      %v1037 = vadd.f32 0.0, %v1036
      %v1038 = vpop.f32.mrf.mxu0
      %v1039 = vadd.f32 0.0, %v1038
      %1040 = vmatmul.bf16.gmra.mxu0 %v1003
      %v1041 = vpop.f32.mrf.mxu0
      %v1042 = vadd.f32 0.0, %v1041
      %v1043 = vpop.f32.mrf.mxu0
      %v1044 = vadd.f32 0.0, %v1043
      %1045 = vmatmul.bf16.gmra.mxu0 %v1006
      %v1046 = vpop.f32.mrf.mxu0
      %v1047 = vadd.f32 0.0, %v1046
      %v1048 = vpop.f32.mrf.mxu0
      %v1049 = vadd.f32 0.0, %v1048
      %1050 = vmatmul.bf16.gmra.mxu0 %v1009
      %v1051 = vpop.f32.mrf.mxu0
      %v1052 = vadd.f32 0.0, %v1051
      %v1053 = vpop.f32.mrf.mxu0
      %v1054 = vadd.f32 0.0, %v1053
      %1055 = vmatmul.bf16.gmra.mxu0 %v1012
      %v1056 = vpop.f32.mrf.mxu0
      %v1057 = vadd.f32 0.0, %v1056
      %v1058 = vpop.f32.mrf.mxu0
      %v1059 = vadd.f32 0.0, %v1058
      %1060 = vmatmul.bf16.gmra.mxu0 %v1015
      %v1061 = vpop.f32.mrf.mxu0
      %v1062 = vadd.f32 0.0, %v1061
      %v1063 = vpop.f32.mrf.mxu0
      %v1064 = vadd.f32 0.0, %v1063
      %1065 = vdwg.mxu0
      %v1066 = vadd.f32 %v693, %v1027
      %v1067 = vadd.f32 %v694, %v1029
      %v1068 = vadd.f32 %v695, %v1032
      %v1069 = vadd.f32 %v696, %v1034
      %v1070 = vadd.f32 %v697, %v1037
      %v1071 = vadd.f32 %v698, %v1039
      %v1072 = vadd.f32 %v699, %v1042
      %v1073 = vadd.f32 %v700, %v1044
      %v1074 = vadd.f32 %v701, %v1047
      %v1075 = vadd.f32 %v702, %v1049
      %v1076 = vadd.f32 %v703, %v1052
      %v1077 = vadd.f32 %v704, %v1054
      %v1078 = vadd.f32 %v705, %v1057
      %v1079 = vadd.f32 %v706, %v1059
      %v1080 = vadd.f32 %v707, %v1062
      %v1081 = vadd.f32 %v708, %v1064
      %s1082 = scalar_lea.vmem %s1, 64
      %v1083 = vld [vmem:[%s1082] sm:$0xf]
      %v1084 = vld [vmem:[%s1082 + $0x4] sm:$0xf]
      %v1085 = vld [vmem:[%s1082 + $0x8] sm:$0xf]
      %v1086 = vld [vmem:[%s1082 + $0xc] sm:$0xf]
      %v1087 = vunpack.c.l.b16 %v917
      %v1088 = vunpack.c.l.b16 %v927
      %v1089 = vpack.c.b16 %v1088, %v1087
      %v1094 = vunpack.c.l.b16 %v1083
      %v1095 = vunpack.c.l.b16 %v1084
      %v1096 = vunpack.c.l.b16 %v1085
      %v1097 = vunpack.c.l.b16 %v1086
      %v1098 = vpack.c.b16 %v1095, %v1094
      %v1099 = vpack.c.b16 %v1097, %v1096
      %v1103 = vsel %vm476, %v1089, 0
      %1105 = vmatpush.bf16.msra.mxu0 0
      %1106 = vmatpush.bf16.msra.mxu0 0
      %1107 = vmatpush.bf16.msra.mxu0 0
      %1108 = vmatpush.bf16.msra.mxu0 0
      %1109 = vmatpush.bf16.msra.mxu0 0
      %1110 = vmatpush.bf16.msra.mxu0 0
      %1111 = vmatpush.bf16.msra.mxu0 %v1099
      %1112 = vmatpush.bf16.msra.mxu0 %v1098
      %1113 = vmatmul.bf16.gmra.mxu0 %v997
      %v1114 = vpop.f32.mrf.mxu0
      %v1115 = vadd.f32 0.0, %v1114
      %v1116 = vpop.f32.mrf.mxu0
      %v1117 = vadd.f32 0.0, %v1116
      %1118 = vmatmul.bf16.gmra.mxu0 %v1000
      %v1119 = vpop.f32.mrf.mxu0
      %v1120 = vadd.f32 0.0, %v1119
      %v1121 = vpop.f32.mrf.mxu0
      %v1122 = vadd.f32 0.0, %v1121
      %1123 = vmatmul.bf16.gmra.mxu0 %v1003
      %v1124 = vpop.f32.mrf.mxu0
      %v1125 = vadd.f32 0.0, %v1124
      %v1126 = vpop.f32.mrf.mxu0
      %v1127 = vadd.f32 0.0, %v1126
      %1128 = vmatmul.bf16.gmra.mxu0 %v1006
      %v1129 = vpop.f32.mrf.mxu0
      %v1130 = vadd.f32 0.0, %v1129
      %v1131 = vpop.f32.mrf.mxu0
      %v1132 = vadd.f32 0.0, %v1131
      %1133 = vmatmul.bf16.gmra.mxu0 %v1009
      %v1134 = vpop.f32.mrf.mxu0
      %v1135 = vadd.f32 0.0, %v1134
      %v1136 = vpop.f32.mrf.mxu0
      %v1137 = vadd.f32 0.0, %v1136
      %1138 = vmatmul.bf16.gmra.mxu0 %v1012
      %v1139 = vpop.f32.mrf.mxu0
      %v1140 = vadd.f32 0.0, %v1139
      %v1141 = vpop.f32.mrf.mxu0
      %v1142 = vadd.f32 0.0, %v1141
      %1143 = vmatmul.bf16.gmra.mxu0 %v1015
      %v1144 = vpop.f32.mrf.mxu0
      %v1145 = vadd.f32 0.0, %v1144
      %v1146 = vpop.f32.mrf.mxu0
      %v1147 = vadd.f32 0.0, %v1146
      %1148 = vmatmul.bf16.gmra.mxu0 %v1103
      %v1149 = vpop.f32.mrf.mxu0
      %v1150 = vadd.f32 0.0, %v1149
      %v1151 = vpop.f32.mrf.mxu0
      %v1152 = vadd.f32 0.0, %v1151
      %1153 = vdwg.mxu0
      %v1154 = vadd.f32 %v1066, %v1115
      %v1155 = vadd.f32 %v1067, %v1117
      %v1156 = vadd.f32 %v1068, %v1120
      %v1157 = vadd.f32 %v1069, %v1122
      %v1158 = vadd.f32 %v1070, %v1125
      %v1159 = vadd.f32 %v1071, %v1127
      %v1160 = vadd.f32 %v1072, %v1130
      %v1161 = vadd.f32 %v1073, %v1132
      %v1162 = vadd.f32 %v1074, %v1135
      %v1163 = vadd.f32 %v1075, %v1137
      %v1164 = vadd.f32 %v1076, %v1140
      %v1165 = vadd.f32 %v1077, %v1142
      %v1166 = vadd.f32 %v1078, %v1145
      %v1167 = vadd.f32 %v1079, %v1147
      %v1168 = vadd.f32 %v1080, %v1150
      %v1169 = vadd.f32 %v1081, %v1152
      %s1170 = scalar_lea.vmem %s1, 112
      %v1171 = vld [vmem:[%s1170] sm:$0xf]
      %v1172 = vld [vmem:[%s1170 + $0x4] sm:$0xf]
      %v1173 = vld [vmem:[%s1170 + $0x8] sm:$0xf]
      %v1174 = vld [vmem:[%s1170 + $0xc] sm:$0xf]
      %v1175 = vunpack.c.l.b16 %v941
      %v1176 = vunpack.c.l.b16 %v951
      %v1177 = vpack.c.b16 %v1176, %v1175
      %v1182 = vunpack.c.l.b16 %v1171
      %v1183 = vunpack.c.l.b16 %v1172
      %v1184 = vunpack.c.l.b16 %v1173
      %v1185 = vunpack.c.l.b16 %v1174
      %v1186 = vpack.c.b16 %v1183, %v1182
      %v1187 = vpack.c.b16 %v1185, %v1184
      %v1191 = vsel %vm476, %v1177, 0
      %1193 = vmatpush.bf16.msra.mxu0 0
      %1194 = vmatpush.bf16.msra.mxu0 0
      %1195 = vmatpush.bf16.msra.mxu0 0
      %1196 = vmatpush.bf16.msra.mxu0 0
      %1197 = vmatpush.bf16.msra.mxu0 0
      %1198 = vmatpush.bf16.msra.mxu0 0
      %1199 = vmatpush.bf16.msra.mxu0 %v1187
      %1200 = vmatpush.bf16.msra.mxu0 %v1186
      %1201 = vmatmul.bf16.gmra.mxu0 %v1000
      %v1202 = vpop.f32.mrf.mxu0
      %v1203 = vadd.f32 0.0, %v1202
      %v1204 = vpop.f32.mrf.mxu0
      %v1205 = vadd.f32 0.0, %v1204
      %1206 = vmatmul.bf16.gmra.mxu0 %v1003
      %v1207 = vpop.f32.mrf.mxu0
      %v1208 = vadd.f32 0.0, %v1207
      %v1209 = vpop.f32.mrf.mxu0
      %v1210 = vadd.f32 0.0, %v1209
      %1211 = vmatmul.bf16.gmra.mxu0 %v1006
      %v1212 = vpop.f32.mrf.mxu0
      %v1213 = vadd.f32 0.0, %v1212
      %v1214 = vpop.f32.mrf.mxu0
      %v1215 = vadd.f32 0.0, %v1214
      %1216 = vmatmul.bf16.gmra.mxu0 %v1009
      %v1217 = vpop.f32.mrf.mxu0
      %v1218 = vadd.f32 0.0, %v1217
      %v1219 = vpop.f32.mrf.mxu0
      %v1220 = vadd.f32 0.0, %v1219
      %1221 = vmatmul.bf16.gmra.mxu0 %v1012
      %v1222 = vpop.f32.mrf.mxu0
      %v1223 = vadd.f32 0.0, %v1222
      %v1224 = vpop.f32.mrf.mxu0
      %v1225 = vadd.f32 0.0, %v1224
      %1226 = vmatmul.bf16.gmra.mxu0 %v1015
      %v1227 = vpop.f32.mrf.mxu0
      %v1228 = vadd.f32 0.0, %v1227
      %v1229 = vpop.f32.mrf.mxu0
      %v1230 = vadd.f32 0.0, %v1229
      %1231 = vmatmul.bf16.gmra.mxu0 %v1103
      %v1232 = vpop.f32.mrf.mxu0
      %v1233 = vadd.f32 0.0, %v1232
      %v1234 = vpop.f32.mrf.mxu0
      %v1235 = vadd.f32 0.0, %v1234
      %1236 = vmatmul.bf16.gmra.mxu0 %v1191
      %v1237 = vpop.f32.mrf.mxu0
      %v1238 = vadd.f32 0.0, %v1237
      %v1239 = vpop.f32.mrf.mxu0
      %v1240 = vadd.f32 0.0, %v1239
      %1241 = vdwg.mxu0
      %v1242 = vadd.f32 %v1154, %v1203
      %v1243 = vadd.f32 %v1155, %v1205
      %v1244 = vadd.f32 %v1156, %v1208
      %v1245 = vadd.f32 %v1157, %v1210
      %v1246 = vadd.f32 %v1158, %v1213
      %v1247 = vadd.f32 %v1159, %v1215
      %v1248 = vadd.f32 %v1160, %v1218
      %v1249 = vadd.f32 %v1161, %v1220
      %v1250 = vadd.f32 %v1162, %v1223
      %v1251 = vadd.f32 %v1163, %v1225
      %v1252 = vadd.f32 %v1164, %v1228
      %v1253 = vadd.f32 %v1165, %v1230
      %v1254 = vadd.f32 %v1166, %v1233
      %v1255 = vadd.f32 %v1167, %v1235
      %v1256 = vadd.f32 %v1168, %v1238
      %v1257 = vadd.f32 %v1169, %v1240
      %vm1268 = vcmask 1042432
      %vm1269 = vcmask 1046532
      %vm1270 = vmor %vm1268, %vm1269
      %v1271 = vrot.slane %v385, 5
      %v1272 = vrot.slane %v1271, 4
      %v1273 = vrot.slane %v386, 5
      %v1274 = vsel %vm1270, %v1272, %v1273
      %v1275 = vrot.slane %v1273, 4
      %v1276 = vrot.slane %v387, 5
      %v1277 = vsel %vm1270, %v1275, %v1276
      %v1278 = vrot.slane %v388, 5
      %v1279 = vrot.slane %v1278, 4
      %v1280 = vrot.slane %v389, 5
      %v1281 = vsel %vm1270, %v1279, %v1280
      %v1282 = vrot.slane %v1280, 4
      %v1283 = vrot.slane %v390, 5
      %v1284 = vsel %vm1270, %v1282, %v1283
      %v1285 = vrot.slane %v391, 5
      %v1286 = vrot.slane %v1285, 4
      %v1287 = vrot.slane %v392, 5
      %v1288 = vsel %vm1270, %v1286, %v1287
      %v1289 = vrot.slane %v1287, 4
      %v1290 = vrot.slane %v393, 5
      %v1291 = vsel %vm1270, %v1289, %v1290
      %v1292 = vrot.slane %v394, 5
      %v1293 = vrot.slane %v1292, 4
      %v1294 = vrot.slane %v395, 5
      %v1295 = vsel %vm1270, %v1293, %v1294
      %v1296 = vrot.slane %v1294, 4
      %v1297 = vrot.slane %v396, 5
      %v1298 = vsel %vm1270, %v1296, %v1297
      %v1299 = vrot.slane %v397, 5
      %v1300 = vrot.slane %v1299, 4
      %v1301 = vrot.slane %v398, 5
      %v1302 = vsel %vm1270, %v1300, %v1301
      %v1303 = vrot.slane %v1301, 4
      %v1304 = vrot.slane %v399, 5
      %v1305 = vsel %vm1270, %v1303, %v1304
      %v1306 = vrot.slane %v400, 5
      %v1307 = vrot.slane %v1306, 4
      %v1308 = vrot.slane %v401, 5
      %v1309 = vsel %vm1270, %v1307, %v1308
      %v1310 = vrot.slane %v1308, 4
      %v1311 = vrot.slane %v402, 5
      %v1312 = vsel %vm1270, %v1310, %v1311
      %v1313 = vrot.slane %v403, 5
      %v1314 = vrot.slane %v1313, 4
      %v1315 = vrot.slane %v404, 5
      %v1316 = vsel %vm1270, %v1314, %v1315
      %v1317 = vrot.slane %v1315, 4
      %v1318 = vrot.slane %v405, 5
      %v1319 = vsel %vm1270, %v1317, %v1318
      %v1320 = vrot.slane %v406, 5
      %v1321 = vrot.slane %v1320, 4
      %v1322 = vrot.slane %v407, 5
      %v1323 = vsel %vm1270, %v1321, %v1322
      %v1324 = vrot.slane %v1322, 4
      %v1325 = vrot.slane %v408, 5
      %v1326 = vsel %vm1270, %v1324, %v1325
      %v1327 = vrot.slane %v409, 5
      %v1328 = vrot.slane %v1327, 4
      %v1329 = vrot.slane %v410, 5
      %v1330 = vsel %vm1270, %v1328, %v1329
      %v1331 = vrot.slane %v1329, 4
      %v1332 = vrot.slane %v411, 5
      %v1333 = vsel %vm1270, %v1331, %v1332
      %v1334 = vrot.slane %v412, 5
      %v1335 = vrot.slane %v1334, 4
      %v1336 = vrot.slane %v413, 5
      %v1337 = vsel %vm1270, %v1335, %v1336
      %v1338 = vrot.slane %v1336, 4
      %v1339 = vrot.slane %v414, 5
      %v1340 = vsel %vm1270, %v1338, %v1339
      %s1341 = scalar_lea.vmem %s1, 32
      %v1342 = vld [vmem:[%s1341] sm:$0xf]
      %v1343 = vld [vmem:[%s1341 + $0x4] sm:$0xf]
      %v1344 = vld [vmem:[%s1341 + $0x8] sm:$0xf]
      %v1345 = vld [vmem:[%s1341 + $0xc] sm:$0xf]
      %v1346 = vunpack.c.l.b16 %v1274
      %v1347 = vunpack.c.l.b16 %v1277
      %v1348 = vunpack.c.l.b16 %v1281
      %v1349 = vunpack.c.l.b16 %v1284
      %v1350 = vunpack.c.l.b16 %v1288
      %v1351 = vunpack.c.l.b16 %v1291
      %v1352 = vunpack.c.l.b16 %v1295
      %v1353 = vunpack.c.l.b16 %v1298
      %v1354 = vunpack.c.l.b16 %v1302
      %v1355 = vunpack.c.l.b16 %v1305
      %v1356 = vunpack.c.l.b16 %v1309
      %v1357 = vunpack.c.l.b16 %v1312
      %v1358 = vunpack.c.l.b16 %v1316
      %v1359 = vunpack.c.l.b16 %v1319
      %v1360 = vunpack.c.l.b16 %v1323
      %v1361 = vunpack.c.l.b16 %v1326
      %v1362 = vpack.c.b16 %v1347, %v1346
      %v1363 = vpack.c.b16 %v1349, %v1348
      %v1364 = vpack.c.b16 %v1351, %v1350
      %v1365 = vpack.c.b16 %v1353, %v1352
      %v1366 = vpack.c.b16 %v1355, %v1354
      %v1367 = vpack.c.b16 %v1357, %v1356
      %v1368 = vpack.c.b16 %v1359, %v1358
      %v1369 = vpack.c.b16 %v1361, %v1360
      %v1374 = vunpack.c.l.b16 %v1342
      %v1375 = vunpack.c.l.b16 %v1343
      %v1376 = vunpack.c.l.b16 %v1344
      %v1377 = vunpack.c.l.b16 %v1345
      %v1378 = vpack.c.b16 %v1375, %v1374
      %v1379 = vpack.c.b16 %v1377, %v1376
      %v1383 = vsel %vm476, %v1362, 0
      %v1386 = vsel %vm476, %v1363, 0
      %v1389 = vsel %vm476, %v1364, 0
      %v1392 = vsel %vm476, %v1365, 0
      %v1395 = vsel %vm476, %v1366, 0
      %v1398 = vsel %vm476, %v1367, 0
      %v1401 = vsel %vm476, %v1368, 0
      %v1404 = vsel %vm476, %v1369, 0
      %1406 = vmatpush.bf16.msra.mxu0 0
      %1407 = vmatpush.bf16.msra.mxu0 0
      %1408 = vmatpush.bf16.msra.mxu0 0
      %1409 = vmatpush.bf16.msra.mxu0 0
      %1410 = vmatpush.bf16.msra.mxu0 0
      %1411 = vmatpush.bf16.msra.mxu0 0
      %1412 = vmatpush.bf16.msra.mxu0 %v1379
      %1413 = vmatpush.bf16.msra.mxu0 %v1378
      %1414 = vmatmul.bf16.gmra.mxu0 %v1383
      %v1415 = vpop.f32.mrf.mxu0
      %v1416 = vadd.f32 0.0, %v1415
      %v1417 = vpop.f32.mrf.mxu0
      %v1418 = vadd.f32 0.0, %v1417
      %1419 = vmatmul.bf16.gmra.mxu0 %v1386
      %v1420 = vpop.f32.mrf.mxu0
      %v1421 = vadd.f32 0.0, %v1420
      %v1422 = vpop.f32.mrf.mxu0
      %v1423 = vadd.f32 0.0, %v1422
      %1424 = vmatmul.bf16.gmra.mxu0 %v1389
      %v1425 = vpop.f32.mrf.mxu0
      %v1426 = vadd.f32 0.0, %v1425
      %v1427 = vpop.f32.mrf.mxu0
      %v1428 = vadd.f32 0.0, %v1427
      %1429 = vmatmul.bf16.gmra.mxu0 %v1392
      %v1430 = vpop.f32.mrf.mxu0
      %v1431 = vadd.f32 0.0, %v1430
      %v1432 = vpop.f32.mrf.mxu0
      %v1433 = vadd.f32 0.0, %v1432
      %1434 = vmatmul.bf16.gmra.mxu0 %v1395
      %v1435 = vpop.f32.mrf.mxu0
      %v1436 = vadd.f32 0.0, %v1435
      %v1437 = vpop.f32.mrf.mxu0
      %v1438 = vadd.f32 0.0, %v1437
      %1439 = vmatmul.bf16.gmra.mxu0 %v1398
      %v1440 = vpop.f32.mrf.mxu0
      %v1441 = vadd.f32 0.0, %v1440
      %v1442 = vpop.f32.mrf.mxu0
      %v1443 = vadd.f32 0.0, %v1442
      %1444 = vmatmul.bf16.gmra.mxu0 %v1401
      %v1445 = vpop.f32.mrf.mxu0
      %v1446 = vadd.f32 0.0, %v1445
      %v1447 = vpop.f32.mrf.mxu0
      %v1448 = vadd.f32 0.0, %v1447
      %1449 = vmatmul.bf16.gmra.mxu0 %v1404
      %v1450 = vpop.f32.mrf.mxu0
      %v1451 = vadd.f32 0.0, %v1450
      %v1452 = vpop.f32.mrf.mxu0
      %v1453 = vadd.f32 0.0, %v1452
      %1454 = vdwg.mxu0
      %v1455 = vadd.f32 %v1242, %v1416
      %v1456 = vadd.f32 %v1243, %v1418
      %v1457 = vadd.f32 %v1244, %v1421
      %v1458 = vadd.f32 %v1245, %v1423
      %v1459 = vadd.f32 %v1246, %v1426
      %v1460 = vadd.f32 %v1247, %v1428
      %v1461 = vadd.f32 %v1248, %v1431
      %v1462 = vadd.f32 %v1249, %v1433
      %v1463 = vadd.f32 %v1250, %v1436
      %v1464 = vadd.f32 %v1251, %v1438
      %v1465 = vadd.f32 %v1252, %v1441
      %v1466 = vadd.f32 %v1253, %v1443
      %v1467 = vadd.f32 %v1254, %v1446
      %v1468 = vadd.f32 %v1255, %v1448
      %v1469 = vadd.f32 %v1256, %v1451
      %v1470 = vadd.f32 %v1257, %v1453
      %s1471 = scalar_lea.vmem %s1, 80
      %v1472 = vld [vmem:[%s1471] sm:$0xf]
      %v1473 = vld [vmem:[%s1471 + $0x4] sm:$0xf]
      %v1474 = vld [vmem:[%s1471 + $0x8] sm:$0xf]
      %v1475 = vld [vmem:[%s1471 + $0xc] sm:$0xf]
      %v1476 = vunpack.c.l.b16 %v1330
      %v1477 = vunpack.c.l.b16 %v1333
      %v1478 = vpack.c.b16 %v1477, %v1476
      %v1483 = vunpack.c.l.b16 %v1472
      %v1484 = vunpack.c.l.b16 %v1473
      %v1485 = vunpack.c.l.b16 %v1474
      %v1486 = vunpack.c.l.b16 %v1475
      %v1487 = vpack.c.b16 %v1484, %v1483
      %v1488 = vpack.c.b16 %v1486, %v1485
      %v1492 = vsel %vm476, %v1478, 0
      %1494 = vmatpush.bf16.msra.mxu0 0
      %1495 = vmatpush.bf16.msra.mxu0 0
      %1496 = vmatpush.bf16.msra.mxu0 0
      %1497 = vmatpush.bf16.msra.mxu0 0
      %1498 = vmatpush.bf16.msra.mxu0 0
      %1499 = vmatpush.bf16.msra.mxu0 0
      %1500 = vmatpush.bf16.msra.mxu0 %v1488
      %1501 = vmatpush.bf16.msra.mxu0 %v1487
      %1502 = vmatmul.bf16.gmra.mxu0 %v1386
      %v1503 = vpop.f32.mrf.mxu0
      %v1504 = vadd.f32 0.0, %v1503
      %v1505 = vpop.f32.mrf.mxu0
      %v1506 = vadd.f32 0.0, %v1505
      %1507 = vmatmul.bf16.gmra.mxu0 %v1389
      %v1508 = vpop.f32.mrf.mxu0
      %v1509 = vadd.f32 0.0, %v1508
      %v1510 = vpop.f32.mrf.mxu0
      %v1511 = vadd.f32 0.0, %v1510
      %1512 = vmatmul.bf16.gmra.mxu0 %v1392
      %v1513 = vpop.f32.mrf.mxu0
      %v1514 = vadd.f32 0.0, %v1513
      %v1515 = vpop.f32.mrf.mxu0
      %v1516 = vadd.f32 0.0, %v1515
      %1517 = vmatmul.bf16.gmra.mxu0 %v1395
      %v1518 = vpop.f32.mrf.mxu0
      %v1519 = vadd.f32 0.0, %v1518
      %v1520 = vpop.f32.mrf.mxu0
      %v1521 = vadd.f32 0.0, %v1520
      %1522 = vmatmul.bf16.gmra.mxu0 %v1398
      %v1523 = vpop.f32.mrf.mxu0
      %v1524 = vadd.f32 0.0, %v1523
      %v1525 = vpop.f32.mrf.mxu0
      %v1526 = vadd.f32 0.0, %v1525
      %1527 = vmatmul.bf16.gmra.mxu0 %v1401
      %v1528 = vpop.f32.mrf.mxu0
      %v1529 = vadd.f32 0.0, %v1528
      %v1530 = vpop.f32.mrf.mxu0
      %v1531 = vadd.f32 0.0, %v1530
      %1532 = vmatmul.bf16.gmra.mxu0 %v1404
      %v1533 = vpop.f32.mrf.mxu0
      %v1534 = vadd.f32 0.0, %v1533
      %v1535 = vpop.f32.mrf.mxu0
      %v1536 = vadd.f32 0.0, %v1535
      %1537 = vmatmul.bf16.gmra.mxu0 %v1492
      %v1538 = vpop.f32.mrf.mxu0
      %v1539 = vadd.f32 0.0, %v1538
      %v1540 = vpop.f32.mrf.mxu0
      %v1541 = vadd.f32 0.0, %v1540
      %1542 = vdwg.mxu0
      %v1543 = vadd.f32 %v1455, %v1504
      %v1544 = vadd.f32 %v1456, %v1506
      %v1545 = vadd.f32 %v1457, %v1509
      %v1546 = vadd.f32 %v1458, %v1511
      %v1547 = vadd.f32 %v1459, %v1514
      %v1548 = vadd.f32 %v1460, %v1516
      %v1549 = vadd.f32 %v1461, %v1519
      %v1550 = vadd.f32 %v1462, %v1521
      %v1551 = vadd.f32 %v1463, %v1524
      %v1552 = vadd.f32 %v1464, %v1526
      %v1553 = vadd.f32 %v1465, %v1529
      %v1554 = vadd.f32 %v1466, %v1531
      %v1555 = vadd.f32 %v1467, %v1534
      %v1556 = vadd.f32 %v1468, %v1536
      %v1557 = vadd.f32 %v1469, %v1539
      %v1558 = vadd.f32 %v1470, %v1541
      %s1559 = scalar_lea.vmem %s1, 128
      %v1560 = vld [vmem:[%s1559] sm:$0xf]
      %v1561 = vld [vmem:[%s1559 + $0x4] sm:$0xf]
      %v1562 = vld [vmem:[%s1559 + $0x8] sm:$0xf]
      %v1563 = vld [vmem:[%s1559 + $0xc] sm:$0xf]
      %v1564 = vunpack.c.l.b16 %v1337
      %v1565 = vunpack.c.l.b16 %v1340
      %v1566 = vpack.c.b16 %v1565, %v1564
      %v1571 = vunpack.c.l.b16 %v1560
      %v1572 = vunpack.c.l.b16 %v1561
      %v1573 = vunpack.c.l.b16 %v1562
      %v1574 = vunpack.c.l.b16 %v1563
      %v1575 = vpack.c.b16 %v1572, %v1571
      %v1576 = vpack.c.b16 %v1574, %v1573
      %v1580 = vsel %vm476, %v1566, 0
      %1582 = vmatpush.bf16.msra.mxu0 0
      %1583 = vmatpush.bf16.msra.mxu0 0
      %1584 = vmatpush.bf16.msra.mxu0 0
      %1585 = vmatpush.bf16.msra.mxu0 0
      %1586 = vmatpush.bf16.msra.mxu0 0
      %1587 = vmatpush.bf16.msra.mxu0 0
      %1588 = vmatpush.bf16.msra.mxu0 %v1576
      %1589 = vmatpush.bf16.msra.mxu0 %v1575
      %1590 = vmatmul.bf16.gmra.mxu0 %v1389
      %v1591 = vpop.f32.mrf.mxu0
      %v1592 = vadd.f32 0.0, %v1591
      %v1593 = vpop.f32.mrf.mxu0
      %v1594 = vadd.f32 0.0, %v1593
      %1595 = vmatmul.bf16.gmra.mxu0 %v1392
      %v1596 = vpop.f32.mrf.mxu0
      %v1597 = vadd.f32 0.0, %v1596
      %v1598 = vpop.f32.mrf.mxu0
      %v1599 = vadd.f32 0.0, %v1598
      %1600 = vmatmul.bf16.gmra.mxu0 %v1395
      %v1601 = vpop.f32.mrf.mxu0
      %v1602 = vadd.f32 0.0, %v1601
      %v1603 = vpop.f32.mrf.mxu0
      %v1604 = vadd.f32 0.0, %v1603
      %1605 = vmatmul.bf16.gmra.mxu0 %v1398
      %v1606 = vpop.f32.mrf.mxu0
      %v1607 = vadd.f32 0.0, %v1606
      %v1608 = vpop.f32.mrf.mxu0
      %v1609 = vadd.f32 0.0, %v1608
      %1610 = vmatmul.bf16.gmra.mxu0 %v1401
      %v1611 = vpop.f32.mrf.mxu0
      %v1612 = vadd.f32 0.0, %v1611
      %v1613 = vpop.f32.mrf.mxu0
      %v1614 = vadd.f32 0.0, %v1613
      %1615 = vmatmul.bf16.gmra.mxu0 %v1404
      %v1616 = vpop.f32.mrf.mxu0
      %v1617 = vadd.f32 0.0, %v1616
      %v1618 = vpop.f32.mrf.mxu0
      %v1619 = vadd.f32 0.0, %v1618
      %1620 = vmatmul.bf16.gmra.mxu0 %v1492
      %v1621 = vpop.f32.mrf.mxu0
      %v1622 = vadd.f32 0.0, %v1621
      %v1623 = vpop.f32.mrf.mxu0
      %v1624 = vadd.f32 0.0, %v1623
      %1625 = vmatmul.bf16.gmra.mxu0 %v1580
      %v1626 = vpop.f32.mrf.mxu0
      %v1627 = vadd.f32 0.0, %v1626
      %v1628 = vpop.f32.mrf.mxu0
      %v1629 = vadd.f32 0.0, %v1628
      %1630 = vdwg.mxu0
      %v1631 = vadd.f32 %v1543, %v1592
      %v1632 = vadd.f32 %v1544, %v1594
      %v1633 = vadd.f32 %v1545, %v1597
      %v1634 = vadd.f32 %v1546, %v1599
      %v1635 = vadd.f32 %v1547, %v1602
      %v1636 = vadd.f32 %v1548, %v1604
      %v1637 = vadd.f32 %v1549, %v1607
      %v1638 = vadd.f32 %v1550, %v1609
      %v1639 = vadd.f32 %v1551, %v1612
      %v1640 = vadd.f32 %v1552, %v1614
      %v1641 = vadd.f32 %v1553, %v1617
      %v1642 = vadd.f32 %v1554, %v1619
      %v1643 = vadd.f32 %v1555, %v1622
      %v1644 = vadd.f32 %v1556, %v1624
      %v1645 = vadd.f32 %v1557, %v1627
      %v1646 = vadd.f32 %v1558, %v1629
      %p1647 = scmp.eq.s32.totalorder %s26, 0
      %p1648 = scmp.eq.s32.totalorder %s27, 0
      %p1649 = pnand %p1647, %p1648
      %p1650 = pneg %p1649
      // Predicated region
      $region49: #{frru_forward.3} parent=47 // pred_check
        _
      $region50: #{frru_forward.3} parent=47 // pred_check_branch
        %1652 = sbr.rel (%p1649) target = $region52
      $region51: #{frru_forward.3} parent=47 // pred_region
        %vm1653 = vcmask 253952
        %1654 = vst.msk [vmem:[#allocation2] sm:$0x1] %vm1653, 0.0
        %1655 = vst.msk [vmem:[#allocation3] sm:$0x1] %vm1653, 0.0
      $region52: #{frru_forward.3} parent=47 // pred_fallthru
        _
      // Predicated region
      $region53: #{frru_forward.3} parent=47 // pred_check
        %p1656 = pneg %p1647
      $region54: #{frru_forward.3} parent=47 // pred_check_branch
        %1658 = sbr.rel (%p1656) target = $region56
      $region55: #{frru_forward.3} parent=47 // pred_region
        %v1659 = vld [vmem:[#allocation2] sm:$0x1]
        %v1660 = vsel %vm476, %v1631, 0.0
        %v1661 = vsel %vm476, %v1632, 0.0
        %v1662 = vadd.f32 %v1660, %v1661
        %v1663 = vsel %vm476, %v1633, 0.0
        %v1664 = vadd.f32 %v1662, %v1663
        %v1665 = vsel %vm476, %v1634, 0.0
        %v1666 = vadd.f32 %v1664, %v1665
        %v1667 = vsel %vm476, %v1635, 0.0
        %v1668 = vadd.f32 %v1666, %v1667
        %v1669 = vsel %vm476, %v1636, 0.0
        %v1670 = vadd.f32 %v1668, %v1669
        %v1671 = vsel %vm476, %v1637, 0.0
        %v1672 = vadd.f32 %v1670, %v1671
        %v1673 = vsel %vm476, %v1638, 0.0
        %v1674 = vadd.f32 %v1672, %v1673
        %v1675 = vsel %vm476, %v1639, 0.0
        %v1676 = vadd.f32 %v1674, %v1675
        %v1677 = vsel %vm476, %v1640, 0.0
        %v1678 = vadd.f32 %v1676, %v1677
        %v1679 = vsel %vm476, %v1641, 0.0
        %v1680 = vadd.f32 %v1678, %v1679
        %v1681 = vsel %vm476, %v1642, 0.0
        %v1682 = vadd.f32 %v1680, %v1681
        %v1683 = vsel %vm476, %v1643, 0.0
        %v1684 = vadd.f32 %v1682, %v1683
        %v1685 = vsel %vm476, %v1644, 0.0
        %v1686 = vadd.f32 %v1684, %v1685
        %v1687 = vsel %vm476, %v1645, 0.0
        %v1688 = vadd.f32 %v1686, %v1687
        %v1689 = vsel %vm476, %v1646, 0.0
        %v1690 = vadd.f32 %v1688, %v1689
        %v1691 = vrot.slane %v1690, 4
        %v1692 = vadd.f32 %v1690, %v1691
        %v1693 = vrot.slane %v1692, 2
        %v1694 = vadd.f32 %v1692, %v1693
        %v1695 = vrot.slane %v1694, 1
        %v1696 = vadd.f32 %v1694, %v1695
        %v1697 = vadd.f32 %v1659, %v1696
        %vm1698 = vcmask 253952
        %1699 = vst.msk [vmem:[#allocation2] sm:$0x1] %vm1698, %v1697
        %v1700 = vld [vmem:[#allocation3] sm:$0x1]
        %v1701 = vmul.f32 %v1631, %v1631
        %v1702 = vmul.f32 %v1632, %v1632
        %v1703 = vmul.f32 %v1633, %v1633
        %v1704 = vmul.f32 %v1634, %v1634
        %v1705 = vmul.f32 %v1635, %v1635
        %v1706 = vmul.f32 %v1636, %v1636
        %v1707 = vmul.f32 %v1637, %v1637
        %v1708 = vmul.f32 %v1638, %v1638
        %v1709 = vmul.f32 %v1639, %v1639
        %v1710 = vmul.f32 %v1640, %v1640
        %v1711 = vmul.f32 %v1641, %v1641
        %v1712 = vmul.f32 %v1642, %v1642
        %v1713 = vmul.f32 %v1643, %v1643
        %v1714 = vmul.f32 %v1644, %v1644
        %v1715 = vmul.f32 %v1645, %v1645
        %v1716 = vmul.f32 %v1646, %v1646
        %v1717 = vsel %vm476, %v1701, 0.0
        %v1718 = vsel %vm476, %v1702, 0.0
        %v1719 = vadd.f32 %v1717, %v1718
        %v1720 = vsel %vm476, %v1703, 0.0
        %v1721 = vadd.f32 %v1719, %v1720
        %v1722 = vsel %vm476, %v1704, 0.0
        %v1723 = vadd.f32 %v1721, %v1722
        %v1724 = vsel %vm476, %v1705, 0.0
        %v1725 = vadd.f32 %v1723, %v1724
        %v1726 = vsel %vm476, %v1706, 0.0
        %v1727 = vadd.f32 %v1725, %v1726
        %v1728 = vsel %vm476, %v1707, 0.0
        %v1729 = vadd.f32 %v1727, %v1728
        %v1730 = vsel %vm476, %v1708, 0.0
        %v1731 = vadd.f32 %v1729, %v1730
        %v1732 = vsel %vm476, %v1709, 0.0
        %v1733 = vadd.f32 %v1731, %v1732
        %v1734 = vsel %vm476, %v1710, 0.0
        %v1735 = vadd.f32 %v1733, %v1734
        %v1736 = vsel %vm476, %v1711, 0.0
        %v1737 = vadd.f32 %v1735, %v1736
        %v1738 = vsel %vm476, %v1712, 0.0
        %v1739 = vadd.f32 %v1737, %v1738
        %v1740 = vsel %vm476, %v1713, 0.0
        %v1741 = vadd.f32 %v1739, %v1740
        %v1742 = vsel %vm476, %v1714, 0.0
        %v1743 = vadd.f32 %v1741, %v1742
        %v1744 = vsel %vm476, %v1715, 0.0
        %v1745 = vadd.f32 %v1743, %v1744
        %v1746 = vsel %vm476, %v1716, 0.0
        %v1747 = vadd.f32 %v1745, %v1746
        %v1748 = vrot.slane %v1747, 4
        %v1749 = vadd.f32 %v1747, %v1748
        %v1750 = vrot.slane %v1749, 2
        %v1751 = vadd.f32 %v1749, %v1750
        %v1752 = vrot.slane %v1751, 1
        %v1753 = vadd.f32 %v1751, %v1752
        %v1754 = vadd.f32 %v1700, %v1753
        %1755 = vst.msk [vmem:[#allocation3] sm:$0x1] %vm1698, %v1754
      $region56: #{frru_forward.3} parent=47 // pred_fallthru
        _
      %p1756 = scmp.eq.s32.totalorder %s27, 1
      %p1757 = pnand %p1647, %p1756
      %p1758 = pneg %p1757
      // Predicated region
      $region57: #{frru_forward.3} parent=47 // pred_check
        _
      $region58: #{frru_forward.3} parent=47 // pred_check_branch
        %1760 = sbr.rel (%p1757) target = $region60
      $region59: #{frru_forward.3} parent=47 // pred_region
        %v1761 = vld [vmem:[#allocation2] sm:$0x1]
        %v1762 = vld [vmem:[%s3] sm:$0xff]
        %v1763 = vld [vmem:[%s3 + $0x8] sm:$0xff]
        %v1764 = vld [vmem:[%s3 + $0x10] sm:$0xff]
        %v1765 = vld [vmem:[%s3 + $0x18] sm:$0xff]
        %v1767 = vsel %vm476, %v1761, 0
        %1769 = vmatpush.msra.mxu0 0.0
        %1770 = vmatpush.msra.mxu0 0.0
        %1771 = vmatpush.msra.mxu0 0.0
        %1772 = vmatpush.msra.mxu0 0.0
        %1773 = vmatpush.msra.mxu0 0.0
        %1774 = vmatpush.msra.mxu0 0.0
        %1775 = vmatpush.msra.mxu0 0.0
        %1776 = vmatpush.msra.mxu0 0.0
        %1777 = vmatpush.msra.mxu0 0.0
        %1778 = vmatpush.msra.mxu0 0.0
        %1779 = vmatpush.msra.mxu0 0.0
        %1780 = vmatpush.msra.mxu0 0.0
        %1781 = vmatpush.msra.mxu0 %v1765
        %1782 = vmatpush.msra.mxu0 %v1764
        %1783 = vmatpush.msra.mxu0 %v1763
        %1784 = vmatpush.msra.mxu0 %v1762
        %1785 = vmatmul.f32.gmra.mxu0 %v1767
        %v1786 = vpop.f32.mrf.mxu0
        %v1787 = vadd.f32 0.0, %v1786
        %1788 = vdwg.mxu0
        %v1789 = vld [vmem:[#allocation3] sm:$0x1]
        %v1791 = vsel %vm476, %v1789, 0
        %1793 = vmatpush.msra.mxu0 0.0
        %1794 = vmatpush.msra.mxu0 0.0
        %1795 = vmatpush.msra.mxu0 0.0
        %1796 = vmatpush.msra.mxu0 0.0
        %1797 = vmatpush.msra.mxu0 0.0
        %1798 = vmatpush.msra.mxu0 0.0
        %1799 = vmatpush.msra.mxu0 0.0
        %1800 = vmatpush.msra.mxu0 0.0
        %1801 = vmatpush.msra.mxu0 0.0
        %1802 = vmatpush.msra.mxu0 0.0
        %1803 = vmatpush.msra.mxu0 0.0
        %1804 = vmatpush.msra.mxu0 0.0
        %1805 = vmatpush.msra.mxu0 %v1765
        %1806 = vmatpush.msra.mxu0 %v1764
        %1807 = vmatpush.msra.mxu0 %v1763
        %1808 = vmatpush.msra.mxu0 %v1762
        %1809 = vmatmul.f32.gmra.mxu0 %v1791
        %v1810 = vpop.f32.mrf.mxu0
        %v1811 = vadd.f32 0.0, %v1810
        %1812 = vdwg.mxu0
        %v1813 = vmul.f32 %v1787, %v1787
        %v1814 = vsub.f32 %v1811, %v1813
        %v1815 = vadd.f32 %v1814, 1e-05
        %v1816 = vrsqrt.pop %v1815
        %v1817 = vmul.f32 %v1816, %v1815
        %v1818 = vmul.f32 %v1817, %v1816
        %v1819 = vmul.f32 0.5, %v1818
        %v1820 = vsub.f32 1.5, %v1819
        %v1821 = vmul.f32 %v1816, %v1820
        %vm1822 = vweird.f32 %v1815
        %vm1823 = vweird.f32 %v1816
        %vm1824 = vmor %vm1822, %vm1823
        %v1825 = vsel %vm1824, %v1816, %v1821
        %v1826 = vld [vmem:[%s4] sm:$0xff]
        %v1827 = vld [vmem:[%s4 + $0x8] sm:$0xff]
        %vm1828 = vcmask 130048
        %v1830 = vsel %vm1828, %v1787, 0
        %1832 = vmatpush.msra.mxu0 0.0
        %1833 = vmatpush.msra.mxu0 0.0
        %1834 = vmatpush.msra.mxu0 0.0
        %1835 = vmatpush.msra.mxu0 0.0
        %1836 = vmatpush.msra.mxu0 0.0
        %1837 = vmatpush.msra.mxu0 0.0
        %1838 = vmatpush.msra.mxu0 0.0
        %1839 = vmatpush.msra.mxu0 0.0
        %1840 = vmatpush.msra.mxu0 0.0
        %1841 = vmatpush.msra.mxu0 0.0
        %1842 = vmatpush.msra.mxu0 0.0
        %1843 = vmatpush.msra.mxu0 0.0
        %1844 = vmatpush.msra.mxu0 0.0
        %1845 = vmatpush.msra.mxu0 0.0
        %1846 = vmatpush.msra.mxu0 %v1827
        %1847 = vmatpush.msra.mxu0 %v1826
        %1848 = vmatmul.f32.gmra.mxu0 %v1830
        %v1849 = vpop.f32.mrf.mxu0
        %v1850 = vadd.f32 0.0, %v1849
        %1851 = vdwg.mxu0
        %v1853 = vsel %vm1828, %v1825, 0
        %1855 = vmatpush.msra.mxu0 0.0
        %1856 = vmatpush.msra.mxu0 0.0
        %1857 = vmatpush.msra.mxu0 0.0
        %1858 = vmatpush.msra.mxu0 0.0
        %1859 = vmatpush.msra.mxu0 0.0
        %1860 = vmatpush.msra.mxu0 0.0
        %1861 = vmatpush.msra.mxu0 0.0
        %1862 = vmatpush.msra.mxu0 0.0
        %1863 = vmatpush.msra.mxu0 0.0
        %1864 = vmatpush.msra.mxu0 0.0
        %1865 = vmatpush.msra.mxu0 0.0
        %1866 = vmatpush.msra.mxu0 0.0
        %1867 = vmatpush.msra.mxu0 0.0
        %1868 = vmatpush.msra.mxu0 0.0
        %1869 = vmatpush.msra.mxu0 %v1827
        %1870 = vmatpush.msra.mxu0 %v1826
        %1871 = vmatmul.f32.gmra.mxu0 %v1853
        %v1872 = vpop.f32.mrf.mxu0
        %v1873 = vadd.f32 0.0, %v1872
        %1874 = vdwg.mxu0
        %v1875 = vld [vmem:[%s2] sm:$0x1]
        %v1876 = vld [vmem:[%s2 + $0x1] sm:$0x1]
        %v1877 = vmul.f32 %v1875, %v1873
        %vm1878 = vcmask 253952
        %1879 = vst.msk [vmem:[#allocation4] sm:$0x1] %vm1878, %v1877
        %v1880 = vmul.f32 %v1850, %v1877
        %v1881 = vsub.f32 %v1876, %v1880
        %1882 = vst.msk [vmem:[#allocation5] sm:$0x1] %vm1878, %v1881
      $region60: #{frru_forward.3} parent=47 // pred_fallthru
        _
      %p1883 = scmp.eq.s32.totalorder %s26, 1
      // Predicated region
      $region61: #{frru_forward.3} parent=47 // pred_check
        %p1884 = pneg %p1883
      $region62: #{frru_forward.3} parent=47 // pred_check_branch
        %1886 = sbr.rel (%p1884) target = $region64
      $region63: #{frru_forward.3} parent=47 // pred_region
        %v1887 = vld [vmem:[#allocation4] sm:$0x1]
        %v1889 = vperm.slane %v1887, 0
        %v1891 = vmul.f32 %v1631, %v1889
        %v1892 = vmul.f32 %v1632, %v1889
        %v1893 = vmul.f32 %v1633, %v1889
        %v1894 = vmul.f32 %v1634, %v1889
        %v1895 = vmul.f32 %v1635, %v1889
        %v1896 = vmul.f32 %v1636, %v1889
        %v1897 = vmul.f32 %v1637, %v1889
        %v1898 = vmul.f32 %v1638, %v1889
        %v1899 = vmul.f32 %v1639, %v1889
        %v1900 = vmul.f32 %v1640, %v1889
        %v1901 = vmul.f32 %v1641, %v1889
        %v1902 = vmul.f32 %v1642, %v1889
        %v1903 = vmul.f32 %v1643, %v1889
        %v1904 = vmul.f32 %v1644, %v1889
        %v1905 = vmul.f32 %v1645, %v1889
        %v1906 = vmul.f32 %v1646, %v1889
        %v1907 = vld [vmem:[#allocation5] sm:$0x1]
        %v1909 = vperm.slane %v1907, 0
        %v1911 = vadd.f32 %v1891, %v1909
        %v1912 = vadd.f32 %v1892, %v1909
        %v1913 = vadd.f32 %v1893, %v1909
        %v1914 = vadd.f32 %v1894, %v1909
        %v1915 = vadd.f32 %v1895, %v1909
        %v1916 = vadd.f32 %v1896, %v1909
        %v1917 = vadd.f32 %v1897, %v1909
        %v1918 = vadd.f32 %v1898, %v1909
        %v1919 = vadd.f32 %v1899, %v1909
        %v1920 = vadd.f32 %v1900, %v1909
        %v1921 = vadd.f32 %v1901, %v1909
        %v1922 = vadd.f32 %v1902, %v1909
        %v1923 = vadd.f32 %v1903, %v1909
        %v1924 = vadd.f32 %v1904, %v1909
        %v1925 = vadd.f32 %v1905, %v1909
        %v1926 = vadd.f32 %v1906, %v1909
        %v1927 = vmax.f32 %v1911, 0.0
        %v1928 = vmax.f32 %v1912, 0.0
        %v1929 = vmax.f32 %v1913, 0.0
        %v1930 = vmax.f32 %v1914, 0.0
        %v1931 = vmax.f32 %v1915, 0.0
        %v1932 = vmax.f32 %v1916, 0.0
        %v1933 = vmax.f32 %v1917, 0.0
        %v1934 = vmax.f32 %v1918, 0.0
        %v1935 = vmax.f32 %v1919, 0.0
        %v1936 = vmax.f32 %v1920, 0.0
        %v1937 = vmax.f32 %v1921, 0.0
        %v1938 = vmax.f32 %v1922, 0.0
        %v1939 = vmax.f32 %v1923, 0.0
        %v1940 = vmax.f32 %v1924, 0.0
        %v1941 = vmax.f32 %v1925, 0.0
        %v1942 = vmax.f32 %v1926, 0.0
        %v1943 = vpack.c.bf16 %v1927, %v1927
        %v1944 = vpack.c.bf16 %v1928, %v1928
        %v1945 = vpack.c.bf16 %v1929, %v1929
        %v1946 = vpack.c.bf16 %v1930, %v1930
        %v1947 = vpack.c.bf16 %v1931, %v1931
        %v1948 = vpack.c.bf16 %v1932, %v1932
        %v1949 = vpack.c.bf16 %v1933, %v1933
        %v1950 = vpack.c.bf16 %v1934, %v1934
        %v1951 = vpack.c.bf16 %v1935, %v1935
        %v1952 = vpack.c.bf16 %v1936, %v1936
        %v1953 = vpack.c.bf16 %v1937, %v1937
        %v1954 = vpack.c.bf16 %v1938, %v1938
        %v1955 = vpack.c.bf16 %v1939, %v1939
        %v1956 = vpack.c.bf16 %v1940, %v1940
        %v1957 = vpack.c.bf16 %v1941, %v1941
        %v1958 = vpack.c.bf16 %v1942, %v1942
        %vm1959 = vcmask 257024
        %1960 = vst.msk [vmem:[%s369] sm:$0xf] %vm1959, %v1943
        %1961 = vst.msk [vmem:[%s369 + $0x4] sm:$0xf] %vm1959, %v1944
        %1962 = vst.msk [vmem:[%s369 + $0x8] sm:$0xf] %vm1959, %v1945
        %1963 = vst.msk [vmem:[%s369 + $0xc] sm:$0xf] %vm1959, %v1946
        %1964 = vst.msk [vmem:[%s369 + $0x10] sm:$0xf] %vm1959, %v1947
        %1965 = vst.msk [vmem:[%s369 + $0x14] sm:$0xf] %vm1959, %v1948
        %1966 = vst.msk [vmem:[%s369 + $0x18] sm:$0xf] %vm1959, %v1949
        %1967 = vst.msk [vmem:[%s369 + $0x1c] sm:$0xf] %vm1959, %v1950
        %1968 = vst.msk [vmem:[%s369 + $0x20] sm:$0xf] %vm1959, %v1951
        %1969 = vst.msk [vmem:[%s369 + $0x24] sm:$0xf] %vm1959, %v1952
        %1970 = vst.msk [vmem:[%s369 + $0x28] sm:$0xf] %vm1959, %v1953
        %1971 = vst.msk [vmem:[%s369 + $0x2c] sm:$0xf] %vm1959, %v1954
        %1972 = vst.msk [vmem:[%s369 + $0x30] sm:$0xf] %vm1959, %v1955
        %1973 = vst.msk [vmem:[%s369 + $0x34] sm:$0xf] %vm1959, %v1956
        %1974 = vst.msk [vmem:[%s369 + $0x38] sm:$0xf] %vm1959, %v1957
        %1975 = vst.msk [vmem:[%s369 + $0x3c] sm:$0xf] %vm1959, %v1958
        %v1976 = vpack.c.bf16 %v1928, %v1927
        %v1977 = vpack.c.bf16 %v1930, %v1929
        %v1978 = vpack.c.bf16 %v1932, %v1931
        %v1979 = vpack.c.bf16 %v1934, %v1933
        %v1980 = vpack.c.bf16 %v1936, %v1935
        %v1981 = vpack.c.bf16 %v1938, %v1937
        %v1982 = vpack.c.bf16 %v1940, %v1939
        %v1983 = vpack.c.bf16 %v1942, %v1941
        %v1984 = vld [vmem:[%s5] sm:$0xf]
        %v1985 = vld [vmem:[%s5 + $0x4] sm:$0xf]
        %v1986 = vld [vmem:[%s5 + $0x8] sm:$0xf]
        %v1987 = vld [vmem:[%s5 + $0xc] sm:$0xf]
        %v1988 = vld [vmem:[%s6] sm:$0x1]
        %v1990 = vperm.slane %v1988, 0
        %v1996 = vunpack.c.l.b16 %v1984
        %v1997 = vunpack.c.l.b16 %v1985
        %v1998 = vunpack.c.l.b16 %v1986
        %v1999 = vunpack.c.l.b16 %v1987
        %v2000 = vpack.c.b16 %v1997, %v1996
        %v2001 = vpack.c.b16 %v1999, %v1998
        %v2005 = vsel %vm476, %v1976, 0
        %v2008 = vsel %vm476, %v1977, 0
        %v2011 = vsel %vm476, %v1978, 0
        %v2014 = vsel %vm476, %v1979, 0
        %v2017 = vsel %vm476, %v1980, 0
        %v2020 = vsel %vm476, %v1981, 0
        %v2023 = vsel %vm476, %v1982, 0
        %v2026 = vsel %vm476, %v1983, 0
        %2028 = vmatpush.bf16.msra.mxu0 0
        %2029 = vmatpush.bf16.msra.mxu0 0
        %2030 = vmatpush.bf16.msra.mxu0 0
        %2031 = vmatpush.bf16.msra.mxu0 0
        %2032 = vmatpush.bf16.msra.mxu0 0
        %2033 = vmatpush.bf16.msra.mxu0 0
        %2034 = vmatpush.bf16.msra.mxu0 %v2001
        %2035 = vmatpush.bf16.msra.mxu0 %v2000
        %2036 = vmatmul.bf16.gmra.mxu0 %v2005
        %v2037 = vpop.f32.mrf.mxu0
        %v2038 = vadd.f32 %v1990, %v2037
        %v2039 = vpop.f32.mrf.mxu0
        %v2040 = vadd.f32 %v1990, %v2039
        %2041 = vmatmul.bf16.gmra.mxu0 %v2008
        %v2042 = vpop.f32.mrf.mxu0
        %v2043 = vadd.f32 %v1990, %v2042
        %v2044 = vpop.f32.mrf.mxu0
        %v2045 = vadd.f32 %v1990, %v2044
        %2046 = vmatmul.bf16.gmra.mxu0 %v2011
        %v2047 = vpop.f32.mrf.mxu0
        %v2048 = vadd.f32 %v1990, %v2047
        %v2049 = vpop.f32.mrf.mxu0
        %v2050 = vadd.f32 %v1990, %v2049
        %2051 = vmatmul.bf16.gmra.mxu0 %v2014
        %v2052 = vpop.f32.mrf.mxu0
        %v2053 = vadd.f32 %v1990, %v2052
        %v2054 = vpop.f32.mrf.mxu0
        %v2055 = vadd.f32 %v1990, %v2054
        %2056 = vmatmul.bf16.gmra.mxu0 %v2017
        %v2057 = vpop.f32.mrf.mxu0
        %v2058 = vadd.f32 %v1990, %v2057
        %v2059 = vpop.f32.mrf.mxu0
        %v2060 = vadd.f32 %v1990, %v2059
        %2061 = vmatmul.bf16.gmra.mxu0 %v2020
        %v2062 = vpop.f32.mrf.mxu0
        %v2063 = vadd.f32 %v1990, %v2062
        %v2064 = vpop.f32.mrf.mxu0
        %v2065 = vadd.f32 %v1990, %v2064
        %2066 = vmatmul.bf16.gmra.mxu0 %v2023
        %v2067 = vpop.f32.mrf.mxu0
        %v2068 = vadd.f32 %v1990, %v2067
        %v2069 = vpop.f32.mrf.mxu0
        %v2070 = vadd.f32 %v1990, %v2069
        %2071 = vmatmul.bf16.gmra.mxu0 %v2026
        %v2072 = vpop.f32.mrf.mxu0
        %v2073 = vadd.f32 %v1990, %v2072
        %v2074 = vpop.f32.mrf.mxu0
        %v2075 = vadd.f32 %v1990, %v2074
        %2076 = vdwg.mxu0
        %v2077 = vpack.c.bf16 %v2038, %v2038
        %v2078 = vpack.c.bf16 %v2040, %v2040
        %v2079 = vpack.c.bf16 %v2043, %v2043
        %v2080 = vpack.c.bf16 %v2045, %v2045
        %v2081 = vpack.c.bf16 %v2048, %v2048
        %v2082 = vpack.c.bf16 %v2050, %v2050
        %v2083 = vpack.c.bf16 %v2053, %v2053
        %v2084 = vpack.c.bf16 %v2055, %v2055
        %v2085 = vpack.c.bf16 %v2058, %v2058
        %v2086 = vpack.c.bf16 %v2060, %v2060
        %v2087 = vpack.c.bf16 %v2063, %v2063
        %v2088 = vpack.c.bf16 %v2065, %v2065
        %v2089 = vpack.c.bf16 %v2068, %v2068
        %v2090 = vpack.c.bf16 %v2070, %v2070
        %v2091 = vpack.c.bf16 %v2073, %v2073
        %v2092 = vpack.c.bf16 %v2075, %v2075
        %2093 = vst.msk [vmem:[%s381] sm:$0xf] %vm1959, %v2077
        %2094 = vst.msk [vmem:[%s381 + $0x4] sm:$0xf] %vm1959, %v2078
        %2095 = vst.msk [vmem:[%s381 + $0x8] sm:$0xf] %vm1959, %v2079
        %2096 = vst.msk [vmem:[%s381 + $0xc] sm:$0xf] %vm1959, %v2080
        %2097 = vst.msk [vmem:[%s381 + $0x10] sm:$0xf] %vm1959, %v2081
        %2098 = vst.msk [vmem:[%s381 + $0x14] sm:$0xf] %vm1959, %v2082
        %2099 = vst.msk [vmem:[%s381 + $0x18] sm:$0xf] %vm1959, %v2083
        %2100 = vst.msk [vmem:[%s381 + $0x1c] sm:$0xf] %vm1959, %v2084
        %2101 = vst.msk [vmem:[%s381 + $0x20] sm:$0xf] %vm1959, %v2085
        %2102 = vst.msk [vmem:[%s381 + $0x24] sm:$0xf] %vm1959, %v2086
        %2103 = vst.msk [vmem:[%s381 + $0x28] sm:$0xf] %vm1959, %v2087
        %2104 = vst.msk [vmem:[%s381 + $0x2c] sm:$0xf] %vm1959, %v2088
        %2105 = vst.msk [vmem:[%s381 + $0x30] sm:$0xf] %vm1959, %v2089
        %2106 = vst.msk [vmem:[%s381 + $0x34] sm:$0xf] %vm1959, %v2090
        %2107 = vst.msk [vmem:[%s381 + $0x38] sm:$0xf] %vm1959, %v2091
        %2108 = vst.msk [vmem:[%s381 + $0x3c] sm:$0xf] %vm1959, %v2092
      $region64: #{frru_forward.3} parent=47 // pred_fallthru
        _
      %s2109 = smul.u32 %s27, %s26
      %s2110 = smul.u32 16, %s2109
      %p2111 = scmp.lt.s32.totalorder %s25, 1
      %s2112 = scalar_select %p2111, %s25, 1
      %p2113 = scmp.lt.s32.totalorder %s2110, 31
      %s2114 = scalar_select %p2113, %s2110, 31
      %s2115 = smul.addr %s2112, 32
      %s2116 = sadd.s32 %s2114, %s2115
      %s2117 = smul.addr %s2116, 4
      %s2118 = scalar_lea.vmem %s7, %s2117
      %s2119 = smul.u32 %s27, %s26
      %s2120 = smul.u32 16, %s2119
      %p2121 = scmp.lt.s32.totalorder %s25, 1
      %s2122 = scalar_select %p2121, %s25, 1
      %p2123 = scmp.lt.s32.totalorder %s2120, 31
      %s2124 = scalar_select %p2123, %s2120, 31
      %s2125 = smul.addr %s2122, 32
      %s2126 = sadd.s32 %s2124, %s2125
      %s2127 = smul.addr %s2126, 4
      %s2128 = scalar_lea.vmem %s8, %s2127
      // Predicated region
      $region65: #{frru_forward.3} parent=47 // pred_check
        %p2129 = pneg %p217
      $region66: #{frru_forward.3} parent=47 // pred_check_branch
        %2131 = sbr.rel (%p2129) target = $region68
      $region67: #{frru_forward.3} parent=47 // pred_region
        %s2132 = smul.u32 %s27, %s26
        %s2133 = smul.u32 16, %s2132
      $region68: #{frru_forward.3} parent=47 // pred_fallthru
        _
      // Predicated region
      $region69: #{frru_forward.3} parent=47 // pred_check
        %p2134 = pneg %p247
      $region70: #{frru_forward.3} parent=47 // pred_check_branch
        %2136 = sbr.rel (%p2134) target = $region72
      $region71: #{frru_forward.3} parent=47 // pred_region
        %s2137 = smul.u32 %s27, %s26
        %s2138 = smul.u32 16, %s2137
      $region72: #{frru_forward.3} parent=47 // pred_fallthru
        _
    $region48: #{frru_forward.3} parent=5 // pred_fallthru
      _
    %p2139 = scmp.le.s32.totalorder 2, %s15
    // Predicated region
    $region73: #{frru_forward.3} parent=5 // pred_check
      %p2140 = pneg %p2139
    $region74: #{frru_forward.3} parent=5 // pred_check_branch
      %2142 = sbr.rel (%p2140) target = $region76
    $region75: #{frru_forward.3} parent=5 // pred_region
      %s2143 = ssub.s32 %s15, 2
      // Predicated region
      $region77: #{frru_forward.3} parent=75 // pred_check
        %p2144 = pneg %p223
      $region78: #{frru_forward.3} parent=75 // pred_check_branch
        %2146 = sbr.rel (%p2144) target = $region80
      $region79: #{frru_forward.3} parent=75 // pred_region
        %s2147 = smul.u32 %s30, %s29
        %s2148 = smul.u32 16, %s2147
        %p2149 = scmp.lt.s32.totalorder %s28, 1
        %s2150 = scalar_select %p2149, %s28, 1
        %p2151 = scmp.lt.s32.totalorder %s2148, 31
        %s2152 = scalar_select %p2151, %s2148, 31
        %s2153 = smul.addr %s2150, 32
        %s2154 = sadd.s32 %s2152, %s2153
        %s2155 = smul.addr %s2154, 4
        %s2156 = scalar_lea.vmem %s7, %s2155
      $region80: #{frru_forward.3} parent=75 // pred_fallthru
        _
      // Predicated region
      $region81: #{frru_forward.3} parent=75 // pred_check
        %p2157 = pneg %p253
      $region82: #{frru_forward.3} parent=75 // pred_check_branch
        %2159 = sbr.rel (%p2157) target = $region84
      $region83: #{frru_forward.3} parent=75 // pred_region
        %s2160 = smul.u32 %s30, %s29
        %s2161 = smul.u32 16, %s2160
        %p2162 = scmp.lt.s32.totalorder %s28, 1
        %s2163 = scalar_select %p2162, %s28, 1
        %p2164 = scmp.lt.s32.totalorder %s2161, 31
        %s2165 = scalar_select %p2164, %s2161, 31
        %s2166 = smul.addr %s2163, 32
        %s2167 = sadd.s32 %s2165, %s2166
        %s2168 = smul.addr %s2167, 4
        %s2169 = scalar_lea.vmem %s8, %s2168
      $region84: #{frru_forward.3} parent=75 // pred_fallthru
        _
    $region76: #{frru_forward.3} parent=5 // pred_fallthru
      _
  $region6: #{frru_forward.3} parent=0 // loop_footer
    %s19 = sadd.s32 1, %s15
  $region7: #{frru_forward.3} parent=0 // loop_footer_branch
    %14 = sbr.rel target = $region3
  $region8: #{frru_forward.3} parent=0 // loop_exit
    _

</llo_original>
